<compile_context>
chip_gen: v5e
topology: v5e:2x2
jax: 0.10.0
libtpu: 0.0.40
codegen_flags: <defaults>
</compile_context>

<pallas_src>
import jax
import jax.numpy as jnp
from jax.experimental import pallas as pl
from jax.experimental.pallas import tpu as pltpu

PADDING_TOKEN = 1
D_MODEL = 768     # hard-coded in PredictorTokenTransform (MLP(768, 1, 768, 1), mask_token)
SEQ = 512         # hard-coded .repeat(1, 512, 1)


def _round_up(x, m):
    return (x + m - 1) // m * m


# --------------------------------------------------------------------------- #
# Fused MLP: every Linear(+ReLU) layer in ONE pallas_call.
# --------------------------------------------------------------------------- #
def _fused_mlp_kernel(x_ref, *refs):
    """refs = (w0, b0, w1, b1, ..., w_{L-1}, b_{L-1}, out)."""
    o_ref = refs[-1]
    wb = refs[:-1]
    n_layers = len(wb) // 2
    h = x_ref[...]                                       # (TM, K) bf16
    for l in range(n_layers):                            # statically unrolled (3 layers)
        w = wb[2 * l][...]                               # (K_l, N_l) bf16, VMEM-resident
        b = wb[2 * l + 1][...]                           # (1, N_l)  f32, VMEM-resident
        h = jnp.dot(h.astype(jnp.bfloat16), w,
                    preferred_element_type=jnp.float32) + b
        if l < n_layers - 1:                             # ReLU on all but the last layer
            h = jnp.maximum(h, 0.0)
    o_ref[...] = h.astype(o_ref.dtype)


def fused_mlp(params, x):
    """Linear/ReLU chain over x:(M, ninp) f32 -> (M, ntoken) f32 in one pallas_call.

    params: list of (w, b); w is bf16 (K_l, N_l) with K_0 zero-padded to a multiple of
    128, b is f32 (1, N_l).  y = x @ W + b  (== torch x @ weight.T + bias).
    """
    M, ninp = x.shape
    k_pad = params[0][0].shape[0]
    n_tok = params[-1][0].shape[1]
    assert k_pad % 128 == 0 and ninp <= k_pad
    for w, b in params:
        assert w.shape[1] % 128 == 0 and b.shape == (1, w.shape[1])

    tm = min(256, _round_up(M, 8))                       # batch tile, multiple of 8 sublanes
    m_pad = _round_up(M, tm)
    grid = (pl.cdiv(m_pad, tm),)

    # Lane-dense, zero-padded bf16 input (ninp=1 -> 128 lanes).
    x_p = jnp.zeros((m_pad, k_pad), jnp.bfloat16).at[:M, :ninp].set(
        x.astype(jnp.bfloat16))

    flat_inputs = [x_p]
    in_specs = [pl.BlockSpec((tm, k_pad), lambda i: (i, 0))]
    for w, b in params:
        flat_inputs += [w, b]
        # Constant index_map -> each weight/bias is DMA'd once and stays VMEM-resident.
        in_specs += [pl.BlockSpec(w.shape, lambda i: (0, 0)),
                     pl.BlockSpec(b.shape, lambda i: (0, 0))]

    flops = 2 * m_pad * sum(w.shape[0] * w.shape[1] for w, _ in params)
    bytes_accessed = int(x_p.size * 2
                         + sum(w.size * 2 + b.size * 4 for w, b in params)
                         + m_pad * n_tok * 4)

    out = pl.pallas_call(
        _fused_mlp_kernel,
        out_shape=jax.ShapeDtypeStruct((m_pad, n_tok), jnp.float32),
        grid=grid,
        in_specs=in_specs,
        out_specs=pl.BlockSpec((tm, n_tok), lambda i: (i, 0)),
        compiler_params=pltpu.CompilerParams(
            dimension_semantics=("parallel",),           # batch tiles are independent
            vmem_limit_bytes=32 * 1024 * 1024,           # explicit budget, v7x-safe
        ),
        cost_estimate=pl.CostEstimate(
            flops=flops, transcendentals=0, bytes_accessed=bytes_accessed),
    )(*flat_inputs)
    return out[:M]


def mlp_reference(params, x):
    """Plain-JAX mirror of the fused kernel math (same bf16 inputs / f32 accumulate)."""
    M, ninp = x.shape
    k_pad = params[0][0].shape[0]
    h = jnp.zeros((M, k_pad), jnp.bfloat16).at[:, :ninp].set(x.astype(jnp.bfloat16))
    n = len(params)
    for l, (w, b) in enumerate(params):
        h = jnp.dot(h.astype(jnp.bfloat16), w, preferred_element_type=jnp.float32) + b
        if l < n - 1:
            h = jnp.maximum(h, 0.0)
    return h


# --------------------------------------------------------------------------- #
# encoder():  trns.unsqueeze(1).repeat(1, SEQ, 1) + encs   as a tiled Pallas add.
# --------------------------------------------------------------------------- #
def _bcast_add_kernel(encs_ref, trns_ref, o_ref):
    # (1, TS, D) + (1, 1, D)  -> broadcast over the sequence tile
    o_ref[...] = encs_ref[...] + trns_ref[...]


def bcast_add(encs, trns, *, ts=128):
    """encs:(B,S,D) + trns:(B,D) broadcast over S, lane-dense (TS, 768) blocks."""
    B, S, D = encs.shape
    assert trns.shape == (B, D) and S % ts == 0 and D % 128 == 0
    trns3 = trns[:, None, :]                             # (B, 1, D)
    return pl.pallas_call(
        _bcast_add_kernel,
        out_shape=jax.ShapeDtypeStruct((B, S, D), encs.dtype),
        grid=(B, S // ts),
        in_specs=[pl.BlockSpec((1, ts, D), lambda b, s: (b, s, 0)),
                  pl.BlockSpec((1, 1, D), lambda b, s: (b, 0, 0))],
        out_specs=pl.BlockSpec((1, ts, D), lambda b, s: (b, s, 0)),
        compiler_params=pltpu.CompilerParams(
            dimension_semantics=("parallel", "parallel")),
    )(encs, trns3)


# --------------------------------------------------------------------------- #
# Parameters + full forward (PredictorTokenTransform.forward semantics).
# --------------------------------------------------------------------------- #
def init_params(key, *, ninp=1, nhid=D_MODEL, ntoken=D_MODEL, nlayers=1,
                n_positions=SEQ + 2, d_model=D_MODEL):
    """MLP weights ((in,out) layout, bf16, K_0 zero-padded to 128), positional
    embedding table and mask_token, deterministic from `key`."""
    dims = [(ninp, nhid)] + [(nhid, nhid)] * nlayers + [(nhid, ntoken)]
    mlp = []
    for fan_in, fan_out in dims:
        key, kw, kb = jax.random.split(key, 3)
        bound = 1.0 / jnp.sqrt(jnp.float32(fan_in))      # nn.Linear default init
        w = jax.random.uniform(kw, (fan_in, fan_out), jnp.float32, -bound, bound)
        b = jax.random.uniform(kb, (1, fan_out), jnp.float32, -bound, bound)
        k_pad = _round_up(fan_in, 128)                   # lane-align K (only ninp=1 changes)
        w_p = jnp.zeros((k_pad, fan_out), jnp.float32).at[:fan_in].set(w)
        mlp.append((w_p.astype(jnp.bfloat16), b))
    key, kp, km = jax.random.split(key, 3)
    pos_emb = 0.02 * jax.random.normal(kp, (n_positions, d_model), jnp.float32)
    mask_token = jax.random.normal(km, (d_model,), jnp.float32)
    return {"mlp": mlp, "pos_emb": pos_emb, "mask_token": mask_token}


def predictor_token_transform_forward(params, xbatch, batch, max_len, *,
                                      padding_token=PADDING_TOKEN, use_pallas=True):
    """Returns (tokens, attention_mask, target_token_mask) like the torch module."""
    pos_emb = params["pos_emb"]
    mask_token = params["mask_token"]
    mlp_params = params["mlp"]
    input_ids = batch["input_ids"]                        # (B, S) int
    target_mask = batch["target_mask"]                    # (B, S) bool

    # ----- encoder(): RoBERTa-style position ids + positional embedding lookup -----
    mask = (input_ids != padding_token).astype(jnp.int32)
    incremental_indices = jnp.cumsum(mask, axis=1) * mask
    enc_ids = incremental_indices + padding_token
    encs = jnp.take(pos_emb, enc_ids, axis=0)             # (B, S, D)

    tres = batch["transform"][:, None].astype(jnp.float32)    # (B, 1)
    if use_pallas:
        trns = fused_mlp(mlp_params, tres)                 # (B, D); .squeeze() no-op for B>1
        ptokens_full = bcast_add(encs, trns)               # repeat(1,S,1) + encs
    else:
        trns = mlp_reference(mlp_params, tres)
        ptokens_full = encs + trns[:, None, :]

    # ----- ragged gather of target positions, NaN-pad -> padding_token, + mask_token -----
    order = jnp.argsort((~target_mask).astype(jnp.int32), axis=1, stable=True)
    gathered = jnp.take_along_axis(ptokens_full, order[:, :max_len, None], axis=1)
    counts = jnp.sum(target_mask.astype(jnp.int32), axis=1)
    valid = jnp.arange(max_len, dtype=jnp.int32)[None, :] < counts[:, None]
    pattention_mask = valid.astype(jnp.int32)
    ptokens = jnp.where(valid[:, :, None], gathered, jnp.float32(padding_token))
    ptokens = ptokens + mask_token[None, None, :]

    ctx_attn = xbatch["attention_mask"]
    tokens = jnp.concatenate([xbatch["input_ids"], ptokens], axis=1)
    attn = jnp.concatenate([ctx_attn, pattention_mask], axis=1)
    tgt = jnp.concatenate([ctx_attn * 0, pattention_mask], axis=1).astype(bool)
    return tokens, attn, tgt


if __name__ == "__main__":
    B, S_CTX = 2, 16
    key = jax.random.PRNGKey(0)
    k_par, k_ids, k_tr, k_tm, k_ctx = jax.random.split(key, 5)

    params = init_params(k_par)

    # Target batch: token ids (trailing padding), scalar transform, boolean target mask.
    lengths = jnp.array([500, 384], jnp.int32)
    pos = jnp.arange(SEQ, dtype=jnp.int32)[None, :]
    input_ids = jnp.where(pos < lengths[:, None],
                          jax.random.randint(k_ids, (B, SEQ), 5, 1000, jnp.int32),
                          PADDING_TOKEN).astype(jnp.int32)
    transform = jax.random.normal(k_tr, (B,), jnp.float32)
    target_mask = (jax.random.uniform(k_tm, (B, SEQ)) < 0.05) & (pos < lengths[:, None])
    target_mask = target_mask.at[:, 2].set(True)           # ensure >=1 target per row
    batch = {"input_ids": input_ids, "transform": transform, "target_mask": target_mask}

    # Context batch: already-encoded context tokens + their attention mask.
    xbatch = {"input_ids": jax.random.normal(k_ctx, (B, S_CTX, D_MODEL), jnp.float32),
              "attention_mask": jnp.ones((B, S_CTX), jnp.int32)}

    # TODO(synk): max_len is data-dependent (ragged gather) in torch; computed host-side here.
    max_len = int(jnp.max(jnp.sum(target_mask.astype(jnp.int32), axis=1)))

    # --- kernel-level checks (bf16 MXU inputs, f32 accumulate -> loose tolerance) ---
    tres = transform[:, None]
    trns_k = jax.block_until_ready(fused_mlp(params["mlp"], tres))
    trns_r = mlp_reference(params["mlp"], tres)
    assert trns_k.shape == (B, D_MODEL)
    assert jnp.allclose(trns_k, trns_r, atol=1e-2, rtol=1e-2)

    encs_demo = jax.random.normal(jax.random.PRNGKey(7), (B, SEQ, D_MODEL), jnp.float32)
    add_k = jax.block_until_ready(bcast_add(encs_demo, trns_r))
    assert jnp.allclose(add_k, encs_demo + trns_r[:, None, :], atol=1e-5, rtol=1e-5)

    # --- full forward: Pallas path vs plain-JAX reference path ---
    tok_p, attn_p, tgt_p = predictor_token_transform_forward(
        params, xbatch, batch, max_len, use_pallas=True)
    tok_p = jax.block_until_ready(tok_p)
    tok_r, attn_r, tgt_r = predictor_token_transform_forward(
        params, xbatch, batch, max_len, use_pallas=False)

    assert tok_p.shape == (B, S_CTX + max_len, D_MODEL)
    assert attn_p.shape == (B, S_CTX + max_len) and tgt_p.dtype == jnp.bool_
    assert jnp.allclose(tok_p, tok_r, atol=1e-2, rtol=1e-2)
    assert jnp.array_equal(attn_p, attn_r) and jnp.array_equal(tgt_p, tgt_r)

    print("KERNEL_OK")
</pallas_src>

<mosaic_0001>
module attributes {stable_mosaic.version = 11 : i64} {
  func.func @_fused_mlp_kernel(%arg0: i32, %arg1: memref<8x128xbf16, #tpu.memory_space<vmem>>, %arg2: memref<128x768xbf16, #tpu.memory_space<vmem>>, %arg3: memref<1x768xf32, #tpu.memory_space<vmem>>, %arg4: memref<768x768xbf16, #tpu.memory_space<vmem>>, %arg5: memref<1x768xf32, #tpu.memory_space<vmem>>, %arg6: memref<768x768xbf16, #tpu.memory_space<vmem>>, %arg7: memref<1x768xf32, #tpu.memory_space<vmem>>, %arg8: memref<8x768xf32, #tpu.memory_space<vmem>>) attributes {dimension_semantics = [#tpu.dimension_semantics<parallel>], iteration_bounds = array<i64: 1>, scalar_prefetch = 0 : i64, scratch_operands = 0 : i64, tpu.core_type = #tpu.core_type<tc>, window_params = [{transform_indices = @transform_0, window_bounds = array<i64: 8, 128>}, {pipeline_mode = #tpu.pipeline_mode<synchronous>, transform_indices = @transform_1, window_bounds = array<i64: 128, 768>}, {pipeline_mode = #tpu.pipeline_mode<synchronous>, transform_indices = @transform_2, window_bounds = array<i64: 1, 768>}, {pipeline_mode = #tpu.pipeline_mode<synchronous>, transform_indices = @transform_3, window_bounds = array<i64: 768, 768>}, {pipeline_mode = #tpu.pipeline_mode<synchronous>, transform_indices = @transform_4, window_bounds = array<i64: 1, 768>}, {pipeline_mode = #tpu.pipeline_mode<synchronous>, transform_indices = @transform_5, window_bounds = array<i64: 768, 768>}, {pipeline_mode = #tpu.pipeline_mode<synchronous>, transform_indices = @transform_6, window_bounds = array<i64: 1, 768>}, {transform_indices = @transform_7, window_bounds = array<i64: 8, 768>}]} {
    %c0 = arith.constant 0 : index
    %c0_0 = arith.constant 0 : index
    %0 = vector.load %arg1[%c0, %c0_0] : memref<8x128xbf16, #tpu.memory_space<vmem>>, vector<8x128xbf16>
    %c0_1 = arith.constant 0 : index
    %c0_2 = arith.constant 0 : index
    %1 = vector.load %arg2[%c0_1, %c0_2] : memref<128x768xbf16, #tpu.memory_space<vmem>>, vector<128x768xbf16>
    %c0_3 = arith.constant 0 : index
    %c0_4 = arith.constant 0 : index
    %2 = vector.load %arg3[%c0_3, %c0_4] : memref<1x768xf32, #tpu.memory_space<vmem>>, vector<1x768xf32>
    %cst = arith.constant dense<0.000000e+00> : vector<8x768xf32>
    %3 = tpu.matmul %0, %1, %cst {dimension_numbers = #tpu.dot_dimension_numbers<[1], [0], [0], [1], [0, 0, 1, 1], [], []>} : vector<8x128xbf16>, vector<128x768xbf16>, vector<8x768xf32> -> vector<8x768xf32>
    %4 = vector.broadcast %2 : vector<1x768xf32> to vector<8x768xf32>
    %5 = arith.addf %3, %4 : vector<8x768xf32>
    %cst_5 = arith.constant 0.000000e+00 : f32
    %6 = vector.broadcast %cst_5 : f32 to vector<8x768xf32>
    %7 = arith.maximumf %5, %6 : vector<8x768xf32>
    %c0_6 = arith.constant 0 : index
    %c0_7 = arith.constant 0 : index
    %8 = vector.load %arg4[%c0_6, %c0_7] : memref<768x768xbf16, #tpu.memory_space<vmem>>, vector<768x768xbf16>
    %c0_8 = arith.constant 0 : index
    %c0_9 = arith.constant 0 : index
    %9 = vector.load %arg5[%c0_8, %c0_9] : memref<1x768xf32, #tpu.memory_space<vmem>>, vector<1x768xf32>
    %10 = arith.truncf %7 : vector<8x768xf32> to vector<8x768xbf16>
    %cst_10 = arith.constant dense<0.000000e+00> : vector<8x768xf32>
    %11 = tpu.matmul %10, %8, %cst_10 {dimension_numbers = #tpu.dot_dimension_numbers<[1], [0], [0], [1], [0, 0, 1, 1], [], []>} : vector<8x768xbf16>, vector<768x768xbf16>, vector<8x768xf32> -> vector<8x768xf32>
    %12 = vector.broadcast %9 : vector<1x768xf32> to vector<8x768xf32>
    %13 = arith.addf %11, %12 : vector<8x768xf32>
    %cst_11 = arith.constant 0.000000e+00 : f32
    %14 = vector.broadcast %cst_11 : f32 to vector<8x768xf32>
    %15 = arith.maximumf %13, %14 : vector<8x768xf32>
    %c0_12 = arith.constant 0 : index
    %c0_13 = arith.constant 0 : index
    %16 = vector.load %arg6[%c0_12, %c0_13] : memref<768x768xbf16, #tpu.memory_space<vmem>>, vector<768x768xbf16>
    %c0_14 = arith.constant 0 : index
    %c0_15 = arith.constant 0 : index
    %17 = vector.load %arg7[%c0_14, %c0_15] : memref<1x768xf32, #tpu.memory_space<vmem>>, vector<1x768xf32>
    %18 = arith.truncf %15 : vector<8x768xf32> to vector<8x768xbf16>
    %cst_16 = arith.constant dense<0.000000e+00> : vector<8x768xf32>
    %19 = tpu.matmul %18, %16, %cst_16 {dimension_numbers = #tpu.dot_dimension_numbers<[1], [0], [0], [1], [0, 0, 1, 1], [], []>} : vector<8x768xbf16>, vector<768x768xbf16>, vector<8x768xf32> -> vector<8x768xf32>
    %20 = vector.broadcast %17 : vector<1x768xf32> to vector<8x768xf32>
    %21 = arith.addf %19, %20 : vector<8x768xf32>
    %c0_17 = arith.constant 0 : index
    %c0_18 = arith.constant 0 : index
    %22 = vector.load %arg8[%c0_17, %c0_18] : memref<8x768xf32, #tpu.memory_space<vmem>>, vector<8x768xf32>
    tpu.vector_store %arg8[%c0_17, %c0_18], %21 {strides = array<i32>} : memref<8x768xf32, #tpu.memory_space<vmem>>, vector<8x768xf32>,
    return
  }
  func.func @transform_0(%arg0: i32) -> (i32, i32) {
    %c0_i32 = arith.constant 0 : i32
    %c0_i32_0 = arith.constant 0 : i32
    return %arg0, %c0_i32 : i32, i32
  }
  func.func @transform_1(%arg0: i32) -> (i32, i32) {
    %c0_i32 = arith.constant 0 : i32
    %c0_i32_0 = arith.constant 0 : i32
    %c0_i32_1 = arith.constant 0 : i32
    return %c0_i32, %c0_i32_0 : i32, i32
  }
  func.func @transform_2(%arg0: i32) -> (i32, i32) {
    %c0_i32 = arith.constant 0 : i32
    %c0_i32_0 = arith.constant 0 : i32
    %c0_i32_1 = arith.constant 0 : i32
    return %c0_i32, %c0_i32_0 : i32, i32
  }
  func.func @transform_3(%arg0: i32) -> (i32, i32) {
    %c0_i32 = arith.constant 0 : i32
    %c0_i32_0 = arith.constant 0 : i32
    %c0_i32_1 = arith.constant 0 : i32
    return %c0_i32, %c0_i32_0 : i32, i32
  }
  func.func @transform_4(%arg0: i32) -> (i32, i32) {
    %c0_i32 = arith.constant 0 : i32
    %c0_i32_0 = arith.constant 0 : i32
    %c0_i32_1 = arith.constant 0 : i32
    return %c0_i32, %c0_i32_0 : i32, i32
  }
  func.func @transform_5(%arg0: i32) -> (i32, i32) {
    %c0_i32 = arith.constant 0 : i32
    %c0_i32_0 = arith.constant 0 : i32
    %c0_i32_1 = arith.constant 0 : i32
    return %c0_i32, %c0_i32_0 : i32, i32
  }
  func.func @transform_6(%arg0: i32) -> (i32, i32) {
    %c0_i32 = arith.constant 0 : i32
    %c0_i32_0 = arith.constant 0 : i32
    %c0_i32_1 = arith.constant 0 : i32
    return %c0_i32, %c0_i32_0 : i32, i32
  }
  func.func @transform_7(%arg0: i32) -> (i32, i32) {
    %c0_i32 = arith.constant 0 : i32
    %c0_i32_0 = arith.constant 0 : i32
    return %arg0, %c0_i32 : i32, i32
  }
}

</mosaic_0001>

<llo_original>
// kernel: tpu_custom_call.1
$region0: #{tpu_custom_call.1}
  #allocation0 [shape = 'u32[]', space=smem, size = 0x4, offset = 0x4, fixed_abs, tag = 'smem constant byte address 0x4 - core index']
  #allocation1 [shape = 'u32[72,128]{1,0:T(1,128)}', space=vmem, size = 0x9000, scoped, tag = 'internal scratch']
  %s0 = inlined_call_operand.hbm [shape: bf16[8,128], index: 0, kind: input, shape index: {}]
  %s1 = inlined_call_operand.hbm [shape: bf16[128,768], index: 1, kind: input, shape index: {}]
  %s2 = inlined_call_operand.hbm [shape: f32[1,768], index: 2, kind: input, shape index: {}]
  %s3 = inlined_call_operand.hbm [shape: bf16[768,768], index: 3, kind: input, shape index: {}]
  %s4 = inlined_call_operand.hbm [shape: f32[1,768], index: 4, kind: input, shape index: {}]
  %s5 = inlined_call_operand.hbm [shape: bf16[768,768], index: 5, kind: input, shape index: {}]
  %s6 = inlined_call_operand.hbm [shape: f32[1,768], index: 6, kind: input, shape index: {}]
  %s7 = inlined_call_operand.hbm [shape: f32[8,768], index: 7, kind: output, shape index: {}]
  %s8 = sld [smem:[#allocation0]]
  $region66: #{tpu_custom_call.1} parent=0
    _
  %s10 = ssub.s32 1, %s8
  %s11 = scalar_select 0, %s10, %s8
  $region1: #{tpu_custom_call.1} parent=0
    #allocation2 [shape = 'u8[2048]{0}', space=vmem, size = 0x800, scoped, tag = 'input window, operand 0, single buffered']
    #allocation3 [shape = 's32[1]{0}', space=sflag, size = 0x4, scoped, tag = 'scoped memory for tpu_custom_call.1']
    #allocation4 [shape = 's32[1]{0}', space=sflag, size = 0x4, scoped, tag = 'scoped memory for tpu_custom_call.1']
    #allocation5 [shape = 'u8[196608]{0}', space=vmem, size = 0x30000, scoped, tag = 'input window, operand 1, single buffered']
    #allocation6 [shape = 's32[1]{0}', space=sflag, size = 0x4, scoped, tag = 'scoped memory for tpu_custom_call.1']
    #allocation7 [shape = 'u8[3072]{0}', space=vmem, size = 0xc00, scoped, tag = 'input window, operand 2, single buffered']
    #allocation8 [shape = 'u8[1179648]{0}', space=vmem, size = 0x120000, scoped, tag = 'input window, operand 3, single buffered']
    #allocation9 [shape = 's32[1]{0}', space=sflag, size = 0x4, scoped, tag = 'scoped memory for tpu_custom_call.1']
    #allocation10 [shape = 'u8[3072]{0}', space=vmem, size = 0xc00, scoped, tag = 'input window, operand 4, single buffered']
    #allocation11 [shape = 'u8[1179648]{0}', space=vmem, size = 0x120000, scoped, tag = 'input window, operand 5, single buffered']
    #allocation12 [shape = 's32[1]{0}', space=sflag, size = 0x4, scoped, tag = 'scoped memory for tpu_custom_call.1']
    #allocation13 [shape = 'u8[3072]{0}', space=vmem, size = 0xc00, scoped, tag = 'input window, operand 6, single buffered']
    #allocation14 [shape = 'u8[24576]{0}', space=vmem, size = 0x6000, scoped, tag = 'output window, operand 0, single buffered']
    %12 = vsyncpa [#allocation3], 0
    %13 = vsyncpa [#allocation6], 0
    %14 = vsyncpa [#allocation9], 0
    %15 = vsyncpa [#allocation12], 0
    %16 = vsyncpa [#allocation4], 0
    // Predicated region
    $region2: #{tpu_custom_call.1} parent=1 // pred_check
      _
    $region3: #{tpu_custom_call.1} parent=1 // pred_check_branch
      %18 = sbr.rel (0) target = $region5
    $region4: #{tpu_custom_call.1} parent=1 // pred_region
      %20 = vsyncadd [#allocation3], 0
      %s22 = sshll.u32 %s0, 4
      %s23 = int_to_ptr.hbm [resolvable:$true] %s22
      %s24 = sshll.u32 [#allocation2], 4
      %s25 = int_to_ptr.vmem [resolvable:$true] %s24
      %27 = dma.hbm_to_vmem [thread:$0]  %s23, 64, %s25, [#allocation3]
    $region5: #{tpu_custom_call.1} parent=1 // pred_fallthru
      _
    // Predicated region
    $region6: #{tpu_custom_call.1} parent=1 // pred_check
      _
    $region7: #{tpu_custom_call.1} parent=1 // pred_check_branch
      %29 = sbr.rel (0) target = $region9
    $region8: #{tpu_custom_call.1} parent=1 // pred_region
      %31 = vsyncadd [#allocation6], 0
      %s32 = sshll.u32 %s1, 4
      %s33 = int_to_ptr.hbm [resolvable:$true] %s32
      %s34 = sshll.u32 [#allocation5], 4
      %s35 = int_to_ptr.vmem [resolvable:$true] %s34
      %40 = dma.hbm_to_vmem [thread:$0]  %s33, 6144, %s35, [#allocation6], 384, 384, 24
    $region9: #{tpu_custom_call.1} parent=1 // pred_fallthru
      _
    // Predicated region
    $region10: #{tpu_custom_call.1} parent=1 // pred_check
      _
    $region11: #{tpu_custom_call.1} parent=1 // pred_check_branch
      %42 = sbr.rel (0) target = $region13
    $region12: #{tpu_custom_call.1} parent=1 // pred_region
      %44 = vsyncadd [#allocation6], 0
      %s46 = sshll.u32 %s2, 4
      %s47 = int_to_ptr.hbm [resolvable:$true] %s46
      %s48 = sshll.u32 [#allocation7], 4
      %s49 = int_to_ptr.vmem [resolvable:$true] %s48
      %51 = dma.hbm_to_vmem [thread:$0]  %s47, 96, %s49, [#allocation6]
    $region13: #{tpu_custom_call.1} parent=1 // pred_fallthru
      _
    // Predicated region
    $region14: #{tpu_custom_call.1} parent=1 // pred_check
      _
    $region15: #{tpu_custom_call.1} parent=1 // pred_check_branch
      %53 = sbr.rel (0) target = $region17
    $region16: #{tpu_custom_call.1} parent=1 // pred_region
      %55 = vsyncadd [#allocation9], 0
      %s56 = sshll.u32 %s3, 4
      %s57 = int_to_ptr.hbm [resolvable:$true] %s56
      %s58 = sshll.u32 [#allocation8], 4
      %s59 = int_to_ptr.vmem [resolvable:$true] %s58
      %64 = dma.hbm_to_vmem [thread:$0]  %s57, 36864, %s59, [#allocation9], 384, 384, 24
    $region17: #{tpu_custom_call.1} parent=1 // pred_fallthru
      _
    // Predicated region
    $region18: #{tpu_custom_call.1} parent=1 // pred_check
      _
    $region19: #{tpu_custom_call.1} parent=1 // pred_check_branch
      %66 = sbr.rel (0) target = $region21
    $region20: #{tpu_custom_call.1} parent=1 // pred_region
      %68 = vsyncadd [#allocation9], 0
      %s70 = sshll.u32 %s4, 4
      %s71 = int_to_ptr.hbm [resolvable:$true] %s70
      %s72 = sshll.u32 [#allocation10], 4
      %s73 = int_to_ptr.vmem [resolvable:$true] %s72
      %75 = dma.hbm_to_vmem [thread:$0]  %s71, 96, %s73, [#allocation9]
    $region21: #{tpu_custom_call.1} parent=1 // pred_fallthru
      _
    // Predicated region
    $region22: #{tpu_custom_call.1} parent=1 // pred_check
      _
    $region23: #{tpu_custom_call.1} parent=1 // pred_check_branch
      %77 = sbr.rel (0) target = $region25
    $region24: #{tpu_custom_call.1} parent=1 // pred_region
      %79 = vsyncadd [#allocation12], 0
      %s80 = sshll.u32 %s5, 4
      %s81 = int_to_ptr.hbm [resolvable:$true] %s80
      %s82 = sshll.u32 [#allocation11], 4
      %s83 = int_to_ptr.vmem [resolvable:$true] %s82
      %88 = dma.hbm_to_vmem [thread:$0]  %s81, 36864, %s83, [#allocation12], 384, 384, 24
    $region25: #{tpu_custom_call.1} parent=1 // pred_fallthru
      _
    // Predicated region
    $region26: #{tpu_custom_call.1} parent=1 // pred_check
      _
    $region27: #{tpu_custom_call.1} parent=1 // pred_check_branch
      %90 = sbr.rel (0) target = $region29
    $region28: #{tpu_custom_call.1} parent=1 // pred_region
      %92 = vsyncadd [#allocation12], 0
      %s94 = sshll.u32 %s6, 4
      %s95 = int_to_ptr.hbm [resolvable:$true] %s94
      %s96 = sshll.u32 [#allocation13], 4
      %s97 = int_to_ptr.vmem [resolvable:$true] %s96
      %99 = dma.hbm_to_vmem [thread:$0]  %s95, 96, %s97, [#allocation12]
    $region29: #{tpu_custom_call.1} parent=1 // pred_fallthru
      _
    // Predicated region
    $region30: #{tpu_custom_call.1} parent=1 // pred_check
      _
    $region31: #{tpu_custom_call.1} parent=1 // pred_check_branch
      %101 = sbr.rel (0) target = $region33
    $region32: #{tpu_custom_call.1} parent=1 // pred_region
      %103 = dma.done [#allocation3], 64
    $region33: #{tpu_custom_call.1} parent=1 // pred_fallthru
      _
    // Predicated region
    $region34: #{tpu_custom_call.1} parent=1 // pred_check
      _
    $region35: #{tpu_custom_call.1} parent=1 // pred_check_branch
      %105 = sbr.rel (0) target = $region37
    $region36: #{tpu_custom_call.1} parent=1 // pred_region
      %107 = dma.done [#allocation6], 6144
    $region37: #{tpu_custom_call.1} parent=1 // pred_fallthru
      _
    // Predicated region
    $region38: #{tpu_custom_call.1} parent=1 // pred_check
      _
    $region39: #{tpu_custom_call.1} parent=1 // pred_check_branch
      %109 = sbr.rel (0) target = $region41
    $region40: #{tpu_custom_call.1} parent=1 // pred_region
      %111 = dma.done [#allocation6], 96
    $region41: #{tpu_custom_call.1} parent=1 // pred_fallthru
      _
    // Predicated region
    $region42: #{tpu_custom_call.1} parent=1 // pred_check
      _
    $region43: #{tpu_custom_call.1} parent=1 // pred_check_branch
      %113 = sbr.rel (0) target = $region45
    $region44: #{tpu_custom_call.1} parent=1 // pred_region
      %115 = dma.done [#allocation9], 36864
    $region45: #{tpu_custom_call.1} parent=1 // pred_fallthru
      _
    // Predicated region
    $region46: #{tpu_custom_call.1} parent=1 // pred_check
      _
    $region47: #{tpu_custom_call.1} parent=1 // pred_check_branch
      %117 = sbr.rel (0) target = $region49
    $region48: #{tpu_custom_call.1} parent=1 // pred_region
      %119 = dma.done [#allocation9], 96
    $region49: #{tpu_custom_call.1} parent=1 // pred_fallthru
      _
    // Predicated region
    $region50: #{tpu_custom_call.1} parent=1 // pred_check
      _
    $region51: #{tpu_custom_call.1} parent=1 // pred_check_branch
      %121 = sbr.rel (0) target = $region53
    $region52: #{tpu_custom_call.1} parent=1 // pred_region
      %123 = dma.done [#allocation12], 36864
    $region53: #{tpu_custom_call.1} parent=1 // pred_fallthru
      _
    // Predicated region
    $region54: #{tpu_custom_call.1} parent=1 // pred_check
      _
    $region55: #{tpu_custom_call.1} parent=1 // pred_check_branch
      %125 = sbr.rel (0) target = $region57
    $region56: #{tpu_custom_call.1} parent=1 // pred_region
      %127 = dma.done [#allocation12], 96
    $region57: #{tpu_custom_call.1} parent=1 // pred_fallthru
      _
    %v128 = vld [vmem:[#allocation2] sm:$0xf]
    %v129 = vld [vmem:[#allocation5] sm:$0xff]
    %v130 = vld [vmem:[#allocation5 + $0x8] sm:$0xff]
    %v131 = vld [vmem:[#allocation5 + $0x10] sm:$0xff]
    %v132 = vld [vmem:[#allocation5 + $0x18] sm:$0xff]
    %v133 = vld [vmem:[#allocation5 + $0x20] sm:$0xff]
    %v134 = vld [vmem:[#allocation5 + $0x28] sm:$0xff]
    %v135 = vld [vmem:[#allocation5 + $0x30] sm:$0xff]
    %v136 = vld [vmem:[#allocation5 + $0x38] sm:$0xff]
    %v137 = vld [vmem:[#allocation5 + $0x40] sm:$0xff]
    %v138 = vld [vmem:[#allocation5 + $0x48] sm:$0xff]
    %v139 = vld [vmem:[#allocation5 + $0x50] sm:$0xff]
    %v140 = vld [vmem:[#allocation5 + $0x58] sm:$0xff]
    %v141 = vld [vmem:[#allocation5 + $0x60] sm:$0xff]
    %v142 = vld [vmem:[#allocation5 + $0x68] sm:$0xff]
    %v143 = vld [vmem:[#allocation5 + $0x70] sm:$0xff]
    %v144 = vld [vmem:[#allocation5 + $0x78] sm:$0xff]
    %v145 = vld [vmem:[#allocation5 + $0x80] sm:$0xff]
    %v146 = vld [vmem:[#allocation5 + $0x88] sm:$0xff]
    %v147 = vld [vmem:[#allocation5 + $0x90] sm:$0xff]
    %v148 = vld [vmem:[#allocation5 + $0x98] sm:$0xff]
    %v149 = vld [vmem:[#allocation5 + $0xa0] sm:$0xff]
    %v150 = vld [vmem:[#allocation5 + $0xa8] sm:$0xff]
    %v151 = vld [vmem:[#allocation5 + $0xb0] sm:$0xff]
    %v152 = vld [vmem:[#allocation5 + $0xb8] sm:$0xff]
    %v153 = vld [vmem:[#allocation5 + $0xc0] sm:$0xff]
    %v154 = vld [vmem:[#allocation5 + $0xc8] sm:$0xff]
    %v155 = vld [vmem:[#allocation5 + $0xd0] sm:$0xff]
    %v156 = vld [vmem:[#allocation5 + $0xd8] sm:$0xff]
    %v157 = vld [vmem:[#allocation5 + $0xe0] sm:$0xff]
    %v158 = vld [vmem:[#allocation5 + $0xe8] sm:$0xff]
    %v159 = vld [vmem:[#allocation5 + $0xf0] sm:$0xff]
    %v160 = vld [vmem:[#allocation5 + $0xf8] sm:$0xff]
    %v161 = vld [vmem:[#allocation5 + $0x100] sm:$0xff]
    %v162 = vld [vmem:[#allocation5 + $0x108] sm:$0xff]
    %v163 = vld [vmem:[#allocation5 + $0x110] sm:$0xff]
    %v164 = vld [vmem:[#allocation5 + $0x118] sm:$0xff]
    %v165 = vld [vmem:[#allocation5 + $0x120] sm:$0xff]
    %v166 = vld [vmem:[#allocation5 + $0x128] sm:$0xff]
    %v167 = vld [vmem:[#allocation5 + $0x130] sm:$0xff]
    %v168 = vld [vmem:[#allocation5 + $0x138] sm:$0xff]
    %v169 = vld [vmem:[#allocation5 + $0x140] sm:$0xff]
    %v170 = vld [vmem:[#allocation5 + $0x148] sm:$0xff]
    %v171 = vld [vmem:[#allocation5 + $0x150] sm:$0xff]
    %v172 = vld [vmem:[#allocation5 + $0x158] sm:$0xff]
    %v173 = vld [vmem:[#allocation5 + $0x160] sm:$0xff]
    %v174 = vld [vmem:[#allocation5 + $0x168] sm:$0xff]
    %v175 = vld [vmem:[#allocation5 + $0x170] sm:$0xff]
    %v176 = vld [vmem:[#allocation5 + $0x178] sm:$0xff]
    %v177 = vld [vmem:[#allocation7] sm:$0x3f]
    %v179 = vperm.slane %v177, 0
    %v180 = vperm.slane %v177, 1
    %v181 = vperm.slane %v177, 2
    %v182 = vperm.slane %v177, 3
    %v183 = vperm.slane %v177, 4
    %v184 = vperm.slane %v177, 5
    %v239 = vunpack.c.l.b16 %v129
    %v240 = vunpack.c.h.b16 %v129
    %v241 = vunpack.c.l.b16 %v130
    %v242 = vunpack.c.h.b16 %v130
    %v243 = vunpack.c.l.b16 %v131
    %v244 = vunpack.c.h.b16 %v131
    %v245 = vunpack.c.l.b16 %v132
    %v246 = vunpack.c.h.b16 %v132
    %v247 = vunpack.c.l.b16 %v133
    %v248 = vunpack.c.h.b16 %v133
    %v249 = vunpack.c.l.b16 %v134
    %v250 = vunpack.c.h.b16 %v134
    %v251 = vunpack.c.l.b16 %v135
    %v252 = vunpack.c.h.b16 %v135
    %v253 = vunpack.c.l.b16 %v136
    %v254 = vunpack.c.h.b16 %v136
    %v255 = vunpack.c.l.b16 %v137
    %v256 = vunpack.c.h.b16 %v137
    %v257 = vunpack.c.l.b16 %v138
    %v258 = vunpack.c.h.b16 %v138
    %v259 = vunpack.c.l.b16 %v139
    %v260 = vunpack.c.h.b16 %v139
    %v261 = vunpack.c.l.b16 %v140
    %v262 = vunpack.c.h.b16 %v140
    %v263 = vunpack.c.l.b16 %v141
    %v264 = vunpack.c.h.b16 %v141
    %v265 = vunpack.c.l.b16 %v142
    %v266 = vunpack.c.h.b16 %v142
    %v267 = vunpack.c.l.b16 %v143
    %v268 = vunpack.c.h.b16 %v143
    %v269 = vunpack.c.l.b16 %v144
    %v270 = vunpack.c.h.b16 %v144
    %v271 = vunpack.c.l.b16 %v145
    %v272 = vunpack.c.h.b16 %v145
    %v273 = vunpack.c.l.b16 %v146
    %v274 = vunpack.c.h.b16 %v146
    %v275 = vunpack.c.l.b16 %v147
    %v276 = vunpack.c.h.b16 %v147
    %v277 = vunpack.c.l.b16 %v148
    %v278 = vunpack.c.h.b16 %v148
    %v279 = vunpack.c.l.b16 %v149
    %v280 = vunpack.c.h.b16 %v149
    %v281 = vunpack.c.l.b16 %v150
    %v282 = vunpack.c.h.b16 %v150
    %v283 = vunpack.c.l.b16 %v151
    %v284 = vunpack.c.h.b16 %v151
    %v285 = vunpack.c.l.b16 %v152
    %v286 = vunpack.c.h.b16 %v152
    %v287 = vunpack.c.l.b16 %v153
    %v288 = vunpack.c.h.b16 %v153
    %v289 = vunpack.c.l.b16 %v154
    %v290 = vunpack.c.h.b16 %v154
    %v291 = vunpack.c.l.b16 %v155
    %v292 = vunpack.c.h.b16 %v155
    %v293 = vunpack.c.l.b16 %v156
    %v294 = vunpack.c.h.b16 %v156
    %v295 = vunpack.c.l.b16 %v157
    %v296 = vunpack.c.h.b16 %v157
    %v297 = vunpack.c.l.b16 %v158
    %v298 = vunpack.c.h.b16 %v158
    %v299 = vunpack.c.l.b16 %v159
    %v300 = vunpack.c.h.b16 %v159
    %v301 = vunpack.c.l.b16 %v160
    %v302 = vunpack.c.h.b16 %v160
    %v303 = vunpack.c.l.b16 %v161
    %v304 = vunpack.c.h.b16 %v161
    %v305 = vunpack.c.l.b16 %v162
    %v306 = vunpack.c.h.b16 %v162
    %v307 = vunpack.c.l.b16 %v163
    %v308 = vunpack.c.h.b16 %v163
    %v309 = vunpack.c.l.b16 %v164
    %v310 = vunpack.c.h.b16 %v164
    %v311 = vunpack.c.l.b16 %v165
    %v312 = vunpack.c.h.b16 %v165
    %v313 = vunpack.c.l.b16 %v166
    %v314 = vunpack.c.h.b16 %v166
    %v315 = vunpack.c.l.b16 %v167
    %v316 = vunpack.c.h.b16 %v167
    %v317 = vunpack.c.l.b16 %v168
    %v318 = vunpack.c.h.b16 %v168
    %v319 = vunpack.c.l.b16 %v169
    %v320 = vunpack.c.h.b16 %v169
    %v321 = vunpack.c.l.b16 %v170
    %v322 = vunpack.c.h.b16 %v170
    %v323 = vunpack.c.l.b16 %v171
    %v324 = vunpack.c.h.b16 %v171
    %v325 = vunpack.c.l.b16 %v172
    %v326 = vunpack.c.h.b16 %v172
    %v327 = vunpack.c.l.b16 %v173
    %v328 = vunpack.c.h.b16 %v173
    %v329 = vunpack.c.l.b16 %v174
    %v330 = vunpack.c.h.b16 %v174
    %v331 = vunpack.c.l.b16 %v175
    %v332 = vunpack.c.h.b16 %v175
    %v333 = vunpack.c.l.b16 %v176
    %v334 = vunpack.c.h.b16 %v176
    %v335 = vpack.c.b16 %v245, %v239
    %v336 = vpack.c.b16 %v246, %v240
    %v337 = vpack.c.b16 %v247, %v241
    %v338 = vpack.c.b16 %v248, %v242
    %v339 = vpack.c.b16 %v249, %v243
    %v340 = vpack.c.b16 %v250, %v244
    %v341 = vpack.c.b16 %v257, %v251
    %v342 = vpack.c.b16 %v258, %v252
    %v343 = vpack.c.b16 %v259, %v253
    %v344 = vpack.c.b16 %v260, %v254
    %v345 = vpack.c.b16 %v261, %v255
    %v346 = vpack.c.b16 %v262, %v256
    %v347 = vpack.c.b16 %v269, %v263
    %v348 = vpack.c.b16 %v270, %v264
    %v349 = vpack.c.b16 %v271, %v265
    %v350 = vpack.c.b16 %v272, %v266
    %v351 = vpack.c.b16 %v273, %v267
    %v352 = vpack.c.b16 %v274, %v268
    %v353 = vpack.c.b16 %v281, %v275
    %v354 = vpack.c.b16 %v282, %v276
    %v355 = vpack.c.b16 %v283, %v277
    %v356 = vpack.c.b16 %v284, %v278
    %v357 = vpack.c.b16 %v285, %v279
    %v358 = vpack.c.b16 %v286, %v280
    %v359 = vpack.c.b16 %v293, %v287
    %v360 = vpack.c.b16 %v294, %v288
    %v361 = vpack.c.b16 %v295, %v289
    %v362 = vpack.c.b16 %v296, %v290
    %v363 = vpack.c.b16 %v297, %v291
    %v364 = vpack.c.b16 %v298, %v292
    %v365 = vpack.c.b16 %v305, %v299
    %v366 = vpack.c.b16 %v306, %v300
    %v367 = vpack.c.b16 %v307, %v301
    %v368 = vpack.c.b16 %v308, %v302
    %v369 = vpack.c.b16 %v309, %v303
    %v370 = vpack.c.b16 %v310, %v304
    %v371 = vpack.c.b16 %v317, %v311
    %v372 = vpack.c.b16 %v318, %v312
    %v373 = vpack.c.b16 %v319, %v313
    %v374 = vpack.c.b16 %v320, %v314
    %v375 = vpack.c.b16 %v321, %v315
    %v376 = vpack.c.b16 %v322, %v316
    %v377 = vpack.c.b16 %v329, %v323
    %v378 = vpack.c.b16 %v330, %v324
    %v379 = vpack.c.b16 %v331, %v325
    %v380 = vpack.c.b16 %v332, %v326
    %v381 = vpack.c.b16 %v333, %v327
    %v382 = vpack.c.b16 %v334, %v328
    %431 = vmatpush.bf16.msra.mxu0 %v377
    %432 = vmatpush.bf16.msra.mxu0 %v371
    %433 = vmatpush.bf16.msra.mxu0 %v365
    %434 = vmatpush.bf16.msra.mxu0 %v359
    %435 = vmatpush.bf16.msra.mxu0 %v353
    %436 = vmatpush.bf16.msra.mxu0 %v347
    %437 = vmatpush.bf16.msra.mxu0 %v341
    %438 = vmatpush.bf16.msra.mxu0 %v335
    %439 = vmatmul.bf16.gmra.mxu0 %v128
    %v440 = vpop.f32.mrf.mxu0
    %v441 = vadd.f32 %v179, %v440
    %v442 = vpop.f32.mrf.mxu0
    %443 = vdwg.mxu0
    %444 = vmatpush.bf16.msra.mxu0 %v378
    %445 = vmatpush.bf16.msra.mxu0 %v372
    %446 = vmatpush.bf16.msra.mxu0 %v366
    %447 = vmatpush.bf16.msra.mxu0 %v360
    %448 = vmatpush.bf16.msra.mxu0 %v354
    %449 = vmatpush.bf16.msra.mxu0 %v348
    %450 = vmatpush.bf16.msra.mxu0 %v342
    %451 = vmatpush.bf16.msra.mxu0 %v336
    %452 = vmatmul.bf16.gmra.mxu0 %v128
    %v453 = vpop.f32.mrf.mxu0
    %v454 = vadd.f32 %v180, %v453
    %v455 = vpop.f32.mrf.mxu0
    %456 = vdwg.mxu0
    %457 = vmatpush.bf16.msra.mxu0 %v379
    %458 = vmatpush.bf16.msra.mxu0 %v373
    %459 = vmatpush.bf16.msra.mxu0 %v367
    %460 = vmatpush.bf16.msra.mxu0 %v361
    %461 = vmatpush.bf16.msra.mxu0 %v355
    %462 = vmatpush.bf16.msra.mxu0 %v349
    %463 = vmatpush.bf16.msra.mxu0 %v343
    %464 = vmatpush.bf16.msra.mxu0 %v337
    %465 = vmatmul.bf16.gmra.mxu0 %v128
    %v466 = vpop.f32.mrf.mxu0
    %v467 = vadd.f32 %v181, %v466
    %v468 = vpop.f32.mrf.mxu0
    %469 = vdwg.mxu0
    %470 = vmatpush.bf16.msra.mxu0 %v380
    %471 = vmatpush.bf16.msra.mxu0 %v374
    %472 = vmatpush.bf16.msra.mxu0 %v368
    %473 = vmatpush.bf16.msra.mxu0 %v362
    %474 = vmatpush.bf16.msra.mxu0 %v356
    %475 = vmatpush.bf16.msra.mxu0 %v350
    %476 = vmatpush.bf16.msra.mxu0 %v344
    %477 = vmatpush.bf16.msra.mxu0 %v338
    %478 = vmatmul.bf16.gmra.mxu0 %v128
    %v479 = vpop.f32.mrf.mxu0
    %v480 = vadd.f32 %v182, %v479
    %v481 = vpop.f32.mrf.mxu0
    %482 = vdwg.mxu0
    %483 = vmatpush.bf16.msra.mxu0 %v381
    %484 = vmatpush.bf16.msra.mxu0 %v375
    %485 = vmatpush.bf16.msra.mxu0 %v369
    %486 = vmatpush.bf16.msra.mxu0 %v363
    %487 = vmatpush.bf16.msra.mxu0 %v357
    %488 = vmatpush.bf16.msra.mxu0 %v351
    %489 = vmatpush.bf16.msra.mxu0 %v345
    %490 = vmatpush.bf16.msra.mxu0 %v339
    %491 = vmatmul.bf16.gmra.mxu0 %v128
    %v492 = vpop.f32.mrf.mxu0
    %v493 = vadd.f32 %v183, %v492
    %v494 = vpop.f32.mrf.mxu0
    %495 = vdwg.mxu0
    %496 = vmatpush.bf16.msra.mxu0 %v382
    %497 = vmatpush.bf16.msra.mxu0 %v376
    %498 = vmatpush.bf16.msra.mxu0 %v370
    %499 = vmatpush.bf16.msra.mxu0 %v364
    %500 = vmatpush.bf16.msra.mxu0 %v358
    %501 = vmatpush.bf16.msra.mxu0 %v352
    %502 = vmatpush.bf16.msra.mxu0 %v346
    %503 = vmatpush.bf16.msra.mxu0 %v340
    %504 = vmatmul.bf16.gmra.mxu0 %v128
    %v505 = vpop.f32.mrf.mxu0
    %v506 = vadd.f32 %v184, %v505
    %v507 = vpop.f32.mrf.mxu0
    %508 = vdwg.mxu0
    %v509 = vmax.f32 %v441, 0.0
    %v510 = vmax.f32 %v454, 0.0
    %v511 = vmax.f32 %v467, 0.0
    %v512 = vmax.f32 %v480, 0.0
    %v513 = vmax.f32 %v493, 0.0
    %v514 = vmax.f32 %v506, 0.0
    %v515 = vld [vmem:[#allocation8] sm:$0xff]
    %v516 = vld [vmem:[#allocation8 + $0x8] sm:$0xff]
    %v517 = vld [vmem:[#allocation8 + $0x10] sm:$0xff]
    %v518 = vld [vmem:[#allocation8 + $0x18] sm:$0xff]
    %v519 = vld [vmem:[#allocation8 + $0x20] sm:$0xff]
    %v520 = vld [vmem:[#allocation8 + $0x28] sm:$0xff]
    %v521 = vld [vmem:[#allocation8 + $0x30] sm:$0xff]
    %v522 = vld [vmem:[#allocation8 + $0x38] sm:$0xff]
    %v523 = vld [vmem:[#allocation8 + $0x40] sm:$0xff]
    %v524 = vld [vmem:[#allocation8 + $0x48] sm:$0xff]
    %v525 = vld [vmem:[#allocation8 + $0x50] sm:$0xff]
    %v526 = vld [vmem:[#allocation8 + $0x58] sm:$0xff]
    %v527 = vld [vmem:[#allocation8 + $0x60] sm:$0xff]
    %v528 = vld [vmem:[#allocation8 + $0x68] sm:$0xff]
    %v529 = vld [vmem:[#allocation8 + $0x70] sm:$0xff]
    %v530 = vld [vmem:[#allocation8 + $0x78] sm:$0xff]
    %v531 = vld [vmem:[#allocation8 + $0x80] sm:$0xff]
    %v532 = vld [vmem:[#allocation8 + $0x88] sm:$0xff]
    %v533 = vld [vmem:[#allocation8 + $0x90] sm:$0xff]
    %v534 = vld [vmem:[#allocation8 + $0x98] sm:$0xff]
    %v535 = vld [vmem:[#allocation8 + $0xa0] sm:$0xff]
    %v536 = vld [vmem:[#allocation8 + $0xa8] sm:$0xff]
    %v537 = vld [vmem:[#allocation8 + $0xb0] sm:$0xff]
    %v538 = vld [vmem:[#allocation8 + $0xb8] sm:$0xff]
    %v539 = vld [vmem:[#allocation8 + $0xc0] sm:$0xff]
    %v540 = vld [vmem:[#allocation8 + $0xc8] sm:$0xff]
    %v541 = vld [vmem:[#allocation8 + $0xd0] sm:$0xff]
    %v542 = vld [vmem:[#allocation8 + $0xd8] sm:$0xff]
    %v543 = vld [vmem:[#allocation8 + $0xe0] sm:$0xff]
    %v544 = vld [vmem:[#allocation8 + $0xe8] sm:$0xff]
    %v545 = vld [vmem:[#allocation8 + $0xf0] sm:$0xff]
    %v546 = vld [vmem:[#allocation8 + $0xf8] sm:$0xff]
    %v547 = vld [vmem:[#allocation8 + $0x100] sm:$0xff]
    %v548 = vld [vmem:[#allocation8 + $0x108] sm:$0xff]
    %v549 = vld [vmem:[#allocation8 + $0x110] sm:$0xff]
    %v550 = vld [vmem:[#allocation8 + $0x118] sm:$0xff]
    %v551 = vld [vmem:[#allocation8 + $0x120] sm:$0xff]
    %v552 = vld [vmem:[#allocation8 + $0x128] sm:$0xff]
    %v553 = vld [vmem:[#allocation8 + $0x130] sm:$0xff]
    %v554 = vld [vmem:[#allocation8 + $0x138] sm:$0xff]
    %v555 = vld [vmem:[#allocation8 + $0x140] sm:$0xff]
    %v556 = vld [vmem:[#allocation8 + $0x148] sm:$0xff]
    %v557 = vld [vmem:[#allocation8 + $0x150] sm:$0xff]
    %v558 = vld [vmem:[#allocation8 + $0x158] sm:$0xff]
    %v559 = vld [vmem:[#allocation8 + $0x160] sm:$0xff]
    %v560 = vld [vmem:[#allocation8 + $0x168] sm:$0xff]
    %v561 = vld [vmem:[#allocation8 + $0x170] sm:$0xff]
    %v562 = vld [vmem:[#allocation8 + $0x178] sm:$0xff]
    %v563 = vld [vmem:[#allocation8 + $0x180] sm:$0xff]
    %v564 = vld [vmem:[#allocation8 + $0x188] sm:$0xff]
    %v565 = vld [vmem:[#allocation8 + $0x190] sm:$0xff]
    %v566 = vld [vmem:[#allocation8 + $0x198] sm:$0xff]
    %v567 = vld [vmem:[#allocation8 + $0x1a0] sm:$0xff]
    %v568 = vld [vmem:[#allocation8 + $0x1a8] sm:$0xff]
    %v569 = vld [vmem:[#allocation8 + $0x1b0] sm:$0xff]
    %v570 = vld [vmem:[#allocation8 + $0x1b8] sm:$0xff]
    %v571 = vld [vmem:[#allocation8 + $0x1c0] sm:$0xff]
    %v572 = vld [vmem:[#allocation8 + $0x1c8] sm:$0xff]
    %v573 = vld [vmem:[#allocation8 + $0x1d0] sm:$0xff]
    %v574 = vld [vmem:[#allocation8 + $0x1d8] sm:$0xff]
    %v575 = vld [vmem:[#allocation8 + $0x1e0] sm:$0xff]
    %v576 = vld [vmem:[#allocation8 + $0x1e8] sm:$0xff]
    %v577 = vld [vmem:[#allocation8 + $0x1f0] sm:$0xff]
    %v578 = vld [vmem:[#allocation8 + $0x1f8] sm:$0xff]
    %v579 = vld [vmem:[#allocation8 + $0x200] sm:$0xff]
    %v580 = vld [vmem:[#allocation8 + $0x208] sm:$0xff]
    %v581 = vld [vmem:[#allocation8 + $0x210] sm:$0xff]
    %v582 = vld [vmem:[#allocation8 + $0x218] sm:$0xff]
    %v583 = vld [vmem:[#allocation8 + $0x220] sm:$0xff]
    %v584 = vld [vmem:[#allocation8 + $0x228] sm:$0xff]
    %v585 = vld [vmem:[#allocation8 + $0x230] sm:$0xff]
    %v586 = vld [vmem:[#allocation8 + $0x238] sm:$0xff]
    %v587 = vld [vmem:[#allocation8 + $0x240] sm:$0xff]
    %v588 = vld [vmem:[#allocation8 + $0x248] sm:$0xff]
    %v589 = vld [vmem:[#allocation8 + $0x250] sm:$0xff]
    %v590 = vld [vmem:[#allocation8 + $0x258] sm:$0xff]
    %v591 = vld [vmem:[#allocation8 + $0x260] sm:$0xff]
    %v592 = vld [vmem:[#allocation8 + $0x268] sm:$0xff]
    %v593 = vld [vmem:[#allocation8 + $0x270] sm:$0xff]
    %v594 = vld [vmem:[#allocation8 + $0x278] sm:$0xff]
    %v595 = vld [vmem:[#allocation8 + $0x280] sm:$0xff]
    %v596 = vld [vmem:[#allocation8 + $0x288] sm:$0xff]
    %v597 = vld [vmem:[#allocation8 + $0x290] sm:$0xff]
    %v598 = vld [vmem:[#allocation8 + $0x298] sm:$0xff]
    %v599 = vld [vmem:[#allocation8 + $0x2a0] sm:$0xff]
    %v600 = vld [vmem:[#allocation8 + $0x2a8] sm:$0xff]
    %v601 = vld [vmem:[#allocation8 + $0x2b0] sm:$0xff]
    %v602 = vld [vmem:[#allocation8 + $0x2b8] sm:$0xff]
    %v603 = vld [vmem:[#allocation8 + $0x2c0] sm:$0xff]
    %v604 = vld [vmem:[#allocation8 + $0x2c8] sm:$0xff]
    %v605 = vld [vmem:[#allocation8 + $0x2d0] sm:$0xff]
    %v606 = vld [vmem:[#allocation8 + $0x2d8] sm:$0xff]
    %v607 = vld [vmem:[#allocation8 + $0x2e0] sm:$0xff]
    %v608 = vld [vmem:[#allocation8 + $0x2e8] sm:$0xff]
    %v609 = vld [vmem:[#allocation8 + $0x2f0] sm:$0xff]
    %v610 = vld [vmem:[#allocation8 + $0x2f8] sm:$0xff]
    %v611 = vld [vmem:[#allocation8 + $0x300] sm:$0xff]
    %v612 = vld [vmem:[#allocation8 + $0x308] sm:$0xff]
    %v613 = vld [vmem:[#allocation8 + $0x310] sm:$0xff]
    %v614 = vld [vmem:[#allocation8 + $0x318] sm:$0xff]
    %v615 = vld [vmem:[#allocation8 + $0x320] sm:$0xff]
    %v616 = vld [vmem:[#allocation8 + $0x328] sm:$0xff]
    %v617 = vld [vmem:[#allocation8 + $0x330] sm:$0xff]
    %v618 = vld [vmem:[#allocation8 + $0x338] sm:$0xff]
    %v619 = vld [vmem:[#allocation8 + $0x340] sm:$0xff]
    %v620 = vld [vmem:[#allocation8 + $0x348] sm:$0xff]
    %v621 = vld [vmem:[#allocation8 + $0x350] sm:$0xff]
    %v622 = vld [vmem:[#allocation8 + $0x358] sm:$0xff]
    %v623 = vld [vmem:[#allocation8 + $0x360] sm:$0xff]
    %v624 = vld [vmem:[#allocation8 + $0x368] sm:$0xff]
    %v625 = vld [vmem:[#allocation8 + $0x370] sm:$0xff]
    %v626 = vld [vmem:[#allocation8 + $0x378] sm:$0xff]
    %v627 = vld [vmem:[#allocation8 + $0x380] sm:$0xff]
    %v628 = vld [vmem:[#allocation8 + $0x388] sm:$0xff]
    %v629 = vld [vmem:[#allocation8 + $0x390] sm:$0xff]
    %v630 = vld [vmem:[#allocation8 + $0x398] sm:$0xff]
    %v631 = vld [vmem:[#allocation8 + $0x3a0] sm:$0xff]
    %v632 = vld [vmem:[#allocation8 + $0x3a8] sm:$0xff]
    %v633 = vld [vmem:[#allocation8 + $0x3b0] sm:$0xff]
    %v634 = vld [vmem:[#allocation8 + $0x3b8] sm:$0xff]
    %v635 = vld [vmem:[#allocation8 + $0x3c0] sm:$0xff]
    %v636 = vld [vmem:[#allocation8 + $0x3c8] sm:$0xff]
    %v637 = vld [vmem:[#allocation8 + $0x3d0] sm:$0xff]
    %v638 = vld [vmem:[#allocation8 + $0x3d8] sm:$0xff]
    %v639 = vld [vmem:[#allocation8 + $0x3e0] sm:$0xff]
    %v640 = vld [vmem:[#allocation8 + $0x3e8] sm:$0xff]
    %v641 = vld [vmem:[#allocation8 + $0x3f0] sm:$0xff]
    %v642 = vld [vmem:[#allocation8 + $0x3f8] sm:$0xff]
    %v643 = vld [vmem:[#allocation8 + $0x400] sm:$0xff]
    %v644 = vld [vmem:[#allocation8 + $0x408] sm:$0xff]
    %v645 = vld [vmem:[#allocation8 + $0x410] sm:$0xff]
    %v646 = vld [vmem:[#allocation8 + $0x418] sm:$0xff]
    %v647 = vld [vmem:[#allocation8 + $0x420] sm:$0xff]
    %v648 = vld [vmem:[#allocation8 + $0x428] sm:$0xff]
    %v649 = vld [vmem:[#allocation8 + $0x430] sm:$0xff]
    %v650 = vld [vmem:[#allocation8 + $0x438] sm:$0xff]
    %v651 = vld [vmem:[#allocation8 + $0x440] sm:$0xff]
    %v652 = vld [vmem:[#allocation8 + $0x448] sm:$0xff]
    %v653 = vld [vmem:[#allocation8 + $0x450] sm:$0xff]
    %v654 = vld [vmem:[#allocation8 + $0x458] sm:$0xff]
    %v655 = vld [vmem:[#allocation8 + $0x460] sm:$0xff]
    %v656 = vld [vmem:[#allocation8 + $0x468] sm:$0xff]
    %v657 = vld [vmem:[#allocation8 + $0x470] sm:$0xff]
    %v658 = vld [vmem:[#allocation8 + $0x478] sm:$0xff]
    %v659 = vld [vmem:[#allocation8 + $0x480] sm:$0xff]
    %v660 = vld [vmem:[#allocation8 + $0x488] sm:$0xff]
    %v661 = vld [vmem:[#allocation8 + $0x490] sm:$0xff]
    %v662 = vld [vmem:[#allocation8 + $0x498] sm:$0xff]
    %v663 = vld [vmem:[#allocation8 + $0x4a0] sm:$0xff]
    %v664 = vld [vmem:[#allocation8 + $0x4a8] sm:$0xff]
    %v665 = vld [vmem:[#allocation8 + $0x4b0] sm:$0xff]
    %v666 = vld [vmem:[#allocation8 + $0x4b8] sm:$0xff]
    %v667 = vld [vmem:[#allocation8 + $0x4c0] sm:$0xff]
    %v668 = vld [vmem:[#allocation8 + $0x4c8] sm:$0xff]
    %v669 = vld [vmem:[#allocation8 + $0x4d0] sm:$0xff]
    %v670 = vld [vmem:[#allocation8 + $0x4d8] sm:$0xff]
    %v671 = vld [vmem:[#allocation8 + $0x4e0] sm:$0xff]
    %v672 = vld [vmem:[#allocation8 + $0x4e8] sm:$0xff]
    %v673 = vld [vmem:[#allocation8 + $0x4f0] sm:$0xff]
    %v674 = vld [vmem:[#allocation8 + $0x4f8] sm:$0xff]
    %v675 = vld [vmem:[#allocation8 + $0x500] sm:$0xff]
    %v676 = vld [vmem:[#allocation8 + $0x508] sm:$0xff]
    %v677 = vld [vmem:[#allocation8 + $0x510] sm:$0xff]
    %v678 = vld [vmem:[#allocation8 + $0x518] sm:$0xff]
    %v679 = vld [vmem:[#allocation8 + $0x520] sm:$0xff]
    %v680 = vld [vmem:[#allocation8 + $0x528] sm:$0xff]
    %v681 = vld [vmem:[#allocation8 + $0x530] sm:$0xff]
    %v682 = vld [vmem:[#allocation8 + $0x538] sm:$0xff]
    %v683 = vld [vmem:[#allocation8 + $0x540] sm:$0xff]
    %v684 = vld [vmem:[#allocation8 + $0x548] sm:$0xff]
    %v685 = vld [vmem:[#allocation8 + $0x550] sm:$0xff]
    %v686 = vld [vmem:[#allocation8 + $0x558] sm:$0xff]
    %v687 = vld [vmem:[#allocation8 + $0x560] sm:$0xff]
    %v688 = vld [vmem:[#allocation8 + $0x568] sm:$0xff]
    %v689 = vld [vmem:[#allocation8 + $0x570] sm:$0xff]
    %v690 = vld [vmem:[#allocation8 + $0x578] sm:$0xff]
    %v691 = vld [vmem:[#allocation8 + $0x580] sm:$0xff]
    %v692 = vld [vmem:[#allocation8 + $0x588] sm:$0xff]
    %v693 = vld [vmem:[#allocation8 + $0x590] sm:$0xff]
    %v694 = vld [vmem:[#allocation8 + $0x598] sm:$0xff]
    %v695 = vld [vmem:[#allocation8 + $0x5a0] sm:$0xff]
    %v696 = vld [vmem:[#allocation8 + $0x5a8] sm:$0xff]
    %v697 = vld [vmem:[#allocation8 + $0x5b0] sm:$0xff]
    %v698 = vld [vmem:[#allocation8 + $0x5b8] sm:$0xff]
    %v699 = vld [vmem:[#allocation8 + $0x5c0] sm:$0xff]
    %v700 = vld [vmem:[#allocation8 + $0x5c8] sm:$0xff]
    %v701 = vld [vmem:[#allocation8 + $0x5d0] sm:$0xff]
    %v702 = vld [vmem:[#allocation8 + $0x5d8] sm:$0xff]
    %v703 = vld [vmem:[#allocation8 + $0x5e0] sm:$0xff]
    %v704 = vld [vmem:[#allocation8 + $0x5e8] sm:$0xff]
    %v705 = vld [vmem:[#allocation8 + $0x5f0] sm:$0xff]
    %v706 = vld [vmem:[#allocation8 + $0x5f8] sm:$0xff]
    %v707 = vld [vmem:[#allocation8 + $0x600] sm:$0xff]
    %v708 = vld [vmem:[#allocation8 + $0x608] sm:$0xff]
    %v709 = vld [vmem:[#allocation8 + $0x610] sm:$0xff]
    %v710 = vld [vmem:[#allocation8 + $0x618] sm:$0xff]
    %v711 = vld [vmem:[#allocation8 + $0x620] sm:$0xff]
    %v712 = vld [vmem:[#allocation8 + $0x628] sm:$0xff]
    %v713 = vld [vmem:[#allocation8 + $0x630] sm:$0xff]
    %v714 = vld [vmem:[#allocation8 + $0x638] sm:$0xff]
    %v715 = vld [vmem:[#allocation8 + $0x640] sm:$0xff]
    %v716 = vld [vmem:[#allocation8 + $0x648] sm:$0xff]
    %v717 = vld [vmem:[#allocation8 + $0x650] sm:$0xff]
    %v718 = vld [vmem:[#allocation8 + $0x658] sm:$0xff]
    %v719 = vld [vmem:[#allocation8 + $0x660] sm:$0xff]
    %v720 = vld [vmem:[#allocation8 + $0x668] sm:$0xff]
    %v721 = vld [vmem:[#allocation8 + $0x670] sm:$0xff]
    %v722 = vld [vmem:[#allocation8 + $0x678] sm:$0xff]
    %v723 = vld [vmem:[#allocation8 + $0x680] sm:$0xff]
    %v724 = vld [vmem:[#allocation8 + $0x688] sm:$0xff]
    %v725 = vld [vmem:[#allocation8 + $0x690] sm:$0xff]
    %v726 = vld [vmem:[#allocation8 + $0x698] sm:$0xff]
    %v727 = vld [vmem:[#allocation8 + $0x6a0] sm:$0xff]
    %v728 = vld [vmem:[#allocation8 + $0x6a8] sm:$0xff]
    %v729 = vld [vmem:[#allocation8 + $0x6b0] sm:$0xff]
    %v730 = vld [vmem:[#allocation8 + $0x6b8] sm:$0xff]
    %v731 = vld [vmem:[#allocation8 + $0x6c0] sm:$0xff]
    %v732 = vld [vmem:[#allocation8 + $0x6c8] sm:$0xff]
    %v733 = vld [vmem:[#allocation8 + $0x6d0] sm:$0xff]
    %v734 = vld [vmem:[#allocation8 + $0x6d8] sm:$0xff]
    %v735 = vld [vmem:[#allocation8 + $0x6e0] sm:$0xff]
    %v736 = vld [vmem:[#allocation8 + $0x6e8] sm:$0xff]
    %v737 = vld [vmem:[#allocation8 + $0x6f0] sm:$0xff]
    %v738 = vld [vmem:[#allocation8 + $0x6f8] sm:$0xff]
    %v739 = vld [vmem:[#allocation8 + $0x700] sm:$0xff]
    %v740 = vld [vmem:[#allocation8 + $0x708] sm:$0xff]
    %v741 = vld [vmem:[#allocation8 + $0x710] sm:$0xff]
    %v742 = vld [vmem:[#allocation8 + $0x718] sm:$0xff]
    %v743 = vld [vmem:[#allocation8 + $0x720] sm:$0xff]
    %v744 = vld [vmem:[#allocation8 + $0x728] sm:$0xff]
    %v745 = vld [vmem:[#allocation8 + $0x730] sm:$0xff]
    %v746 = vld [vmem:[#allocation8 + $0x738] sm:$0xff]
    %v747 = vld [vmem:[#allocation8 + $0x740] sm:$0xff]
    %v748 = vld [vmem:[#allocation8 + $0x748] sm:$0xff]
    %v749 = vld [vmem:[#allocation8 + $0x750] sm:$0xff]
    %v750 = vld [vmem:[#allocation8 + $0x758] sm:$0xff]
    %v751 = vld [vmem:[#allocation8 + $0x760] sm:$0xff]
    %v752 = vld [vmem:[#allocation8 + $0x768] sm:$0xff]
    %v753 = vld [vmem:[#allocation8 + $0x770] sm:$0xff]
    %v754 = vld [vmem:[#allocation8 + $0x778] sm:$0xff]
    %v755 = vld [vmem:[#allocation8 + $0x780] sm:$0xff]
    %v756 = vld [vmem:[#allocation8 + $0x788] sm:$0xff]
    %v757 = vld [vmem:[#allocation8 + $0x790] sm:$0xff]
    %v758 = vld [vmem:[#allocation8 + $0x798] sm:$0xff]
    %v759 = vld [vmem:[#allocation8 + $0x7a0] sm:$0xff]
    %v760 = vld [vmem:[#allocation8 + $0x7a8] sm:$0xff]
    %v761 = vld [vmem:[#allocation8 + $0x7b0] sm:$0xff]
    %v762 = vld [vmem:[#allocation8 + $0x7b8] sm:$0xff]
    %v763 = vld [vmem:[#allocation8 + $0x7c0] sm:$0xff]
    %v764 = vld [vmem:[#allocation8 + $0x7c8] sm:$0xff]
    %v765 = vld [vmem:[#allocation8 + $0x7d0] sm:$0xff]
    %v766 = vld [vmem:[#allocation8 + $0x7d8] sm:$0xff]
    %v767 = vld [vmem:[#allocation8 + $0x7e0] sm:$0xff]
    %v768 = vld [vmem:[#allocation8 + $0x7e8] sm:$0xff]
    %v769 = vld [vmem:[#allocation8 + $0x7f0] sm:$0xff]
    %v770 = vld [vmem:[#allocation8 + $0x7f8] sm:$0xff]
    %v771 = vld [vmem:[#allocation8 + $0x800] sm:$0xff]
    %v772 = vld [vmem:[#allocation8 + $0x808] sm:$0xff]
    %v773 = vld [vmem:[#allocation8 + $0x810] sm:$0xff]
    %v774 = vld [vmem:[#allocation8 + $0x818] sm:$0xff]
    %v775 = vld [vmem:[#allocation8 + $0x820] sm:$0xff]
    %v776 = vld [vmem:[#allocation8 + $0x828] sm:$0xff]
    %v777 = vld [vmem:[#allocation8 + $0x830] sm:$0xff]
    %v778 = vld [vmem:[#allocation8 + $0x838] sm:$0xff]
    %v779 = vld [vmem:[#allocation8 + $0x840] sm:$0xff]
    %v780 = vld [vmem:[#allocation8 + $0x848] sm:$0xff]
    %v781 = vld [vmem:[#allocation8 + $0x850] sm:$0xff]
    %v782 = vld [vmem:[#allocation8 + $0x858] sm:$0xff]
    %v783 = vld [vmem:[#allocation8 + $0x860] sm:$0xff]
    %v784 = vld [vmem:[#allocation8 + $0x868] sm:$0xff]
    %v785 = vld [vmem:[#allocation8 + $0x870] sm:$0xff]
    %v786 = vld [vmem:[#allocation8 + $0x878] sm:$0xff]
    %v787 = vld [vmem:[#allocation8 + $0x880] sm:$0xff]
    %v788 = vld [vmem:[#allocation8 + $0x888] sm:$0xff]
    %v789 = vld [vmem:[#allocation8 + $0x890] sm:$0xff]
    %v790 = vld [vmem:[#allocation8 + $0x898] sm:$0xff]
    %v791 = vld [vmem:[#allocation8 + $0x8a0] sm:$0xff]
    %v792 = vld [vmem:[#allocation8 + $0x8a8] sm:$0xff]
    %v793 = vld [vmem:[#allocation8 + $0x8b0] sm:$0xff]
    %v794 = vld [vmem:[#allocation8 + $0x8b8] sm:$0xff]
    %v795 = vld [vmem:[#allocation8 + $0x8c0] sm:$0xff]
    %v796 = vld [vmem:[#allocation8 + $0x8c8] sm:$0xff]
    %v797 = vld [vmem:[#allocation8 + $0x8d0] sm:$0xff]
    %v798 = vld [vmem:[#allocation8 + $0x8d8] sm:$0xff]
    %v799 = vld [vmem:[#allocation8 + $0x8e0] sm:$0xff]
    %v800 = vld [vmem:[#allocation8 + $0x8e8] sm:$0xff]
    %v801 = vld [vmem:[#allocation8 + $0x8f0] sm:$0xff]
    %v802 = vld [vmem:[#allocation8 + $0x8f8] sm:$0xff]
    %v803 = vld [vmem:[#allocation10] sm:$0x3f]
    %v804 = vpack.c.bf16 %v509, %v509
    %v805 = vpack.c.bf16 %v510, %v510
    %v806 = vpack.c.bf16 %v511, %v511
    %v807 = vpack.c.bf16 %v512, %v512
    %v808 = vpack.c.bf16 %v513, %v513
    %v809 = vpack.c.bf16 %v514, %v514
    %v811 = vperm.slane %v803, 0
    %v812 = vperm.slane %v803, 1
    %v813 = vperm.slane %v803, 2
    %v814 = vperm.slane %v803, 3
    %v815 = vperm.slane %v803, 4
    %v816 = vperm.slane %v803, 5
    %v1111 = vunpack.c.l.b16 %v515
    %v1112 = vunpack.c.h.b16 %v515
    %v1113 = vunpack.c.l.b16 %v516
    %v1114 = vunpack.c.h.b16 %v516
    %v1115 = vunpack.c.l.b16 %v517
    %v1116 = vunpack.c.h.b16 %v517
    %v1117 = vunpack.c.l.b16 %v518
    %v1118 = vunpack.c.h.b16 %v518
    %v1119 = vunpack.c.l.b16 %v519
    %v1120 = vunpack.c.h.b16 %v519
    %v1121 = vunpack.c.l.b16 %v520
    %v1122 = vunpack.c.h.b16 %v520
    %v1123 = vunpack.c.l.b16 %v521
    %v1124 = vunpack.c.h.b16 %v521
    %v1125 = vunpack.c.l.b16 %v522
    %v1126 = vunpack.c.h.b16 %v522
    %v1127 = vunpack.c.l.b16 %v523
    %v1128 = vunpack.c.h.b16 %v523
    %v1129 = vunpack.c.l.b16 %v524
    %v1130 = vunpack.c.h.b16 %v524
    %v1131 = vunpack.c.l.b16 %v525
    %v1132 = vunpack.c.h.b16 %v525
    %v1133 = vunpack.c.l.b16 %v526
    %v1134 = vunpack.c.h.b16 %v526
    %v1135 = vunpack.c.l.b16 %v527
    %v1136 = vunpack.c.h.b16 %v527
    %v1137 = vunpack.c.l.b16 %v528
    %v1138 = vunpack.c.h.b16 %v528
    %v1139 = vunpack.c.l.b16 %v529
    %v1140 = vunpack.c.h.b16 %v529
    %v1141 = vunpack.c.l.b16 %v530
    %v1142 = vunpack.c.h.b16 %v530
    %v1143 = vunpack.c.l.b16 %v531
    %v1144 = vunpack.c.h.b16 %v531
    %v1145 = vunpack.c.l.b16 %v532
    %v1146 = vunpack.c.h.b16 %v532
    %v1147 = vunpack.c.l.b16 %v533
    %v1148 = vunpack.c.h.b16 %v533
    %v1149 = vunpack.c.l.b16 %v534
    %v1150 = vunpack.c.h.b16 %v534
    %v1151 = vunpack.c.l.b16 %v535
    %v1152 = vunpack.c.h.b16 %v535
    %v1153 = vunpack.c.l.b16 %v536
    %v1154 = vunpack.c.h.b16 %v536
    %v1155 = vunpack.c.l.b16 %v537
    %v1156 = vunpack.c.h.b16 %v537
    %v1157 = vunpack.c.l.b16 %v538
    %v1158 = vunpack.c.h.b16 %v538
    %v1159 = vunpack.c.l.b16 %v539
    %v1160 = vunpack.c.h.b16 %v539
    %v1161 = vunpack.c.l.b16 %v540
    %v1162 = vunpack.c.h.b16 %v540
    %v1163 = vunpack.c.l.b16 %v541
    %v1164 = vunpack.c.h.b16 %v541
    %v1165 = vunpack.c.l.b16 %v542
    %v1166 = vunpack.c.h.b16 %v542
    %v1167 = vunpack.c.l.b16 %v543
    %v1168 = vunpack.c.h.b16 %v543
    %v1169 = vunpack.c.l.b16 %v544
    %v1170 = vunpack.c.h.b16 %v544
    %v1171 = vunpack.c.l.b16 %v545
    %v1172 = vunpack.c.h.b16 %v545
    %v1173 = vunpack.c.l.b16 %v546
    %v1174 = vunpack.c.h.b16 %v546
    %v1175 = vunpack.c.l.b16 %v547
    %v1176 = vunpack.c.h.b16 %v547
    %v1177 = vunpack.c.l.b16 %v548
    %v1178 = vunpack.c.h.b16 %v548
    %v1179 = vunpack.c.l.b16 %v549
    %v1180 = vunpack.c.h.b16 %v549
    %v1181 = vunpack.c.l.b16 %v550
    %v1182 = vunpack.c.h.b16 %v550
    %v1183 = vunpack.c.l.b16 %v551
    %v1184 = vunpack.c.h.b16 %v551
    %v1185 = vunpack.c.l.b16 %v552
    %v1186 = vunpack.c.h.b16 %v552
    %v1187 = vunpack.c.l.b16 %v553
    %v1188 = vunpack.c.h.b16 %v553
    %v1189 = vunpack.c.l.b16 %v554
    %v1190 = vunpack.c.h.b16 %v554
    %v1191 = vunpack.c.l.b16 %v555
    %v1192 = vunpack.c.h.b16 %v555
    %v1193 = vunpack.c.l.b16 %v556
    %v1194 = vunpack.c.h.b16 %v556
    %v1195 = vunpack.c.l.b16 %v557
    %v1196 = vunpack.c.h.b16 %v557
    %v1197 = vunpack.c.l.b16 %v558
    %v1198 = vunpack.c.h.b16 %v558
    %v1199 = vunpack.c.l.b16 %v559
    %v1200 = vunpack.c.h.b16 %v559
    %v1201 = vunpack.c.l.b16 %v560
    %v1202 = vunpack.c.h.b16 %v560
    %v1203 = vunpack.c.l.b16 %v561
    %v1204 = vunpack.c.h.b16 %v561
    %v1205 = vunpack.c.l.b16 %v562
    %v1206 = vunpack.c.h.b16 %v562
    %v1207 = vunpack.c.l.b16 %v563
    %v1208 = vunpack.c.h.b16 %v563
    %v1209 = vunpack.c.l.b16 %v564
    %v1210 = vunpack.c.h.b16 %v564
    %v1211 = vunpack.c.l.b16 %v565
    %v1212 = vunpack.c.h.b16 %v565
    %v1213 = vunpack.c.l.b16 %v566
    %v1214 = vunpack.c.h.b16 %v566
    %v1215 = vunpack.c.l.b16 %v567
    %v1216 = vunpack.c.h.b16 %v567
    %v1217 = vunpack.c.l.b16 %v568
    %v1218 = vunpack.c.h.b16 %v568
    %v1219 = vunpack.c.l.b16 %v569
    %v1220 = vunpack.c.h.b16 %v569
    %v1221 = vunpack.c.l.b16 %v570
    %v1222 = vunpack.c.h.b16 %v570
    %v1223 = vunpack.c.l.b16 %v571
    %v1224 = vunpack.c.h.b16 %v571
    %v1225 = vunpack.c.l.b16 %v572
    %v1226 = vunpack.c.h.b16 %v572
    %v1227 = vunpack.c.l.b16 %v573
    %v1228 = vunpack.c.h.b16 %v573
    %v1229 = vunpack.c.l.b16 %v574
    %v1230 = vunpack.c.h.b16 %v574
    %v1231 = vunpack.c.l.b16 %v575
    %v1232 = vunpack.c.h.b16 %v575
    %v1233 = vunpack.c.l.b16 %v576
    %v1234 = vunpack.c.h.b16 %v576
    %v1235 = vunpack.c.l.b16 %v577
    %v1236 = vunpack.c.h.b16 %v577
    %v1237 = vunpack.c.l.b16 %v578
    %v1238 = vunpack.c.h.b16 %v578
    %v1239 = vunpack.c.l.b16 %v579
    %v1240 = vunpack.c.h.b16 %v579
    %v1241 = vunpack.c.l.b16 %v580
    %v1242 = vunpack.c.h.b16 %v580
    %v1243 = vunpack.c.l.b16 %v581
    %v1244 = vunpack.c.h.b16 %v581
    %v1245 = vunpack.c.l.b16 %v582
    %v1246 = vunpack.c.h.b16 %v582
    %v1247 = vunpack.c.l.b16 %v583
    %v1248 = vunpack.c.h.b16 %v583
    %v1249 = vunpack.c.l.b16 %v584
    %v1250 = vunpack.c.h.b16 %v584
    %v1251 = vunpack.c.l.b16 %v585
    %v1252 = vunpack.c.h.b16 %v585
    %v1253 = vunpack.c.l.b16 %v586
    %v1254 = vunpack.c.h.b16 %v586
    %v1255 = vunpack.c.l.b16 %v587
    %v1256 = vunpack.c.h.b16 %v587
    %v1257 = vunpack.c.l.b16 %v588
    %v1258 = vunpack.c.h.b16 %v588
    %v1259 = vunpack.c.l.b16 %v589
    %v1260 = vunpack.c.h.b16 %v589
    %v1261 = vunpack.c.l.b16 %v590
    %v1262 = vunpack.c.h.b16 %v590
    %v1263 = vunpack.c.l.b16 %v591
    %v1264 = vunpack.c.h.b16 %v591
    %v1265 = vunpack.c.l.b16 %v592
    %v1266 = vunpack.c.h.b16 %v592
    %v1267 = vunpack.c.l.b16 %v593
    %v1268 = vunpack.c.h.b16 %v593
    %v1269 = vunpack.c.l.b16 %v594
    %v1270 = vunpack.c.h.b16 %v594
    %v1271 = vunpack.c.l.b16 %v595
    %v1272 = vunpack.c.h.b16 %v595
    %v1273 = vunpack.c.l.b16 %v596
    %v1274 = vunpack.c.h.b16 %v596
    %v1275 = vunpack.c.l.b16 %v597
    %v1276 = vunpack.c.h.b16 %v597
    %v1277 = vunpack.c.l.b16 %v598
    %v1278 = vunpack.c.h.b16 %v598
    %v1279 = vunpack.c.l.b16 %v599
    %v1280 = vunpack.c.h.b16 %v599
    %v1281 = vunpack.c.l.b16 %v600
    %v1282 = vunpack.c.h.b16 %v600
    %v1283 = vunpack.c.l.b16 %v601
    %v1284 = vunpack.c.h.b16 %v601
    %v1285 = vunpack.c.l.b16 %v602
    %v1286 = vunpack.c.h.b16 %v602
    %v1287 = vunpack.c.l.b16 %v603
    %v1288 = vunpack.c.h.b16 %v603
    %v1289 = vunpack.c.l.b16 %v604
    %v1290 = vunpack.c.h.b16 %v604
    %v1291 = vunpack.c.l.b16 %v605
    %v1292 = vunpack.c.h.b16 %v605
    %v1293 = vunpack.c.l.b16 %v606
    %v1294 = vunpack.c.h.b16 %v606
    %v1295 = vunpack.c.l.b16 %v607
    %v1296 = vunpack.c.h.b16 %v607
    %v1297 = vunpack.c.l.b16 %v608
    %v1298 = vunpack.c.h.b16 %v608
    %v1299 = vunpack.c.l.b16 %v609
    %v1300 = vunpack.c.h.b16 %v609
    %v1301 = vunpack.c.l.b16 %v610
    %v1302 = vunpack.c.h.b16 %v610
    %v1303 = vunpack.c.l.b16 %v611
    %v1304 = vunpack.c.h.b16 %v611
    %v1305 = vunpack.c.l.b16 %v612
    %v1306 = vunpack.c.h.b16 %v612
    %v1307 = vunpack.c.l.b16 %v613
    %v1308 = vunpack.c.h.b16 %v613
    %v1309 = vunpack.c.l.b16 %v614
    %v1310 = vunpack.c.h.b16 %v614
    %v1311 = vunpack.c.l.b16 %v615
    %v1312 = vunpack.c.h.b16 %v615
    %v1313 = vunpack.c.l.b16 %v616
    %v1314 = vunpack.c.h.b16 %v616
    %v1315 = vunpack.c.l.b16 %v617
    %v1316 = vunpack.c.h.b16 %v617
    %v1317 = vunpack.c.l.b16 %v618
    %v1318 = vunpack.c.h.b16 %v618
    %v1319 = vunpack.c.l.b16 %v619
    %v1320 = vunpack.c.h.b16 %v619
    %v1321 = vunpack.c.l.b16 %v620
    %v1322 = vunpack.c.h.b16 %v620
    %v1323 = vunpack.c.l.b16 %v621
    %v1324 = vunpack.c.h.b16 %v621
    %v1325 = vunpack.c.l.b16 %v622
    %v1326 = vunpack.c.h.b16 %v622
    %v1327 = vunpack.c.l.b16 %v623
    %v1328 = vunpack.c.h.b16 %v623
    %v1329 = vunpack.c.l.b16 %v624
    %v1330 = vunpack.c.h.b16 %v624
    %v1331 = vunpack.c.l.b16 %v625
    %v1332 = vunpack.c.h.b16 %v625
    %v1333 = vunpack.c.l.b16 %v626
    %v1334 = vunpack.c.h.b16 %v626
    %v1335 = vunpack.c.l.b16 %v627
    %v1336 = vunpack.c.h.b16 %v627
    %v1337 = vunpack.c.l.b16 %v628
    %v1338 = vunpack.c.h.b16 %v628
    %v1339 = vunpack.c.l.b16 %v629
    %v1340 = vunpack.c.h.b16 %v629
    %v1341 = vunpack.c.l.b16 %v630
    %v1342 = vunpack.c.h.b16 %v630
    %v1343 = vunpack.c.l.b16 %v631
    %v1344 = vunpack.c.h.b16 %v631
    %v1345 = vunpack.c.l.b16 %v632
    %v1346 = vunpack.c.h.b16 %v632
    %v1347 = vunpack.c.l.b16 %v633
    %v1348 = vunpack.c.h.b16 %v633
    %v1349 = vunpack.c.l.b16 %v634
    %v1350 = vunpack.c.h.b16 %v634
    %v1351 = vunpack.c.l.b16 %v635
    %v1352 = vunpack.c.h.b16 %v635
    %v1353 = vunpack.c.l.b16 %v636
    %v1354 = vunpack.c.h.b16 %v636
    %v1355 = vunpack.c.l.b16 %v637
    %v1356 = vunpack.c.h.b16 %v637
    %v1357 = vunpack.c.l.b16 %v638
    %v1358 = vunpack.c.h.b16 %v638
    %v1359 = vunpack.c.l.b16 %v639
    %v1360 = vunpack.c.h.b16 %v639
    %v1361 = vunpack.c.l.b16 %v640
    %v1362 = vunpack.c.h.b16 %v640
    %v1363 = vunpack.c.l.b16 %v641
    %v1364 = vunpack.c.h.b16 %v641
    %v1365 = vunpack.c.l.b16 %v642
    %v1366 = vunpack.c.h.b16 %v642
    %v1367 = vunpack.c.l.b16 %v643
    %v1368 = vunpack.c.h.b16 %v643
    %v1369 = vunpack.c.l.b16 %v644
    %v1370 = vunpack.c.h.b16 %v644
    %v1371 = vunpack.c.l.b16 %v645
    %v1372 = vunpack.c.h.b16 %v645
    %v1373 = vunpack.c.l.b16 %v646
    %v1374 = vunpack.c.h.b16 %v646
    %v1375 = vunpack.c.l.b16 %v647
    %v1376 = vunpack.c.h.b16 %v647
    %v1377 = vunpack.c.l.b16 %v648
    %v1378 = vunpack.c.h.b16 %v648
    %v1379 = vunpack.c.l.b16 %v649
    %v1380 = vunpack.c.h.b16 %v649
    %v1381 = vunpack.c.l.b16 %v650
    %v1382 = vunpack.c.h.b16 %v650
    %v1383 = vunpack.c.l.b16 %v651
    %v1384 = vunpack.c.h.b16 %v651
    %v1385 = vunpack.c.l.b16 %v652
    %v1386 = vunpack.c.h.b16 %v652
    %v1387 = vunpack.c.l.b16 %v653
    %v1388 = vunpack.c.h.b16 %v653
    %v1389 = vunpack.c.l.b16 %v654
    %v1390 = vunpack.c.h.b16 %v654
    %v1391 = vunpack.c.l.b16 %v655
    %v1392 = vunpack.c.h.b16 %v655
    %v1393 = vunpack.c.l.b16 %v656
    %v1394 = vunpack.c.h.b16 %v656
    %v1395 = vunpack.c.l.b16 %v657
    %v1396 = vunpack.c.h.b16 %v657
    %v1397 = vunpack.c.l.b16 %v658
    %v1398 = vunpack.c.h.b16 %v658
    %v1399 = vunpack.c.l.b16 %v659
    %v1400 = vunpack.c.h.b16 %v659
    %v1401 = vunpack.c.l.b16 %v660
    %v1402 = vunpack.c.h.b16 %v660
    %v1403 = vunpack.c.l.b16 %v661
    %v1404 = vunpack.c.h.b16 %v661
    %v1405 = vunpack.c.l.b16 %v662
    %v1406 = vunpack.c.h.b16 %v662
    %v1407 = vunpack.c.l.b16 %v663
    %v1408 = vunpack.c.h.b16 %v663
    %v1409 = vunpack.c.l.b16 %v664
    %v1410 = vunpack.c.h.b16 %v664
    %v1411 = vunpack.c.l.b16 %v665
    %v1412 = vunpack.c.h.b16 %v665
    %v1413 = vunpack.c.l.b16 %v666
    %v1414 = vunpack.c.h.b16 %v666
    %v1415 = vunpack.c.l.b16 %v667
    %v1416 = vunpack.c.h.b16 %v667
    %v1417 = vunpack.c.l.b16 %v668
    %v1418 = vunpack.c.h.b16 %v668
    %v1419 = vunpack.c.l.b16 %v669
    %v1420 = vunpack.c.h.b16 %v669
    %v1421 = vunpack.c.l.b16 %v670
    %v1422 = vunpack.c.h.b16 %v670
    %v1423 = vunpack.c.l.b16 %v671
    %v1424 = vunpack.c.h.b16 %v671
    %v1425 = vunpack.c.l.b16 %v672
    %v1426 = vunpack.c.h.b16 %v672
    %v1427 = vunpack.c.l.b16 %v673
    %v1428 = vunpack.c.h.b16 %v673
    %v1429 = vunpack.c.l.b16 %v674
    %v1430 = vunpack.c.h.b16 %v674
    %v1431 = vunpack.c.l.b16 %v675
    %v1432 = vunpack.c.h.b16 %v675
    %v1433 = vunpack.c.l.b16 %v676
    %v1434 = vunpack.c.h.b16 %v676
    %v1435 = vunpack.c.l.b16 %v677
    %v1436 = vunpack.c.h.b16 %v677
    %v1437 = vunpack.c.l.b16 %v678
    %v1438 = vunpack.c.h.b16 %v678
    %v1439 = vunpack.c.l.b16 %v679
    %v1440 = vunpack.c.h.b16 %v679
    %v1441 = vunpack.c.l.b16 %v680
    %v1442 = vunpack.c.h.b16 %v680
    %v1443 = vunpack.c.l.b16 %v681
    %v1444 = vunpack.c.h.b16 %v681
    %v1445 = vunpack.c.l.b16 %v682
    %v1446 = vunpack.c.h.b16 %v682
    %v1447 = vunpack.c.l.b16 %v683
    %v1448 = vunpack.c.h.b16 %v683
    %v1449 = vunpack.c.l.b16 %v684
    %v1450 = vunpack.c.h.b16 %v684
    %v1451 = vunpack.c.l.b16 %v685
    %v1452 = vunpack.c.h.b16 %v685
    %v1453 = vunpack.c.l.b16 %v686
    %v1454 = vunpack.c.h.b16 %v686
    %v1455 = vunpack.c.l.b16 %v687
    %v1456 = vunpack.c.h.b16 %v687
    %v1457 = vunpack.c.l.b16 %v688
    %v1458 = vunpack.c.h.b16 %v688
    %v1459 = vunpack.c.l.b16 %v689
    %v1460 = vunpack.c.h.b16 %v689
    %v1461 = vunpack.c.l.b16 %v690
    %v1462 = vunpack.c.h.b16 %v690
    %v1463 = vunpack.c.l.b16 %v691
    %v1464 = vunpack.c.h.b16 %v691
    %v1465 = vunpack.c.l.b16 %v692
    %v1466 = vunpack.c.h.b16 %v692
    %v1467 = vunpack.c.l.b16 %v693
    %v1468 = vunpack.c.h.b16 %v693
    %v1469 = vunpack.c.l.b16 %v694
    %v1470 = vunpack.c.h.b16 %v694
    %v1471 = vunpack.c.l.b16 %v695
    %v1472 = vunpack.c.h.b16 %v695
    %v1473 = vunpack.c.l.b16 %v696
    %v1474 = vunpack.c.h.b16 %v696
    %v1475 = vunpack.c.l.b16 %v697
    %v1476 = vunpack.c.h.b16 %v697
    %v1477 = vunpack.c.l.b16 %v698
    %v1478 = vunpack.c.h.b16 %v698
    %v1479 = vunpack.c.l.b16 %v699
    %v1480 = vunpack.c.h.b16 %v699
    %v1481 = vunpack.c.l.b16 %v700
    %v1482 = vunpack.c.h.b16 %v700
    %v1483 = vunpack.c.l.b16 %v701
    %v1484 = vunpack.c.h.b16 %v701
    %v1485 = vunpack.c.l.b16 %v702
    %v1486 = vunpack.c.h.b16 %v702
    %v1487 = vunpack.c.l.b16 %v703
    %v1488 = vunpack.c.h.b16 %v703
    %v1489 = vunpack.c.l.b16 %v704
    %v1490 = vunpack.c.h.b16 %v704
    %v1491 = vunpack.c.l.b16 %v705
    %v1492 = vunpack.c.h.b16 %v705
    %v1493 = vunpack.c.l.b16 %v706
    %v1494 = vunpack.c.h.b16 %v706
    %v1495 = vunpack.c.l.b16 %v707
    %v1496 = vunpack.c.h.b16 %v707
    %v1497 = vunpack.c.l.b16 %v708
    %v1498 = vunpack.c.h.b16 %v708
    %v1499 = vunpack.c.l.b16 %v709
    %v1500 = vunpack.c.h.b16 %v709
    %v1501 = vunpack.c.l.b16 %v710
    %v1502 = vunpack.c.h.b16 %v710
    %v1503 = vunpack.c.l.b16 %v711
    %v1504 = vunpack.c.h.b16 %v711
    %v1505 = vunpack.c.l.b16 %v712
    %v1506 = vunpack.c.h.b16 %v712
    %v1507 = vunpack.c.l.b16 %v713
    %v1508 = vunpack.c.h.b16 %v713
    %v1509 = vunpack.c.l.b16 %v714
    %v1510 = vunpack.c.h.b16 %v714
    %v1511 = vunpack.c.l.b16 %v715
    %v1512 = vunpack.c.h.b16 %v715
    %v1513 = vunpack.c.l.b16 %v716
    %v1514 = vunpack.c.h.b16 %v716
    %v1515 = vunpack.c.l.b16 %v717
    %v1516 = vunpack.c.h.b16 %v717
    %v1517 = vunpack.c.l.b16 %v718
    %v1518 = vunpack.c.h.b16 %v718
    %v1519 = vunpack.c.l.b16 %v719
    %v1520 = vunpack.c.h.b16 %v719
    %v1521 = vunpack.c.l.b16 %v720
    %v1522 = vunpack.c.h.b16 %v720
    %v1523 = vunpack.c.l.b16 %v721
    %v1524 = vunpack.c.h.b16 %v721
    %v1525 = vunpack.c.l.b16 %v722
    %v1526 = vunpack.c.h.b16 %v722
    %v1527 = vunpack.c.l.b16 %v723
    %v1528 = vunpack.c.h.b16 %v723
    %v1529 = vunpack.c.l.b16 %v724
    %v1530 = vunpack.c.h.b16 %v724
    %v1531 = vunpack.c.l.b16 %v725
    %v1532 = vunpack.c.h.b16 %v725
    %v1533 = vunpack.c.l.b16 %v726
    %v1534 = vunpack.c.h.b16 %v726
    %v1535 = vunpack.c.l.b16 %v727
    %v1536 = vunpack.c.h.b16 %v727
    %v1537 = vunpack.c.l.b16 %v728
    %v1538 = vunpack.c.h.b16 %v728
    %v1539 = vunpack.c.l.b16 %v729
    %v1540 = vunpack.c.h.b16 %v729
    %v1541 = vunpack.c.l.b16 %v730
    %v1542 = vunpack.c.h.b16 %v730
    %v1543 = vunpack.c.l.b16 %v731
    %v1544 = vunpack.c.h.b16 %v731
    %v1545 = vunpack.c.l.b16 %v732
    %v1546 = vunpack.c.h.b16 %v732
    %v1547 = vunpack.c.l.b16 %v733
    %v1548 = vunpack.c.h.b16 %v733
    %v1549 = vunpack.c.l.b16 %v734
    %v1550 = vunpack.c.h.b16 %v734
    %v1551 = vunpack.c.l.b16 %v735
    %v1552 = vunpack.c.h.b16 %v735
    %v1553 = vunpack.c.l.b16 %v736
    %v1554 = vunpack.c.h.b16 %v736
    %v1555 = vunpack.c.l.b16 %v737
    %v1556 = vunpack.c.h.b16 %v737
    %v1557 = vunpack.c.l.b16 %v738
    %v1558 = vunpack.c.h.b16 %v738
    %v1559 = vunpack.c.l.b16 %v739
    %v1560 = vunpack.c.h.b16 %v739
    %v1561 = vunpack.c.l.b16 %v740
    %v1562 = vunpack.c.h.b16 %v740
    %v1563 = vunpack.c.l.b16 %v741
    %v1564 = vunpack.c.h.b16 %v741
    %v1565 = vunpack.c.l.b16 %v742
    %v1566 = vunpack.c.h.b16 %v742
    %v1567 = vunpack.c.l.b16 %v743
    %v1568 = vunpack.c.h.b16 %v743
    %v1569 = vunpack.c.l.b16 %v744
    %v1570 = vunpack.c.h.b16 %v744
    %v1571 = vunpack.c.l.b16 %v745
    %v1572 = vunpack.c.h.b16 %v745
    %v1573 = vunpack.c.l.b16 %v746
    %v1574 = vunpack.c.h.b16 %v746
    %v1575 = vunpack.c.l.b16 %v747
    %v1576 = vunpack.c.h.b16 %v747
    %v1577 = vunpack.c.l.b16 %v748
    %v1578 = vunpack.c.h.b16 %v748
    %v1579 = vunpack.c.l.b16 %v749
    %v1580 = vunpack.c.h.b16 %v749
    %v1581 = vunpack.c.l.b16 %v750
    %v1582 = vunpack.c.h.b16 %v750
    %v1583 = vunpack.c.l.b16 %v751
    %v1584 = vunpack.c.h.b16 %v751
    %v1585 = vunpack.c.l.b16 %v752
    %v1586 = vunpack.c.h.b16 %v752
    %v1587 = vunpack.c.l.b16 %v753
    %v1588 = vunpack.c.h.b16 %v753
    %v1589 = vunpack.c.l.b16 %v754
    %v1590 = vunpack.c.h.b16 %v754
    %v1591 = vunpack.c.l.b16 %v755
    %v1592 = vunpack.c.h.b16 %v755
    %v1593 = vunpack.c.l.b16 %v756
    %v1594 = vunpack.c.h.b16 %v756
    %v1595 = vunpack.c.l.b16 %v757
    %v1596 = vunpack.c.h.b16 %v757
    %v1597 = vunpack.c.l.b16 %v758
    %v1598 = vunpack.c.h.b16 %v758
    %v1599 = vunpack.c.l.b16 %v759
    %v1600 = vunpack.c.h.b16 %v759
    %v1601 = vunpack.c.l.b16 %v760
    %v1602 = vunpack.c.h.b16 %v760
    %v1603 = vunpack.c.l.b16 %v761
    %v1604 = vunpack.c.h.b16 %v761
    %v1605 = vunpack.c.l.b16 %v762
    %v1606 = vunpack.c.h.b16 %v762
    %v1607 = vunpack.c.l.b16 %v763
    %v1608 = vunpack.c.h.b16 %v763
    %v1609 = vunpack.c.l.b16 %v764
    %v1610 = vunpack.c.h.b16 %v764
    %v1611 = vunpack.c.l.b16 %v765
    %v1612 = vunpack.c.h.b16 %v765
    %v1613 = vunpack.c.l.b16 %v766
    %v1614 = vunpack.c.h.b16 %v766
    %v1615 = vunpack.c.l.b16 %v767
    %v1616 = vunpack.c.h.b16 %v767
    %v1617 = vunpack.c.l.b16 %v768
    %v1618 = vunpack.c.h.b16 %v768
    %v1619 = vunpack.c.l.b16 %v769
    %v1620 = vunpack.c.h.b16 %v769
    %v1621 = vunpack.c.l.b16 %v770
    %v1622 = vunpack.c.h.b16 %v770
    %v1623 = vunpack.c.l.b16 %v771
    %v1624 = vunpack.c.h.b16 %v771
    %v1625 = vunpack.c.l.b16 %v772
    %v1626 = vunpack.c.h.b16 %v772
    %v1627 = vunpack.c.l.b16 %v773
    %v1628 = vunpack.c.h.b16 %v773
    %v1629 = vunpack.c.l.b16 %v774
    %v1630 = vunpack.c.h.b16 %v774
    %v1631 = vunpack.c.l.b16 %v775
    %v1632 = vunpack.c.h.b16 %v775
    %v1633 = vunpack.c.l.b16 %v776
    %v1634 = vunpack.c.h.b16 %v776
    %v1635 = vunpack.c.l.b16 %v777
    %v1636 = vunpack.c.h.b16 %v777
    %v1637 = vunpack.c.l.b16 %v778
    %v1638 = vunpack.c.h.b16 %v778
    %v1639 = vunpack.c.l.b16 %v779
    %v1640 = vunpack.c.h.b16 %v779
    %v1641 = vunpack.c.l.b16 %v780
    %v1642 = vunpack.c.h.b16 %v780
    %v1643 = vunpack.c.l.b16 %v781
    %v1644 = vunpack.c.h.b16 %v781
    %v1645 = vunpack.c.l.b16 %v782
    %v1646 = vunpack.c.h.b16 %v782
    %v1647 = vunpack.c.l.b16 %v783
    %v1648 = vunpack.c.h.b16 %v783
    %v1649 = vunpack.c.l.b16 %v784
    %v1650 = vunpack.c.h.b16 %v784
    %v1651 = vunpack.c.l.b16 %v785
    %v1652 = vunpack.c.h.b16 %v785
    %v1653 = vunpack.c.l.b16 %v786
    %v1654 = vunpack.c.h.b16 %v786
    %v1655 = vunpack.c.l.b16 %v787
    %v1656 = vunpack.c.h.b16 %v787
    %v1657 = vunpack.c.l.b16 %v788
    %v1658 = vunpack.c.h.b16 %v788
    %v1659 = vunpack.c.l.b16 %v789
    %v1660 = vunpack.c.h.b16 %v789
    %v1661 = vunpack.c.l.b16 %v790
    %v1662 = vunpack.c.h.b16 %v790
    %v1663 = vunpack.c.l.b16 %v791
    %v1664 = vunpack.c.h.b16 %v791
    %v1665 = vunpack.c.l.b16 %v792
    %v1666 = vunpack.c.h.b16 %v792
    %v1667 = vunpack.c.l.b16 %v793
    %v1668 = vunpack.c.h.b16 %v793
    %v1669 = vunpack.c.l.b16 %v794
    %v1670 = vunpack.c.h.b16 %v794
    %v1671 = vunpack.c.l.b16 %v795
    %v1672 = vunpack.c.h.b16 %v795
    %v1673 = vunpack.c.l.b16 %v796
    %v1674 = vunpack.c.h.b16 %v796
    %v1675 = vunpack.c.l.b16 %v797
    %v1676 = vunpack.c.h.b16 %v797
    %v1677 = vunpack.c.l.b16 %v798
    %v1678 = vunpack.c.h.b16 %v798
    %v1679 = vunpack.c.l.b16 %v799
    %v1680 = vunpack.c.h.b16 %v799
    %v1681 = vunpack.c.l.b16 %v800
    %v1682 = vunpack.c.h.b16 %v800
    %v1683 = vunpack.c.l.b16 %v801
    %v1684 = vunpack.c.h.b16 %v801
    %v1685 = vunpack.c.l.b16 %v802
    %v1686 = vunpack.c.h.b16 %v802
    %v1687 = vpack.c.b16 %v1117, %v1111
    %v1688 = vpack.c.b16 %v1118, %v1112
    %v1689 = vpack.c.b16 %v1119, %v1113
    %v1690 = vpack.c.b16 %v1120, %v1114
    %v1691 = vpack.c.b16 %v1121, %v1115
    %v1692 = vpack.c.b16 %v1122, %v1116
    %v1693 = vpack.c.b16 %v1129, %v1123
    %v1694 = vpack.c.b16 %v1130, %v1124
    %v1695 = vpack.c.b16 %v1131, %v1125
    %v1696 = vpack.c.b16 %v1132, %v1126
    %v1697 = vpack.c.b16 %v1133, %v1127
    %v1698 = vpack.c.b16 %v1134, %v1128
    %v1699 = vpack.c.b16 %v1141, %v1135
    %v1700 = vpack.c.b16 %v1142, %v1136
    %v1701 = vpack.c.b16 %v1143, %v1137
    %v1702 = vpack.c.b16 %v1144, %v1138
    %v1703 = vpack.c.b16 %v1145, %v1139
    %v1704 = vpack.c.b16 %v1146, %v1140
    %v1705 = vpack.c.b16 %v1153, %v1147
    %v1706 = vpack.c.b16 %v1154, %v1148
    %v1707 = vpack.c.b16 %v1155, %v1149
    %v1708 = vpack.c.b16 %v1156, %v1150
    %v1709 = vpack.c.b16 %v1157, %v1151
    %v1710 = vpack.c.b16 %v1158, %v1152
    %v1711 = vpack.c.b16 %v1165, %v1159
    %v1712 = vpack.c.b16 %v1166, %v1160
    %v1713 = vpack.c.b16 %v1167, %v1161
    %v1714 = vpack.c.b16 %v1168, %v1162
    %v1715 = vpack.c.b16 %v1169, %v1163
    %v1716 = vpack.c.b16 %v1170, %v1164
    %v1717 = vpack.c.b16 %v1177, %v1171
    %v1718 = vpack.c.b16 %v1178, %v1172
    %v1719 = vpack.c.b16 %v1179, %v1173
    %v1720 = vpack.c.b16 %v1180, %v1174
    %v1721 = vpack.c.b16 %v1181, %v1175
    %v1722 = vpack.c.b16 %v1182, %v1176
    %v1723 = vpack.c.b16 %v1189, %v1183
    %v1724 = vpack.c.b16 %v1190, %v1184
    %v1725 = vpack.c.b16 %v1191, %v1185
    %v1726 = vpack.c.b16 %v1192, %v1186
    %v1727 = vpack.c.b16 %v1193, %v1187
    %v1728 = vpack.c.b16 %v1194, %v1188
    %v1729 = vpack.c.b16 %v1201, %v1195
    %v1730 = vpack.c.b16 %v1202, %v1196
    %v1731 = vpack.c.b16 %v1203, %v1197
    %v1732 = vpack.c.b16 %v1204, %v1198
    %v1733 = vpack.c.b16 %v1205, %v1199
    %v1734 = vpack.c.b16 %v1206, %v1200
    %v1735 = vpack.c.b16 %v1213, %v1207
    %v1736 = vpack.c.b16 %v1214, %v1208
    %v1737 = vpack.c.b16 %v1215, %v1209
    %v1738 = vpack.c.b16 %v1216, %v1210
    %v1739 = vpack.c.b16 %v1217, %v1211
    %v1740 = vpack.c.b16 %v1218, %v1212
    %v1741 = vpack.c.b16 %v1225, %v1219
    %v1742 = vpack.c.b16 %v1226, %v1220
    %v1743 = vpack.c.b16 %v1227, %v1221
    %v1744 = vpack.c.b16 %v1228, %v1222
    %v1745 = vpack.c.b16 %v1229, %v1223
    %v1746 = vpack.c.b16 %v1230, %v1224
    %v1747 = vpack.c.b16 %v1237, %v1231
    %v1748 = vpack.c.b16 %v1238, %v1232
    %v1749 = vpack.c.b16 %v1239, %v1233
    %v1750 = vpack.c.b16 %v1240, %v1234
    %v1751 = vpack.c.b16 %v1241, %v1235
    %v1752 = vpack.c.b16 %v1242, %v1236
    %v1753 = vpack.c.b16 %v1249, %v1243
    %v1754 = vpack.c.b16 %v1250, %v1244
    %v1755 = vpack.c.b16 %v1251, %v1245
    %v1756 = vpack.c.b16 %v1252, %v1246
    %v1757 = vpack.c.b16 %v1253, %v1247
    %v1758 = vpack.c.b16 %v1254, %v1248
    %v1759 = vpack.c.b16 %v1261, %v1255
    %v1760 = vpack.c.b16 %v1262, %v1256
    %v1761 = vpack.c.b16 %v1263, %v1257
    %v1762 = vpack.c.b16 %v1264, %v1258
    %v1763 = vpack.c.b16 %v1265, %v1259
    %v1764 = vpack.c.b16 %v1266, %v1260
    %v1765 = vpack.c.b16 %v1273, %v1267
    %v1766 = vpack.c.b16 %v1274, %v1268
    %v1767 = vpack.c.b16 %v1275, %v1269
    %v1768 = vpack.c.b16 %v1276, %v1270
    %v1769 = vpack.c.b16 %v1277, %v1271
    %v1770 = vpack.c.b16 %v1278, %v1272
    %v1771 = vpack.c.b16 %v1285, %v1279
    %v1772 = vpack.c.b16 %v1286, %v1280
    %v1773 = vpack.c.b16 %v1287, %v1281
    %v1774 = vpack.c.b16 %v1288, %v1282
    %v1775 = vpack.c.b16 %v1289, %v1283
    %v1776 = vpack.c.b16 %v1290, %v1284
    %v1777 = vpack.c.b16 %v1297, %v1291
    %v1778 = vpack.c.b16 %v1298, %v1292
    %v1779 = vpack.c.b16 %v1299, %v1293
    %v1780 = vpack.c.b16 %v1300, %v1294
    %v1781 = vpack.c.b16 %v1301, %v1295
    %v1782 = vpack.c.b16 %v1302, %v1296
    %v1783 = vpack.c.b16 %v1309, %v1303
    %v1784 = vpack.c.b16 %v1310, %v1304
    %v1785 = vpack.c.b16 %v1311, %v1305
    %v1786 = vpack.c.b16 %v1312, %v1306
    %v1787 = vpack.c.b16 %v1313, %v1307
    %v1788 = vpack.c.b16 %v1314, %v1308
    %v1789 = vpack.c.b16 %v1321, %v1315
    %v1790 = vpack.c.b16 %v1322, %v1316
    %v1791 = vpack.c.b16 %v1323, %v1317
    %v1792 = vpack.c.b16 %v1324, %v1318
    %v1793 = vpack.c.b16 %v1325, %v1319
    %v1794 = vpack.c.b16 %v1326, %v1320
    %v1795 = vpack.c.b16 %v1333, %v1327
    %v1796 = vpack.c.b16 %v1334, %v1328
    %v1797 = vpack.c.b16 %v1335, %v1329
    %v1798 = vpack.c.b16 %v1336, %v1330
    %v1799 = vpack.c.b16 %v1337, %v1331
    %v1800 = vpack.c.b16 %v1338, %v1332
    %v1801 = vpack.c.b16 %v1345, %v1339
    %v1802 = vpack.c.b16 %v1346, %v1340
    %v1803 = vpack.c.b16 %v1347, %v1341
    %v1804 = vpack.c.b16 %v1348, %v1342
    %v1805 = vpack.c.b16 %v1349, %v1343
    %v1806 = vpack.c.b16 %v1350, %v1344
    %v1807 = vpack.c.b16 %v1357, %v1351
    %v1808 = vpack.c.b16 %v1358, %v1352
    %v1809 = vpack.c.b16 %v1359, %v1353
    %v1810 = vpack.c.b16 %v1360, %v1354
    %v1811 = vpack.c.b16 %v1361, %v1355
    %v1812 = vpack.c.b16 %v1362, %v1356
    %v1813 = vpack.c.b16 %v1369, %v1363
    %v1814 = vpack.c.b16 %v1370, %v1364
    %v1815 = vpack.c.b16 %v1371, %v1365
    %v1816 = vpack.c.b16 %v1372, %v1366
    %v1817 = vpack.c.b16 %v1373, %v1367
    %v1818 = vpack.c.b16 %v1374, %v1368
    %v1819 = vpack.c.b16 %v1381, %v1375
    %v1820 = vpack.c.b16 %v1382, %v1376
    %v1821 = vpack.c.b16 %v1383, %v1377
    %v1822 = vpack.c.b16 %v1384, %v1378
    %v1823 = vpack.c.b16 %v1385, %v1379
    %v1824 = vpack.c.b16 %v1386, %v1380
    %v1825 = vpack.c.b16 %v1393, %v1387
    %v1826 = vpack.c.b16 %v1394, %v1388
    %v1827 = vpack.c.b16 %v1395, %v1389
    %v1828 = vpack.c.b16 %v1396, %v1390
    %v1829 = vpack.c.b16 %v1397, %v1391
    %v1830 = vpack.c.b16 %v1398, %v1392
    %v1831 = vpack.c.b16 %v1405, %v1399
    %v1832 = vpack.c.b16 %v1406, %v1400
    %v1833 = vpack.c.b16 %v1407, %v1401
    %v1834 = vpack.c.b16 %v1408, %v1402
    %v1835 = vpack.c.b16 %v1409, %v1403
    %v1836 = vpack.c.b16 %v1410, %v1404
    %v1837 = vpack.c.b16 %v1417, %v1411
    %v1838 = vpack.c.b16 %v1418, %v1412
    %v1839 = vpack.c.b16 %v1419, %v1413
    %v1840 = vpack.c.b16 %v1420, %v1414
    %v1841 = vpack.c.b16 %v1421, %v1415
    %v1842 = vpack.c.b16 %v1422, %v1416
    %v1843 = vpack.c.b16 %v1429, %v1423
    %v1844 = vpack.c.b16 %v1430, %v1424
    %v1845 = vpack.c.b16 %v1431, %v1425
    %v1846 = vpack.c.b16 %v1432, %v1426
    %v1847 = vpack.c.b16 %v1433, %v1427
    %v1848 = vpack.c.b16 %v1434, %v1428
    %v1849 = vpack.c.b16 %v1441, %v1435
    %v1850 = vpack.c.b16 %v1442, %v1436
    %v1851 = vpack.c.b16 %v1443, %v1437
    %v1852 = vpack.c.b16 %v1444, %v1438
    %v1853 = vpack.c.b16 %v1445, %v1439
    %v1854 = vpack.c.b16 %v1446, %v1440
    %v1855 = vpack.c.b16 %v1453, %v1447
    %v1856 = vpack.c.b16 %v1454, %v1448
    %v1857 = vpack.c.b16 %v1455, %v1449
    %v1858 = vpack.c.b16 %v1456, %v1450
    %v1859 = vpack.c.b16 %v1457, %v1451
    %v1860 = vpack.c.b16 %v1458, %v1452
    %v1861 = vpack.c.b16 %v1465, %v1459
    %v1862 = vpack.c.b16 %v1466, %v1460
    %v1863 = vpack.c.b16 %v1467, %v1461
    %v1864 = vpack.c.b16 %v1468, %v1462
    %v1865 = vpack.c.b16 %v1469, %v1463
    %v1866 = vpack.c.b16 %v1470, %v1464
    %v1867 = vpack.c.b16 %v1477, %v1471
    %v1868 = vpack.c.b16 %v1478, %v1472
    %v1869 = vpack.c.b16 %v1479, %v1473
    %v1870 = vpack.c.b16 %v1480, %v1474
    %v1871 = vpack.c.b16 %v1481, %v1475
    %v1872 = vpack.c.b16 %v1482, %v1476
    %v1873 = vpack.c.b16 %v1489, %v1483
    %v1874 = vpack.c.b16 %v1490, %v1484
    %v1875 = vpack.c.b16 %v1491, %v1485
    %v1876 = vpack.c.b16 %v1492, %v1486
    %v1877 = vpack.c.b16 %v1493, %v1487
    %v1878 = vpack.c.b16 %v1494, %v1488
    %v1879 = vpack.c.b16 %v1501, %v1495
    %v1880 = vpack.c.b16 %v1502, %v1496
    %v1881 = vpack.c.b16 %v1503, %v1497
    %v1882 = vpack.c.b16 %v1504, %v1498
    %v1883 = vpack.c.b16 %v1505, %v1499
    %v1884 = vpack.c.b16 %v1506, %v1500
    %v1885 = vpack.c.b16 %v1513, %v1507
    %v1886 = vpack.c.b16 %v1514, %v1508
    %v1887 = vpack.c.b16 %v1515, %v1509
    %v1888 = vpack.c.b16 %v1516, %v1510
    %v1889 = vpack.c.b16 %v1517, %v1511
    %v1890 = vpack.c.b16 %v1518, %v1512
    %v1891 = vpack.c.b16 %v1525, %v1519
    %v1892 = vpack.c.b16 %v1526, %v1520
    %v1893 = vpack.c.b16 %v1527, %v1521
    %v1894 = vpack.c.b16 %v1528, %v1522
    %v1895 = vpack.c.b16 %v1529, %v1523
    %v1896 = vpack.c.b16 %v1530, %v1524
    %v1897 = vpack.c.b16 %v1537, %v1531
    %v1898 = vpack.c.b16 %v1538, %v1532
    %v1899 = vpack.c.b16 %v1539, %v1533
    %v1900 = vpack.c.b16 %v1540, %v1534
    %v1901 = vpack.c.b16 %v1541, %v1535
    %v1902 = vpack.c.b16 %v1542, %v1536
    %v1903 = vpack.c.b16 %v1549, %v1543
    %v1904 = vpack.c.b16 %v1550, %v1544
    %v1905 = vpack.c.b16 %v1551, %v1545
    %v1906 = vpack.c.b16 %v1552, %v1546
    %v1907 = vpack.c.b16 %v1553, %v1547
    %v1908 = vpack.c.b16 %v1554, %v1548
    %v1909 = vpack.c.b16 %v1561, %v1555
    %v1910 = vpack.c.b16 %v1562, %v1556
    %v1911 = vpack.c.b16 %v1563, %v1557
    %v1912 = vpack.c.b16 %v1564, %v1558
    %v1913 = vpack.c.b16 %v1565, %v1559
    %v1914 = vpack.c.b16 %v1566, %v1560
    %v1915 = vpack.c.b16 %v1573, %v1567
    %v1916 = vpack.c.b16 %v1574, %v1568
    %v1917 = vpack.c.b16 %v1575, %v1569
    %v1918 = vpack.c.b16 %v1576, %v1570
    %v1919 = vpack.c.b16 %v1577, %v1571
    %v1920 = vpack.c.b16 %v1578, %v1572
    %v1921 = vpack.c.b16 %v1585, %v1579
    %v1922 = vpack.c.b16 %v1586, %v1580
    %v1923 = vpack.c.b16 %v1587, %v1581
    %v1924 = vpack.c.b16 %v1588, %v1582
    %v1925 = vpack.c.b16 %v1589, %v1583
    %v1926 = vpack.c.b16 %v1590, %v1584
    %v1927 = vpack.c.b16 %v1597, %v1591
    %v1928 = vpack.c.b16 %v1598, %v1592
    %v1929 = vpack.c.b16 %v1599, %v1593
    %v1930 = vpack.c.b16 %v1600, %v1594
    %v1931 = vpack.c.b16 %v1601, %v1595
    %v1932 = vpack.c.b16 %v1602, %v1596
    %v1933 = vpack.c.b16 %v1609, %v1603
    %v1934 = vpack.c.b16 %v1610, %v1604
    %v1935 = vpack.c.b16 %v1611, %v1605
    %v1936 = vpack.c.b16 %v1612, %v1606
    %v1937 = vpack.c.b16 %v1613, %v1607
    %v1938 = vpack.c.b16 %v1614, %v1608
    %v1939 = vpack.c.b16 %v1621, %v1615
    %v1940 = vpack.c.b16 %v1622, %v1616
    %v1941 = vpack.c.b16 %v1623, %v1617
    %v1942 = vpack.c.b16 %v1624, %v1618
    %v1943 = vpack.c.b16 %v1625, %v1619
    %v1944 = vpack.c.b16 %v1626, %v1620
    %v1945 = vpack.c.b16 %v1633, %v1627
    %v1946 = vpack.c.b16 %v1634, %v1628
    %v1947 = vpack.c.b16 %v1635, %v1629
    %v1948 = vpack.c.b16 %v1636, %v1630
    %v1949 = vpack.c.b16 %v1637, %v1631
    %v1950 = vpack.c.b16 %v1638, %v1632
    %v1951 = vpack.c.b16 %v1645, %v1639
    %v1952 = vpack.c.b16 %v1646, %v1640
    %v1953 = vpack.c.b16 %v1647, %v1641
    %v1954 = vpack.c.b16 %v1648, %v1642
    %v1955 = vpack.c.b16 %v1649, %v1643
    %v1956 = vpack.c.b16 %v1650, %v1644
    %v1957 = vpack.c.b16 %v1657, %v1651
    %v1958 = vpack.c.b16 %v1658, %v1652
    %v1959 = vpack.c.b16 %v1659, %v1653
    %v1960 = vpack.c.b16 %v1660, %v1654
    %v1961 = vpack.c.b16 %v1661, %v1655
    %v1962 = vpack.c.b16 %v1662, %v1656
    %v1963 = vpack.c.b16 %v1669, %v1663
    %v1964 = vpack.c.b16 %v1670, %v1664
    %v1965 = vpack.c.b16 %v1671, %v1665
    %v1966 = vpack.c.b16 %v1672, %v1666
    %v1967 = vpack.c.b16 %v1673, %v1667
    %v1968 = vpack.c.b16 %v1674, %v1668
    %v1969 = vpack.c.b16 %v1681, %v1675
    %v1970 = vpack.c.b16 %v1682, %v1676
    %v1971 = vpack.c.b16 %v1683, %v1677
    %v1972 = vpack.c.b16 %v1684, %v1678
    %v1973 = vpack.c.b16 %v1685, %v1679
    %v1974 = vpack.c.b16 %v1686, %v1680
    %2263 = vmatpush.bf16.msra.mxu0 %v1729
    %2264 = vmatpush.bf16.msra.mxu0 %v1723
    %2265 = vmatpush.bf16.msra.mxu0 %v1717
    %2266 = vmatpush.bf16.msra.mxu0 %v1711
    %2267 = vmatpush.bf16.msra.mxu0 %v1705
    %2268 = vmatpush.bf16.msra.mxu0 %v1699
    %2269 = vmatpush.bf16.msra.mxu0 %v1693
    %2270 = vmatpush.bf16.msra.mxu0 %v1687
    %2271 = vmatmul.bf16.gmra.mxu0 %v804
    %v2272 = vpop.f32.mrf.mxu0
    %v2273 = vadd.f32 %v811, %v2272
    %v2274 = vpop.f32.mrf.mxu0
    %2275 = vdwg.mxu0
    %2276 = vmatpush.bf16.msra.mxu0 %v1777
    %2277 = vmatpush.bf16.msra.mxu0 %v1771
    %2278 = vmatpush.bf16.msra.mxu0 %v1765
    %2279 = vmatpush.bf16.msra.mxu0 %v1759
    %2280 = vmatpush.bf16.msra.mxu0 %v1753
    %2281 = vmatpush.bf16.msra.mxu0 %v1747
    %2282 = vmatpush.bf16.msra.mxu0 %v1741
    %2283 = vmatpush.bf16.msra.mxu0 %v1735
    %2284 = vmatmul.bf16.gmra.mxu0 %v805
    %v2285 = vpop.f32.mrf.mxu0
    %v2286 = vadd.f32 %v2273, %v2285
    %v2287 = vpop.f32.mrf.mxu0
    %2288 = vdwg.mxu0
    %2289 = vmatpush.bf16.msra.mxu0 %v1825
    %2290 = vmatpush.bf16.msra.mxu0 %v1819
    %2291 = vmatpush.bf16.msra.mxu0 %v1813
    %2292 = vmatpush.bf16.msra.mxu0 %v1807
    %2293 = vmatpush.bf16.msra.mxu0 %v1801
    %2294 = vmatpush.bf16.msra.mxu0 %v1795
    %2295 = vmatpush.bf16.msra.mxu0 %v1789
    %2296 = vmatpush.bf16.msra.mxu0 %v1783
    %2297 = vmatmul.bf16.gmra.mxu0 %v806
    %v2298 = vpop.f32.mrf.mxu0
    %v2299 = vadd.f32 %v2286, %v2298
    %v2300 = vpop.f32.mrf.mxu0
    %2301 = vdwg.mxu0
    %2302 = vmatpush.bf16.msra.mxu0 %v1873
    %2303 = vmatpush.bf16.msra.mxu0 %v1867
    %2304 = vmatpush.bf16.msra.mxu0 %v1861
    %2305 = vmatpush.bf16.msra.mxu0 %v1855
    %2306 = vmatpush.bf16.msra.mxu0 %v1849
    %2307 = vmatpush.bf16.msra.mxu0 %v1843
    %2308 = vmatpush.bf16.msra.mxu0 %v1837
    %2309 = vmatpush.bf16.msra.mxu0 %v1831
    %2310 = vmatmul.bf16.gmra.mxu0 %v807
    %v2311 = vpop.f32.mrf.mxu0
    %v2312 = vadd.f32 %v2299, %v2311
    %v2313 = vpop.f32.mrf.mxu0
    %2314 = vdwg.mxu0
    %2315 = vmatpush.bf16.msra.mxu0 %v1921
    %2316 = vmatpush.bf16.msra.mxu0 %v1915
    %2317 = vmatpush.bf16.msra.mxu0 %v1909
    %2318 = vmatpush.bf16.msra.mxu0 %v1903
    %2319 = vmatpush.bf16.msra.mxu0 %v1897
    %2320 = vmatpush.bf16.msra.mxu0 %v1891
    %2321 = vmatpush.bf16.msra.mxu0 %v1885
    %2322 = vmatpush.bf16.msra.mxu0 %v1879
    %2323 = vmatmul.bf16.gmra.mxu0 %v808
    %v2324 = vpop.f32.mrf.mxu0
    %v2325 = vadd.f32 %v2312, %v2324
    %v2326 = vpop.f32.mrf.mxu0
    %2327 = vdwg.mxu0
    %2328 = vmatpush.bf16.msra.mxu0 %v1969
    %2329 = vmatpush.bf16.msra.mxu0 %v1963
    %2330 = vmatpush.bf16.msra.mxu0 %v1957
    %2331 = vmatpush.bf16.msra.mxu0 %v1951
    %2332 = vmatpush.bf16.msra.mxu0 %v1945
    %2333 = vmatpush.bf16.msra.mxu0 %v1939
    %2334 = vmatpush.bf16.msra.mxu0 %v1933
    %2335 = vmatpush.bf16.msra.mxu0 %v1927
    %2336 = vmatmul.bf16.gmra.mxu0 %v809
    %v2337 = vpop.f32.mrf.mxu0
    %v2338 = vadd.f32 %v2325, %v2337
    %v2339 = vpop.f32.mrf.mxu0
    %2340 = vdwg.mxu0
    %2341 = vmatpush.bf16.msra.mxu0 %v1730
    %2342 = vmatpush.bf16.msra.mxu0 %v1724
    %2343 = vmatpush.bf16.msra.mxu0 %v1718
    %2344 = vmatpush.bf16.msra.mxu0 %v1712
    %2345 = vmatpush.bf16.msra.mxu0 %v1706
    %2346 = vmatpush.bf16.msra.mxu0 %v1700
    %2347 = vmatpush.bf16.msra.mxu0 %v1694
    %2348 = vmatpush.bf16.msra.mxu0 %v1688
    %2349 = vmatmul.bf16.gmra.mxu0 %v804
    %v2350 = vpop.f32.mrf.mxu0
    %v2351 = vadd.f32 %v812, %v2350
    %v2352 = vpop.f32.mrf.mxu0
    %2353 = vdwg.mxu0
    %2354 = vmatpush.bf16.msra.mxu0 %v1778
    %2355 = vmatpush.bf16.msra.mxu0 %v1772
    %2356 = vmatpush.bf16.msra.mxu0 %v1766
    %2357 = vmatpush.bf16.msra.mxu0 %v1760
    %2358 = vmatpush.bf16.msra.mxu0 %v1754
    %2359 = vmatpush.bf16.msra.mxu0 %v1748
    %2360 = vmatpush.bf16.msra.mxu0 %v1742
    %2361 = vmatpush.bf16.msra.mxu0 %v1736
    %2362 = vmatmul.bf16.gmra.mxu0 %v805
    %v2363 = vpop.f32.mrf.mxu0
    %v2364 = vadd.f32 %v2351, %v2363
    %v2365 = vpop.f32.mrf.mxu0
    %2366 = vdwg.mxu0
    %2367 = vmatpush.bf16.msra.mxu0 %v1826
    %2368 = vmatpush.bf16.msra.mxu0 %v1820
    %2369 = vmatpush.bf16.msra.mxu0 %v1814
    %2370 = vmatpush.bf16.msra.mxu0 %v1808
    %2371 = vmatpush.bf16.msra.mxu0 %v1802
    %2372 = vmatpush.bf16.msra.mxu0 %v1796
    %2373 = vmatpush.bf16.msra.mxu0 %v1790
    %2374 = vmatpush.bf16.msra.mxu0 %v1784
    %2375 = vmatmul.bf16.gmra.mxu0 %v806
    %v2376 = vpop.f32.mrf.mxu0
    %v2377 = vadd.f32 %v2364, %v2376
    %v2378 = vpop.f32.mrf.mxu0
    %2379 = vdwg.mxu0
    %2380 = vmatpush.bf16.msra.mxu0 %v1874
    %2381 = vmatpush.bf16.msra.mxu0 %v1868
    %2382 = vmatpush.bf16.msra.mxu0 %v1862
    %2383 = vmatpush.bf16.msra.mxu0 %v1856
    %2384 = vmatpush.bf16.msra.mxu0 %v1850
    %2385 = vmatpush.bf16.msra.mxu0 %v1844
    %2386 = vmatpush.bf16.msra.mxu0 %v1838
    %2387 = vmatpush.bf16.msra.mxu0 %v1832
    %2388 = vmatmul.bf16.gmra.mxu0 %v807
    %v2389 = vpop.f32.mrf.mxu0
    %v2390 = vadd.f32 %v2377, %v2389
    %v2391 = vpop.f32.mrf.mxu0
    %2392 = vdwg.mxu0
    %2393 = vmatpush.bf16.msra.mxu0 %v1922
    %2394 = vmatpush.bf16.msra.mxu0 %v1916
    %2395 = vmatpush.bf16.msra.mxu0 %v1910
    %2396 = vmatpush.bf16.msra.mxu0 %v1904
    %2397 = vmatpush.bf16.msra.mxu0 %v1898
    %2398 = vmatpush.bf16.msra.mxu0 %v1892
    %2399 = vmatpush.bf16.msra.mxu0 %v1886
    %2400 = vmatpush.bf16.msra.mxu0 %v1880
    %2401 = vmatmul.bf16.gmra.mxu0 %v808
    %v2402 = vpop.f32.mrf.mxu0
    %v2403 = vadd.f32 %v2390, %v2402
    %v2404 = vpop.f32.mrf.mxu0
    %2405 = vdwg.mxu0
    %2406 = vmatpush.bf16.msra.mxu0 %v1970
    %2407 = vmatpush.bf16.msra.mxu0 %v1964
    %2408 = vmatpush.bf16.msra.mxu0 %v1958
    %2409 = vmatpush.bf16.msra.mxu0 %v1952
    %2410 = vmatpush.bf16.msra.mxu0 %v1946
    %2411 = vmatpush.bf16.msra.mxu0 %v1940
    %2412 = vmatpush.bf16.msra.mxu0 %v1934
    %2413 = vmatpush.bf16.msra.mxu0 %v1928
    %2414 = vmatmul.bf16.gmra.mxu0 %v809
    %v2415 = vpop.f32.mrf.mxu0
    %v2416 = vadd.f32 %v2403, %v2415
    %v2417 = vpop.f32.mrf.mxu0
    %2418 = vdwg.mxu0
    %2419 = vmatpush.bf16.msra.mxu0 %v1731
    %2420 = vmatpush.bf16.msra.mxu0 %v1725
    %2421 = vmatpush.bf16.msra.mxu0 %v1719
    %2422 = vmatpush.bf16.msra.mxu0 %v1713
    %2423 = vmatpush.bf16.msra.mxu0 %v1707
    %2424 = vmatpush.bf16.msra.mxu0 %v1701
    %2425 = vmatpush.bf16.msra.mxu0 %v1695
    %2426 = vmatpush.bf16.msra.mxu0 %v1689
    %2427 = vmatmul.bf16.gmra.mxu0 %v804
    %v2428 = vpop.f32.mrf.mxu0
    %v2429 = vadd.f32 %v813, %v2428
    %v2430 = vpop.f32.mrf.mxu0
    %2431 = vdwg.mxu0
    %2432 = vmatpush.bf16.msra.mxu0 %v1779
    %2433 = vmatpush.bf16.msra.mxu0 %v1773
    %2434 = vmatpush.bf16.msra.mxu0 %v1767
    %2435 = vmatpush.bf16.msra.mxu0 %v1761
    %2436 = vmatpush.bf16.msra.mxu0 %v1755
    %2437 = vmatpush.bf16.msra.mxu0 %v1749
    %2438 = vmatpush.bf16.msra.mxu0 %v1743
    %2439 = vmatpush.bf16.msra.mxu0 %v1737
    %2440 = vmatmul.bf16.gmra.mxu0 %v805
    %v2441 = vpop.f32.mrf.mxu0
    %v2442 = vadd.f32 %v2429, %v2441
    %v2443 = vpop.f32.mrf.mxu0
    %2444 = vdwg.mxu0
    %2445 = vmatpush.bf16.msra.mxu0 %v1827
    %2446 = vmatpush.bf16.msra.mxu0 %v1821
    %2447 = vmatpush.bf16.msra.mxu0 %v1815
    %2448 = vmatpush.bf16.msra.mxu0 %v1809
    %2449 = vmatpush.bf16.msra.mxu0 %v1803
    %2450 = vmatpush.bf16.msra.mxu0 %v1797
    %2451 = vmatpush.bf16.msra.mxu0 %v1791
    %2452 = vmatpush.bf16.msra.mxu0 %v1785
    %2453 = vmatmul.bf16.gmra.mxu0 %v806
    %v2454 = vpop.f32.mrf.mxu0
    %v2455 = vadd.f32 %v2442, %v2454
    %v2456 = vpop.f32.mrf.mxu0
    %2457 = vdwg.mxu0
    %2458 = vmatpush.bf16.msra.mxu0 %v1875
    %2459 = vmatpush.bf16.msra.mxu0 %v1869
    %2460 = vmatpush.bf16.msra.mxu0 %v1863
    %2461 = vmatpush.bf16.msra.mxu0 %v1857
    %2462 = vmatpush.bf16.msra.mxu0 %v1851
    %2463 = vmatpush.bf16.msra.mxu0 %v1845
    %2464 = vmatpush.bf16.msra.mxu0 %v1839
    %2465 = vmatpush.bf16.msra.mxu0 %v1833
    %2466 = vmatmul.bf16.gmra.mxu0 %v807
    %v2467 = vpop.f32.mrf.mxu0
    %v2468 = vadd.f32 %v2455, %v2467
    %v2469 = vpop.f32.mrf.mxu0
    %2470 = vdwg.mxu0
    %2471 = vmatpush.bf16.msra.mxu0 %v1923
    %2472 = vmatpush.bf16.msra.mxu0 %v1917
    %2473 = vmatpush.bf16.msra.mxu0 %v1911
    %2474 = vmatpush.bf16.msra.mxu0 %v1905
    %2475 = vmatpush.bf16.msra.mxu0 %v1899
    %2476 = vmatpush.bf16.msra.mxu0 %v1893
    %2477 = vmatpush.bf16.msra.mxu0 %v1887
    %2478 = vmatpush.bf16.msra.mxu0 %v1881
    %2479 = vmatmul.bf16.gmra.mxu0 %v808
    %v2480 = vpop.f32.mrf.mxu0
    %v2481 = vadd.f32 %v2468, %v2480
    %v2482 = vpop.f32.mrf.mxu0
    %2483 = vdwg.mxu0
    %2484 = vmatpush.bf16.msra.mxu0 %v1971
    %2485 = vmatpush.bf16.msra.mxu0 %v1965
    %2486 = vmatpush.bf16.msra.mxu0 %v1959
    %2487 = vmatpush.bf16.msra.mxu0 %v1953
    %2488 = vmatpush.bf16.msra.mxu0 %v1947
    %2489 = vmatpush.bf16.msra.mxu0 %v1941
    %2490 = vmatpush.bf16.msra.mxu0 %v1935
    %2491 = vmatpush.bf16.msra.mxu0 %v1929
    %2492 = vmatmul.bf16.gmra.mxu0 %v809
    %v2493 = vpop.f32.mrf.mxu0
    %v2494 = vadd.f32 %v2481, %v2493
    %v2495 = vpop.f32.mrf.mxu0
    %2496 = vdwg.mxu0
    %2497 = vmatpush.bf16.msra.mxu0 %v1732
    %2498 = vmatpush.bf16.msra.mxu0 %v1726
    %2499 = vmatpush.bf16.msra.mxu0 %v1720
    %2500 = vmatpush.bf16.msra.mxu0 %v1714
    %2501 = vmatpush.bf16.msra.mxu0 %v1708
    %2502 = vmatpush.bf16.msra.mxu0 %v1702
    %2503 = vmatpush.bf16.msra.mxu0 %v1696
    %2504 = vmatpush.bf16.msra.mxu0 %v1690
    %2505 = vmatmul.bf16.gmra.mxu0 %v804
    %v2506 = vpop.f32.mrf.mxu0
    %v2507 = vadd.f32 %v814, %v2506
    %v2508 = vpop.f32.mrf.mxu0
    %2509 = vdwg.mxu0
    %2510 = vmatpush.bf16.msra.mxu0 %v1780
    %2511 = vmatpush.bf16.msra.mxu0 %v1774
    %2512 = vmatpush.bf16.msra.mxu0 %v1768
    %2513 = vmatpush.bf16.msra.mxu0 %v1762
    %2514 = vmatpush.bf16.msra.mxu0 %v1756
    %2515 = vmatpush.bf16.msra.mxu0 %v1750
    %2516 = vmatpush.bf16.msra.mxu0 %v1744
    %2517 = vmatpush.bf16.msra.mxu0 %v1738
    %2518 = vmatmul.bf16.gmra.mxu0 %v805
    %v2519 = vpop.f32.mrf.mxu0
    %v2520 = vadd.f32 %v2507, %v2519
    %v2521 = vpop.f32.mrf.mxu0
    %2522 = vdwg.mxu0
    %2523 = vmatpush.bf16.msra.mxu0 %v1828
    %2524 = vmatpush.bf16.msra.mxu0 %v1822
    %2525 = vmatpush.bf16.msra.mxu0 %v1816
    %2526 = vmatpush.bf16.msra.mxu0 %v1810
    %2527 = vmatpush.bf16.msra.mxu0 %v1804
    %2528 = vmatpush.bf16.msra.mxu0 %v1798
    %2529 = vmatpush.bf16.msra.mxu0 %v1792
    %2530 = vmatpush.bf16.msra.mxu0 %v1786
    %2531 = vmatmul.bf16.gmra.mxu0 %v806
    %v2532 = vpop.f32.mrf.mxu0
    %v2533 = vadd.f32 %v2520, %v2532
    %v2534 = vpop.f32.mrf.mxu0
    %2535 = vdwg.mxu0
    %2536 = vmatpush.bf16.msra.mxu0 %v1876
    %2537 = vmatpush.bf16.msra.mxu0 %v1870
    %2538 = vmatpush.bf16.msra.mxu0 %v1864
    %2539 = vmatpush.bf16.msra.mxu0 %v1858
    %2540 = vmatpush.bf16.msra.mxu0 %v1852
    %2541 = vmatpush.bf16.msra.mxu0 %v1846
    %2542 = vmatpush.bf16.msra.mxu0 %v1840
    %2543 = vmatpush.bf16.msra.mxu0 %v1834
    %2544 = vmatmul.bf16.gmra.mxu0 %v807
    %v2545 = vpop.f32.mrf.mxu0
    %v2546 = vadd.f32 %v2533, %v2545
    %v2547 = vpop.f32.mrf.mxu0
    %2548 = vdwg.mxu0
    %2549 = vmatpush.bf16.msra.mxu0 %v1924
    %2550 = vmatpush.bf16.msra.mxu0 %v1918
    %2551 = vmatpush.bf16.msra.mxu0 %v1912
    %2552 = vmatpush.bf16.msra.mxu0 %v1906
    %2553 = vmatpush.bf16.msra.mxu0 %v1900
    %2554 = vmatpush.bf16.msra.mxu0 %v1894
    %2555 = vmatpush.bf16.msra.mxu0 %v1888
    %2556 = vmatpush.bf16.msra.mxu0 %v1882
    %2557 = vmatmul.bf16.gmra.mxu0 %v808
    %v2558 = vpop.f32.mrf.mxu0
    %v2559 = vadd.f32 %v2546, %v2558
    %v2560 = vpop.f32.mrf.mxu0
    %2561 = vdwg.mxu0
    %2562 = vmatpush.bf16.msra.mxu0 %v1972
    %2563 = vmatpush.bf16.msra.mxu0 %v1966
    %2564 = vmatpush.bf16.msra.mxu0 %v1960
    %2565 = vmatpush.bf16.msra.mxu0 %v1954
    %2566 = vmatpush.bf16.msra.mxu0 %v1948
    %2567 = vmatpush.bf16.msra.mxu0 %v1942
    %2568 = vmatpush.bf16.msra.mxu0 %v1936
    %2569 = vmatpush.bf16.msra.mxu0 %v1930
    %2570 = vmatmul.bf16.gmra.mxu0 %v809
    %v2571 = vpop.f32.mrf.mxu0
    %v2572 = vadd.f32 %v2559, %v2571
    %v2573 = vpop.f32.mrf.mxu0
    %2574 = vdwg.mxu0
    %2575 = vmatpush.bf16.msra.mxu0 %v1733
    %2576 = vmatpush.bf16.msra.mxu0 %v1727
    %2577 = vmatpush.bf16.msra.mxu0 %v1721
    %2578 = vmatpush.bf16.msra.mxu0 %v1715
    %2579 = vmatpush.bf16.msra.mxu0 %v1709
    %2580 = vmatpush.bf16.msra.mxu0 %v1703
    %2581 = vmatpush.bf16.msra.mxu0 %v1697
    %2582 = vmatpush.bf16.msra.mxu0 %v1691
    %2583 = vmatmul.bf16.gmra.mxu0 %v804
    %v2584 = vpop.f32.mrf.mxu0
    %v2585 = vadd.f32 %v815, %v2584
    %v2586 = vpop.f32.mrf.mxu0
    %2587 = vdwg.mxu0
    %2588 = vmatpush.bf16.msra.mxu0 %v1781
    %2589 = vmatpush.bf16.msra.mxu0 %v1775
    %2590 = vmatpush.bf16.msra.mxu0 %v1769
    %2591 = vmatpush.bf16.msra.mxu0 %v1763
    %2592 = vmatpush.bf16.msra.mxu0 %v1757
    %2593 = vmatpush.bf16.msra.mxu0 %v1751
    %2594 = vmatpush.bf16.msra.mxu0 %v1745
    %2595 = vmatpush.bf16.msra.mxu0 %v1739
    %2596 = vmatmul.bf16.gmra.mxu0 %v805
    %v2597 = vpop.f32.mrf.mxu0
    %v2598 = vadd.f32 %v2585, %v2597
    %v2599 = vpop.f32.mrf.mxu0
    %2600 = vdwg.mxu0
    %2601 = vmatpush.bf16.msra.mxu0 %v1829
    %2602 = vmatpush.bf16.msra.mxu0 %v1823
    %2603 = vmatpush.bf16.msra.mxu0 %v1817
    %2604 = vmatpush.bf16.msra.mxu0 %v1811
    %2605 = vmatpush.bf16.msra.mxu0 %v1805
    %2606 = vmatpush.bf16.msra.mxu0 %v1799
    %2607 = vmatpush.bf16.msra.mxu0 %v1793
    %2608 = vmatpush.bf16.msra.mxu0 %v1787
    %2609 = vmatmul.bf16.gmra.mxu0 %v806
    %v2610 = vpop.f32.mrf.mxu0
    %v2611 = vadd.f32 %v2598, %v2610
    %v2612 = vpop.f32.mrf.mxu0
    %2613 = vdwg.mxu0
    %2614 = vmatpush.bf16.msra.mxu0 %v1877
    %2615 = vmatpush.bf16.msra.mxu0 %v1871
    %2616 = vmatpush.bf16.msra.mxu0 %v1865
    %2617 = vmatpush.bf16.msra.mxu0 %v1859
    %2618 = vmatpush.bf16.msra.mxu0 %v1853
    %2619 = vmatpush.bf16.msra.mxu0 %v1847
    %2620 = vmatpush.bf16.msra.mxu0 %v1841
    %2621 = vmatpush.bf16.msra.mxu0 %v1835
    %2622 = vmatmul.bf16.gmra.mxu0 %v807
    %v2623 = vpop.f32.mrf.mxu0
    %v2624 = vadd.f32 %v2611, %v2623
    %v2625 = vpop.f32.mrf.mxu0
    %2626 = vdwg.mxu0
    %2627 = vmatpush.bf16.msra.mxu0 %v1925
    %2628 = vmatpush.bf16.msra.mxu0 %v1919
    %2629 = vmatpush.bf16.msra.mxu0 %v1913
    %2630 = vmatpush.bf16.msra.mxu0 %v1907
    %2631 = vmatpush.bf16.msra.mxu0 %v1901
    %2632 = vmatpush.bf16.msra.mxu0 %v1895
    %2633 = vmatpush.bf16.msra.mxu0 %v1889
    %2634 = vmatpush.bf16.msra.mxu0 %v1883
    %2635 = vmatmul.bf16.gmra.mxu0 %v808
    %v2636 = vpop.f32.mrf.mxu0
    %v2637 = vadd.f32 %v2624, %v2636
    %v2638 = vpop.f32.mrf.mxu0
    %2639 = vdwg.mxu0
    %2640 = vmatpush.bf16.msra.mxu0 %v1973
    %2641 = vmatpush.bf16.msra.mxu0 %v1967
    %2642 = vmatpush.bf16.msra.mxu0 %v1961
    %2643 = vmatpush.bf16.msra.mxu0 %v1955
    %2644 = vmatpush.bf16.msra.mxu0 %v1949
    %2645 = vmatpush.bf16.msra.mxu0 %v1943
    %2646 = vmatpush.bf16.msra.mxu0 %v1937
    %2647 = vmatpush.bf16.msra.mxu0 %v1931
    %2648 = vmatmul.bf16.gmra.mxu0 %v809
    %v2649 = vpop.f32.mrf.mxu0
    %v2650 = vadd.f32 %v2637, %v2649
    %v2651 = vpop.f32.mrf.mxu0
    %2652 = vdwg.mxu0
    %2653 = vmatpush.bf16.msra.mxu0 %v1734
    %2654 = vmatpush.bf16.msra.mxu0 %v1728
    %2655 = vmatpush.bf16.msra.mxu0 %v1722
    %2656 = vmatpush.bf16.msra.mxu0 %v1716
    %2657 = vmatpush.bf16.msra.mxu0 %v1710
    %2658 = vmatpush.bf16.msra.mxu0 %v1704
    %2659 = vmatpush.bf16.msra.mxu0 %v1698
    %2660 = vmatpush.bf16.msra.mxu0 %v1692
    %2661 = vmatmul.bf16.gmra.mxu0 %v804
    %v2662 = vpop.f32.mrf.mxu0
    %v2663 = vadd.f32 %v816, %v2662
    %v2664 = vpop.f32.mrf.mxu0
    %2665 = vdwg.mxu0
    %2666 = vmatpush.bf16.msra.mxu0 %v1782
    %2667 = vmatpush.bf16.msra.mxu0 %v1776
    %2668 = vmatpush.bf16.msra.mxu0 %v1770
    %2669 = vmatpush.bf16.msra.mxu0 %v1764
    %2670 = vmatpush.bf16.msra.mxu0 %v1758
    %2671 = vmatpush.bf16.msra.mxu0 %v1752
    %2672 = vmatpush.bf16.msra.mxu0 %v1746
    %2673 = vmatpush.bf16.msra.mxu0 %v1740
    %2674 = vmatmul.bf16.gmra.mxu0 %v805
    %v2675 = vpop.f32.mrf.mxu0
    %v2676 = vadd.f32 %v2663, %v2675
    %v2677 = vpop.f32.mrf.mxu0
    %2678 = vdwg.mxu0
    %2679 = vmatpush.bf16.msra.mxu0 %v1830
    %2680 = vmatpush.bf16.msra.mxu0 %v1824
    %2681 = vmatpush.bf16.msra.mxu0 %v1818
    %2682 = vmatpush.bf16.msra.mxu0 %v1812
    %2683 = vmatpush.bf16.msra.mxu0 %v1806
    %2684 = vmatpush.bf16.msra.mxu0 %v1800
    %2685 = vmatpush.bf16.msra.mxu0 %v1794
    %2686 = vmatpush.bf16.msra.mxu0 %v1788
    %2687 = vmatmul.bf16.gmra.mxu0 %v806
    %v2688 = vpop.f32.mrf.mxu0
    %v2689 = vadd.f32 %v2676, %v2688
    %v2690 = vpop.f32.mrf.mxu0
    %2691 = vdwg.mxu0
    %2692 = vmatpush.bf16.msra.mxu0 %v1878
    %2693 = vmatpush.bf16.msra.mxu0 %v1872
    %2694 = vmatpush.bf16.msra.mxu0 %v1866
    %2695 = vmatpush.bf16.msra.mxu0 %v1860
    %2696 = vmatpush.bf16.msra.mxu0 %v1854
    %2697 = vmatpush.bf16.msra.mxu0 %v1848
    %2698 = vmatpush.bf16.msra.mxu0 %v1842
    %2699 = vmatpush.bf16.msra.mxu0 %v1836
    %2700 = vmatmul.bf16.gmra.mxu0 %v807
    %v2701 = vpop.f32.mrf.mxu0
    %v2702 = vadd.f32 %v2689, %v2701
    %v2703 = vpop.f32.mrf.mxu0
    %2704 = vdwg.mxu0
    %2705 = vmatpush.bf16.msra.mxu0 %v1926
    %2706 = vmatpush.bf16.msra.mxu0 %v1920
    %2707 = vmatpush.bf16.msra.mxu0 %v1914
    %2708 = vmatpush.bf16.msra.mxu0 %v1908
    %2709 = vmatpush.bf16.msra.mxu0 %v1902
    %2710 = vmatpush.bf16.msra.mxu0 %v1896
    %2711 = vmatpush.bf16.msra.mxu0 %v1890
    %2712 = vmatpush.bf16.msra.mxu0 %v1884
    %2713 = vmatmul.bf16.gmra.mxu0 %v808
    %v2714 = vpop.f32.mrf.mxu0
    %v2715 = vadd.f32 %v2702, %v2714
    %v2716 = vpop.f32.mrf.mxu0
    %2717 = vdwg.mxu0
    %2718 = vmatpush.bf16.msra.mxu0 %v1974
    %2719 = vmatpush.bf16.msra.mxu0 %v1968
    %2720 = vmatpush.bf16.msra.mxu0 %v1962
    %2721 = vmatpush.bf16.msra.mxu0 %v1956
    %2722 = vmatpush.bf16.msra.mxu0 %v1950
    %2723 = vmatpush.bf16.msra.mxu0 %v1944
    %2724 = vmatpush.bf16.msra.mxu0 %v1938
    %2725 = vmatpush.bf16.msra.mxu0 %v1932
    %2726 = vmatmul.bf16.gmra.mxu0 %v809
    %v2727 = vpop.f32.mrf.mxu0
    %v2728 = vadd.f32 %v2715, %v2727
    %v2729 = vpop.f32.mrf.mxu0
    %2730 = vdwg.mxu0
    %v2731 = vmax.f32 %v2338, 0.0
    %v2732 = vmax.f32 %v2416, 0.0
    %v2733 = vmax.f32 %v2494, 0.0
    %v2734 = vmax.f32 %v2572, 0.0
    %v2735 = vmax.f32 %v2650, 0.0
    %v2736 = vmax.f32 %v2728, 0.0
    %v2737 = vld [vmem:[#allocation11] sm:$0xff]
    %v2738 = vld [vmem:[#allocation11 + $0x8] sm:$0xff]
    %v2739 = vld [vmem:[#allocation11 + $0x10] sm:$0xff]
    %v2740 = vld [vmem:[#allocation11 + $0x18] sm:$0xff]
    %v2741 = vld [vmem:[#allocation11 + $0x20] sm:$0xff]
    %v2742 = vld [vmem:[#allocation11 + $0x28] sm:$0xff]
    %v2743 = vld [vmem:[#allocation11 + $0x30] sm:$0xff]
    %v2744 = vld [vmem:[#allocation11 + $0x38] sm:$0xff]
    %v2745 = vld [vmem:[#allocation11 + $0x40] sm:$0xff]
    %v2746 = vld [vmem:[#allocation11 + $0x48] sm:$0xff]
    %v2747 = vld [vmem:[#allocation11 + $0x50] sm:$0xff]
    %v2748 = vld [vmem:[#allocation11 + $0x58] sm:$0xff]
    %v2749 = vld [vmem:[#allocation11 + $0x60] sm:$0xff]
    %v2750 = vld [vmem:[#allocation11 + $0x68] sm:$0xff]
    %v2751 = vld [vmem:[#allocation11 + $0x70] sm:$0xff]
    %v2752 = vld [vmem:[#allocation11 + $0x78] sm:$0xff]
    %v2753 = vld [vmem:[#allocation11 + $0x80] sm:$0xff]
    %v2754 = vld [vmem:[#allocation11 + $0x88] sm:$0xff]
    %v2755 = vld [vmem:[#allocation11 + $0x90] sm:$0xff]
    %v2756 = vld [vmem:[#allocation11 + $0x98] sm:$0xff]
    %v2757 = vld [vmem:[#allocation11 + $0xa0] sm:$0xff]
    %v2758 = vld [vmem:[#allocation11 + $0xa8] sm:$0xff]
    %v2759 = vld [vmem:[#allocation11 + $0xb0] sm:$0xff]
    %v2760 = vld [vmem:[#allocation11 + $0xb8] sm:$0xff]
    %v2761 = vld [vmem:[#allocation11 + $0xc0] sm:$0xff]
    %v2762 = vld [vmem:[#allocation11 + $0xc8] sm:$0xff]
    %v2763 = vld [vmem:[#allocation11 + $0xd0] sm:$0xff]
    %v2764 = vld [vmem:[#allocation11 + $0xd8] sm:$0xff]
    %v2765 = vld [vmem:[#allocation11 + $0xe0] sm:$0xff]
    %v2766 = vld [vmem:[#allocation11 + $0xe8] sm:$0xff]
    %v2767 = vld [vmem:[#allocation11 + $0xf0] sm:$0xff]
    %v2768 = vld [vmem:[#allocation11 + $0xf8] sm:$0xff]
    %v2769 = vld [vmem:[#allocation11 + $0x100] sm:$0xff]
    %v2770 = vld [vmem:[#allocation11 + $0x108] sm:$0xff]
    %v2771 = vld [vmem:[#allocation11 + $0x110] sm:$0xff]
    %v2772 = vld [vmem:[#allocation11 + $0x118] sm:$0xff]
    %v2773 = vld [vmem:[#allocation11 + $0x120] sm:$0xff]
    %v2774 = vld [vmem:[#allocation11 + $0x128] sm:$0xff]
    %v2775 = vld [vmem:[#allocation11 + $0x130] sm:$0xff]
    %v2776 = vld [vmem:[#allocation11 + $0x138] sm:$0xff]
    %v2777 = vld [vmem:[#allocation11 + $0x140] sm:$0xff]
    %v2778 = vld [vmem:[#allocation11 + $0x148] sm:$0xff]
    %v2779 = vld [vmem:[#allocation11 + $0x150] sm:$0xff]
    %v2780 = vld [vmem:[#allocation11 + $0x158] sm:$0xff]
    %v2781 = vld [vmem:[#allocation11 + $0x160] sm:$0xff]
    %v2782 = vld [vmem:[#allocation11 + $0x168] sm:$0xff]
    %v2783 = vld [vmem:[#allocation11 + $0x170] sm:$0xff]
    %v2784 = vld [vmem:[#allocation11 + $0x178] sm:$0xff]
    %v2785 = vld [vmem:[#allocation11 + $0x180] sm:$0xff]
    %v2786 = vld [vmem:[#allocation11 + $0x188] sm:$0xff]
    %v2787 = vld [vmem:[#allocation11 + $0x190] sm:$0xff]
    %v2788 = vld [vmem:[#allocation11 + $0x198] sm:$0xff]
    %v2789 = vld [vmem:[#allocation11 + $0x1a0] sm:$0xff]
    %v2790 = vld [vmem:[#allocation11 + $0x1a8] sm:$0xff]
    %v2791 = vld [vmem:[#allocation11 + $0x1b0] sm:$0xff]
    %v2792 = vld [vmem:[#allocation11 + $0x1b8] sm:$0xff]
    %v2793 = vld [vmem:[#allocation11 + $0x1c0] sm:$0xff]
    %v2794 = vld [vmem:[#allocation11 + $0x1c8] sm:$0xff]
    %v2795 = vld [vmem:[#allocation11 + $0x1d0] sm:$0xff]
    %v2796 = vld [vmem:[#allocation11 + $0x1d8] sm:$0xff]
    %v2797 = vld [vmem:[#allocation11 + $0x1e0] sm:$0xff]
    %v2798 = vld [vmem:[#allocation11 + $0x1e8] sm:$0xff]
    %v2799 = vld [vmem:[#allocation11 + $0x1f0] sm:$0xff]
    %v2800 = vld [vmem:[#allocation11 + $0x1f8] sm:$0xff]
    %v2801 = vld [vmem:[#allocation11 + $0x200] sm:$0xff]
    %v2802 = vld [vmem:[#allocation11 + $0x208] sm:$0xff]
    %v2803 = vld [vmem:[#allocation11 + $0x210] sm:$0xff]
    %v2804 = vld [vmem:[#allocation11 + $0x218] sm:$0xff]
    %v2805 = vld [vmem:[#allocation11 + $0x220] sm:$0xff]
    %v2806 = vld [vmem:[#allocation11 + $0x228] sm:$0xff]
    %v2807 = vld [vmem:[#allocation11 + $0x230] sm:$0xff]
    %v2808 = vld [vmem:[#allocation11 + $0x238] sm:$0xff]
    %v2809 = vld [vmem:[#allocation11 + $0x240] sm:$0xff]
    %v2810 = vld [vmem:[#allocation11 + $0x248] sm:$0xff]
    %v2811 = vld [vmem:[#allocation11 + $0x250] sm:$0xff]
    %v2812 = vld [vmem:[#allocation11 + $0x258] sm:$0xff]
    %v2813 = vld [vmem:[#allocation11 + $0x260] sm:$0xff]
    %v2814 = vld [vmem:[#allocation11 + $0x268] sm:$0xff]
    %v2815 = vld [vmem:[#allocation11 + $0x270] sm:$0xff]
    %v2816 = vld [vmem:[#allocation11 + $0x278] sm:$0xff]
    %v2817 = vld [vmem:[#allocation11 + $0x280] sm:$0xff]
    %v2818 = vld [vmem:[#allocation11 + $0x288] sm:$0xff]
    %v2819 = vld [vmem:[#allocation11 + $0x290] sm:$0xff]
    %v2820 = vld [vmem:[#allocation11 + $0x298] sm:$0xff]
    %v2821 = vld [vmem:[#allocation11 + $0x2a0] sm:$0xff]
    %v2822 = vld [vmem:[#allocation11 + $0x2a8] sm:$0xff]
    %v2823 = vld [vmem:[#allocation11 + $0x2b0] sm:$0xff]
    %v2824 = vld [vmem:[#allocation11 + $0x2b8] sm:$0xff]
    %v2825 = vld [vmem:[#allocation11 + $0x2c0] sm:$0xff]
    %v2826 = vld [vmem:[#allocation11 + $0x2c8] sm:$0xff]
    %v2827 = vld [vmem:[#allocation11 + $0x2d0] sm:$0xff]
    %v2828 = vld [vmem:[#allocation11 + $0x2d8] sm:$0xff]
    %v2829 = vld [vmem:[#allocation11 + $0x2e0] sm:$0xff]
    %v2830 = vld [vmem:[#allocation11 + $0x2e8] sm:$0xff]
    %v2831 = vld [vmem:[#allocation11 + $0x2f0] sm:$0xff]
    %v2832 = vld [vmem:[#allocation11 + $0x2f8] sm:$0xff]
    %v2833 = vld [vmem:[#allocation11 + $0x300] sm:$0xff]
    %v2834 = vld [vmem:[#allocation11 + $0x308] sm:$0xff]
    %v2835 = vld [vmem:[#allocation11 + $0x310] sm:$0xff]
    %v2836 = vld [vmem:[#allocation11 + $0x318] sm:$0xff]
    %v2837 = vld [vmem:[#allocation11 + $0x320] sm:$0xff]
    %v2838 = vld [vmem:[#allocation11 + $0x328] sm:$0xff]
    %v2839 = vld [vmem:[#allocation11 + $0x330] sm:$0xff]
    %v2840 = vld [vmem:[#allocation11 + $0x338] sm:$0xff]
    %v2841 = vld [vmem:[#allocation11 + $0x340] sm:$0xff]
    %v2842 = vld [vmem:[#allocation11 + $0x348] sm:$0xff]
    %v2843 = vld [vmem:[#allocation11 + $0x350] sm:$0xff]
    %v2844 = vld [vmem:[#allocation11 + $0x358] sm:$0xff]
    %v2845 = vld [vmem:[#allocation11 + $0x360] sm:$0xff]
    %v2846 = vld [vmem:[#allocation11 + $0x368] sm:$0xff]
    %v2847 = vld [vmem:[#allocation11 + $0x370] sm:$0xff]
    %v2848 = vld [vmem:[#allocation11 + $0x378] sm:$0xff]
    %v2849 = vld [vmem:[#allocation11 + $0x380] sm:$0xff]
    %v2850 = vld [vmem:[#allocation11 + $0x388] sm:$0xff]
    %v2851 = vld [vmem:[#allocation11 + $0x390] sm:$0xff]
    %v2852 = vld [vmem:[#allocation11 + $0x398] sm:$0xff]
    %v2853 = vld [vmem:[#allocation11 + $0x3a0] sm:$0xff]
    %v2854 = vld [vmem:[#allocation11 + $0x3a8] sm:$0xff]
    %v2855 = vld [vmem:[#allocation11 + $0x3b0] sm:$0xff]
    %v2856 = vld [vmem:[#allocation11 + $0x3b8] sm:$0xff]
    %v2857 = vld [vmem:[#allocation11 + $0x3c0] sm:$0xff]
    %v2858 = vld [vmem:[#allocation11 + $0x3c8] sm:$0xff]
    %v2859 = vld [vmem:[#allocation11 + $0x3d0] sm:$0xff]
    %v2860 = vld [vmem:[#allocation11 + $0x3d8] sm:$0xff]
    %v2861 = vld [vmem:[#allocation11 + $0x3e0] sm:$0xff]
    %v2862 = vld [vmem:[#allocation11 + $0x3e8] sm:$0xff]
    %v2863 = vld [vmem:[#allocation11 + $0x3f0] sm:$0xff]
    %v2864 = vld [vmem:[#allocation11 + $0x3f8] sm:$0xff]
    %v2865 = vld [vmem:[#allocation11 + $0x400] sm:$0xff]
    %v2866 = vld [vmem:[#allocation11 + $0x408] sm:$0xff]
    %v2867 = vld [vmem:[#allocation11 + $0x410] sm:$0xff]
    %v2868 = vld [vmem:[#allocation11 + $0x418] sm:$0xff]
    %v2869 = vld [vmem:[#allocation11 + $0x420] sm:$0xff]
    %v2870 = vld [vmem:[#allocation11 + $0x428] sm:$0xff]
    %v2871 = vld [vmem:[#allocation11 + $0x430] sm:$0xff]
    %v2872 = vld [vmem:[#allocation11 + $0x438] sm:$0xff]
    %v2873 = vld [vmem:[#allocation11 + $0x440] sm:$0xff]
    %v2874 = vld [vmem:[#allocation11 + $0x448] sm:$0xff]
    %v2875 = vld [vmem:[#allocation11 + $0x450] sm:$0xff]
    %v2876 = vld [vmem:[#allocation11 + $0x458] sm:$0xff]
    %v2877 = vld [vmem:[#allocation11 + $0x460] sm:$0xff]
    %v2878 = vld [vmem:[#allocation11 + $0x468] sm:$0xff]
    %v2879 = vld [vmem:[#allocation11 + $0x470] sm:$0xff]
    %v2880 = vld [vmem:[#allocation11 + $0x478] sm:$0xff]
    %v2881 = vld [vmem:[#allocation11 + $0x480] sm:$0xff]
    %v2882 = vld [vmem:[#allocation11 + $0x488] sm:$0xff]
    %v2883 = vld [vmem:[#allocation11 + $0x490] sm:$0xff]
    %v2884 = vld [vmem:[#allocation11 + $0x498] sm:$0xff]
    %v2885 = vld [vmem:[#allocation11 + $0x4a0] sm:$0xff]
    %v2886 = vld [vmem:[#allocation11 + $0x4a8] sm:$0xff]
    %v2887 = vld [vmem:[#allocation11 + $0x4b0] sm:$0xff]
    %v2888 = vld [vmem:[#allocation11 + $0x4b8] sm:$0xff]
    %v2889 = vld [vmem:[#allocation11 + $0x4c0] sm:$0xff]
    %v2890 = vld [vmem:[#allocation11 + $0x4c8] sm:$0xff]
    %v2891 = vld [vmem:[#allocation11 + $0x4d0] sm:$0xff]
    %v2892 = vld [vmem:[#allocation11 + $0x4d8] sm:$0xff]
    %v2893 = vld [vmem:[#allocation11 + $0x4e0] sm:$0xff]
    %v2894 = vld [vmem:[#allocation11 + $0x4e8] sm:$0xff]
    %v2895 = vld [vmem:[#allocation11 + $0x4f0] sm:$0xff]
    %v2896 = vld [vmem:[#allocation11 + $0x4f8] sm:$0xff]
    %v2897 = vld [vmem:[#allocation11 + $0x500] sm:$0xff]
    %v2898 = vld [vmem:[#allocation11 + $0x508] sm:$0xff]
    %v2899 = vld [vmem:[#allocation11 + $0x510] sm:$0xff]
    %v2900 = vld [vmem:[#allocation11 + $0x518] sm:$0xff]
    %v2901 = vld [vmem:[#allocation11 + $0x520] sm:$0xff]
    %v2902 = vld [vmem:[#allocation11 + $0x528] sm:$0xff]
    %v2903 = vld [vmem:[#allocation11 + $0x530] sm:$0xff]
    %v2904 = vld [vmem:[#allocation11 + $0x538] sm:$0xff]
    %v2905 = vld [vmem:[#allocation11 + $0x540] sm:$0xff]
    %v2906 = vld [vmem:[#allocation11 + $0x548] sm:$0xff]
    %v2907 = vld [vmem:[#allocation11 + $0x550] sm:$0xff]
    %v2908 = vld [vmem:[#allocation11 + $0x558] sm:$0xff]
    %v2909 = vld [vmem:[#allocation11 + $0x560] sm:$0xff]
    %v2910 = vld [vmem:[#allocation11 + $0x568] sm:$0xff]
    %v2911 = vld [vmem:[#allocation11 + $0x570] sm:$0xff]
    %v2912 = vld [vmem:[#allocation11 + $0x578] sm:$0xff]
    %v2913 = vld [vmem:[#allocation11 + $0x580] sm:$0xff]
    %v2914 = vld [vmem:[#allocation11 + $0x588] sm:$0xff]
    %v2915 = vld [vmem:[#allocation11 + $0x590] sm:$0xff]
    %v2916 = vld [vmem:[#allocation11 + $0x598] sm:$0xff]
    %v2917 = vld [vmem:[#allocation11 + $0x5a0] sm:$0xff]
    %v2918 = vld [vmem:[#allocation11 + $0x5a8] sm:$0xff]
    %v2919 = vld [vmem:[#allocation11 + $0x5b0] sm:$0xff]
    %v2920 = vld [vmem:[#allocation11 + $0x5b8] sm:$0xff]
    %v2921 = vld [vmem:[#allocation11 + $0x5c0] sm:$0xff]
    %v2922 = vld [vmem:[#allocation11 + $0x5c8] sm:$0xff]
    %v2923 = vld [vmem:[#allocation11 + $0x5d0] sm:$0xff]
    %v2924 = vld [vmem:[#allocation11 + $0x5d8] sm:$0xff]
    %v2925 = vld [vmem:[#allocation11 + $0x5e0] sm:$0xff]
    %v2926 = vld [vmem:[#allocation11 + $0x5e8] sm:$0xff]
    %v2927 = vld [vmem:[#allocation11 + $0x5f0] sm:$0xff]
    %v2928 = vld [vmem:[#allocation11 + $0x5f8] sm:$0xff]
    %v2929 = vld [vmem:[#allocation11 + $0x600] sm:$0xff]
    %v2930 = vld [vmem:[#allocation11 + $0x608] sm:$0xff]
    %v2931 = vld [vmem:[#allocation11 + $0x610] sm:$0xff]
    %v2932 = vld [vmem:[#allocation11 + $0x618] sm:$0xff]
    %v2933 = vld [vmem:[#allocation11 + $0x620] sm:$0xff]
    %v2934 = vld [vmem:[#allocation11 + $0x628] sm:$0xff]
    %v2935 = vld [vmem:[#allocation11 + $0x630] sm:$0xff]
    %v2936 = vld [vmem:[#allocation11 + $0x638] sm:$0xff]
    %v2937 = vld [vmem:[#allocation11 + $0x640] sm:$0xff]
    %v2938 = vld [vmem:[#allocation11 + $0x648] sm:$0xff]
    %v2939 = vld [vmem:[#allocation11 + $0x650] sm:$0xff]
    %v2940 = vld [vmem:[#allocation11 + $0x658] sm:$0xff]
    %v2941 = vld [vmem:[#allocation11 + $0x660] sm:$0xff]
    %v2942 = vld [vmem:[#allocation11 + $0x668] sm:$0xff]
    %v2943 = vld [vmem:[#allocation11 + $0x670] sm:$0xff]
    %v2944 = vld [vmem:[#allocation11 + $0x678] sm:$0xff]
    %v2945 = vld [vmem:[#allocation11 + $0x680] sm:$0xff]
    %v2946 = vld [vmem:[#allocation11 + $0x688] sm:$0xff]
    %v2947 = vld [vmem:[#allocation11 + $0x690] sm:$0xff]
    %v2948 = vld [vmem:[#allocation11 + $0x698] sm:$0xff]
    %v2949 = vld [vmem:[#allocation11 + $0x6a0] sm:$0xff]
    %v2950 = vld [vmem:[#allocation11 + $0x6a8] sm:$0xff]
    %v2951 = vld [vmem:[#allocation11 + $0x6b0] sm:$0xff]
    %v2952 = vld [vmem:[#allocation11 + $0x6b8] sm:$0xff]
    %v2953 = vld [vmem:[#allocation11 + $0x6c0] sm:$0xff]
    %v2954 = vld [vmem:[#allocation11 + $0x6c8] sm:$0xff]
    %v2955 = vld [vmem:[#allocation11 + $0x6d0] sm:$0xff]
    %v2956 = vld [vmem:[#allocation11 + $0x6d8] sm:$0xff]
    %v2957 = vld [vmem:[#allocation11 + $0x6e0] sm:$0xff]
    %v2958 = vld [vmem:[#allocation11 + $0x6e8] sm:$0xff]
    %v2959 = vld [vmem:[#allocation11 + $0x6f0] sm:$0xff]
    %v2960 = vld [vmem:[#allocation11 + $0x6f8] sm:$0xff]
    %v2961 = vld [vmem:[#allocation11 + $0x700] sm:$0xff]
    %v2962 = vld [vmem:[#allocation11 + $0x708] sm:$0xff]
    %v2963 = vld [vmem:[#allocation11 + $0x710] sm:$0xff]
    %v2964 = vld [vmem:[#allocation11 + $0x718] sm:$0xff]
    %v2965 = vld [vmem:[#allocation11 + $0x720] sm:$0xff]
    %v2966 = vld [vmem:[#allocation11 + $0x728] sm:$0xff]
    %v2967 = vld [vmem:[#allocation11 + $0x730] sm:$0xff]
    %v2968 = vld [vmem:[#allocation11 + $0x738] sm:$0xff]
    %v2969 = vld [vmem:[#allocation11 + $0x740] sm:$0xff]
    %v2970 = vld [vmem:[#allocation11 + $0x748] sm:$0xff]
    %v2971 = vld [vmem:[#allocation11 + $0x750] sm:$0xff]
    %v2972 = vld [vmem:[#allocation11 + $0x758] sm:$0xff]
    %v2973 = vld [vmem:[#allocation11 + $0x760] sm:$0xff]
    %v2974 = vld [vmem:[#allocation11 + $0x768] sm:$0xff]
    %v2975 = vld [vmem:[#allocation11 + $0x770] sm:$0xff]
    %v2976 = vld [vmem:[#allocation11 + $0x778] sm:$0xff]
    %v2977 = vld [vmem:[#allocation11 + $0x780] sm:$0xff]
    %v2978 = vld [vmem:[#allocation11 + $0x788] sm:$0xff]
    %v2979 = vld [vmem:[#allocation11 + $0x790] sm:$0xff]
    %v2980 = vld [vmem:[#allocation11 + $0x798] sm:$0xff]
    %v2981 = vld [vmem:[#allocation11 + $0x7a0] sm:$0xff]
    %v2982 = vld [vmem:[#allocation11 + $0x7a8] sm:$0xff]
    %v2983 = vld [vmem:[#allocation11 + $0x7b0] sm:$0xff]
    %v2984 = vld [vmem:[#allocation11 + $0x7b8] sm:$0xff]
    %v2985 = vld [vmem:[#allocation11 + $0x7c0] sm:$0xff]
    %v2986 = vld [vmem:[#allocation11 + $0x7c8] sm:$0xff]
    %v2987 = vld [vmem:[#allocation11 + $0x7d0] sm:$0xff]
    %v2988 = vld [vmem:[#allocation11 + $0x7d8] sm:$0xff]
    %v2989 = vld [vmem:[#allocation11 + $0x7e0] sm:$0xff]
    %v2990 = vld [vmem:[#allocation11 + $0x7e8] sm:$0xff]
    %v2991 = vld [vmem:[#allocation11 + $0x7f0] sm:$0xff]
    %v2992 = vld [vmem:[#allocation11 + $0x7f8] sm:$0xff]
    %v2993 = vld [vmem:[#allocation11 + $0x800] sm:$0xff]
    %v2994 = vld [vmem:[#allocation11 + $0x808] sm:$0xff]
    %v2995 = vld [vmem:[#allocation11 + $0x810] sm:$0xff]
    %v2996 = vld [vmem:[#allocation11 + $0x818] sm:$0xff]
    %v2997 = vld [vmem:[#allocation11 + $0x820] sm:$0xff]
    %v2998 = vld [vmem:[#allocation11 + $0x828] sm:$0xff]
    %v2999 = vld [vmem:[#allocation11 + $0x830] sm:$0xff]
    %v3000 = vld [vmem:[#allocation11 + $0x838] sm:$0xff]
    %v3001 = vld [vmem:[#allocation11 + $0x840] sm:$0xff]
    %v3002 = vld [vmem:[#allocation11 + $0x848] sm:$0xff]
    %v3003 = vld [vmem:[#allocation11 + $0x850] sm:$0xff]
    %v3004 = vld [vmem:[#allocation11 + $0x858] sm:$0xff]
    %v3005 = vld [vmem:[#allocation11 + $0x860] sm:$0xff]
    %v3006 = vld [vmem:[#allocation11 + $0x868] sm:$0xff]
    %v3007 = vld [vmem:[#allocation11 + $0x870] sm:$0xff]
    %v3008 = vld [vmem:[#allocation11 + $0x878] sm:$0xff]
    %v3009 = vld [vmem:[#allocation11 + $0x880] sm:$0xff]
    %v3010 = vld [vmem:[#allocation11 + $0x888] sm:$0xff]
    %v3011 = vld [vmem:[#allocation11 + $0x890] sm:$0xff]
    %v3012 = vld [vmem:[#allocation11 + $0x898] sm:$0xff]
    %v3013 = vld [vmem:[#allocation11 + $0x8a0] sm:$0xff]
    %v3014 = vld [vmem:[#allocation11 + $0x8a8] sm:$0xff]
    %v3015 = vld [vmem:[#allocation11 + $0x8b0] sm:$0xff]
    %v3016 = vld [vmem:[#allocation11 + $0x8b8] sm:$0xff]
    %v3017 = vld [vmem:[#allocation11 + $0x8c0] sm:$0xff]
    %v3018 = vld [vmem:[#allocation11 + $0x8c8] sm:$0xff]
    %v3019 = vld [vmem:[#allocation11 + $0x8d0] sm:$0xff]
    %v3020 = vld [vmem:[#allocation11 + $0x8d8] sm:$0xff]
    %v3021 = vld [vmem:[#allocation11 + $0x8e0] sm:$0xff]
    %v3022 = vld [vmem:[#allocation11 + $0x8e8] sm:$0xff]
    %v3023 = vld [vmem:[#allocation11 + $0x8f0] sm:$0xff]
    %v3024 = vld [vmem:[#allocation11 + $0x8f8] sm:$0xff]
    %v3025 = vld [vmem:[#allocation13] sm:$0x3f]
    %v3026 = vpack.c.bf16 %v2731, %v2731
    %v3027 = vpack.c.bf16 %v2732, %v2732
    %v3028 = vpack.c.bf16 %v2733, %v2733
    %v3029 = vpack.c.bf16 %v2734, %v2734
    %v3030 = vpack.c.bf16 %v2735, %v2735
    %v3031 = vpack.c.bf16 %v2736, %v2736
    %v3033 = vperm.slane %v3025, 0
    %v3034 = vperm.slane %v3025, 1
    %v3035 = vperm.slane %v3025, 2
    %v3036 = vperm.slane %v3025, 3
    %v3037 = vperm.slane %v3025, 4
    %v3038 = vperm.slane %v3025, 5
    %v3333 = vunpack.c.l.b16 %v2737
    %v3334 = vunpack.c.h.b16 %v2737
    %v3335 = vunpack.c.l.b16 %v2738
    %v3336 = vunpack.c.h.b16 %v2738
    %v3337 = vunpack.c.l.b16 %v2739
    %v3338 = vunpack.c.h.b16 %v2739
    %v3339 = vunpack.c.l.b16 %v2740
    %v3340 = vunpack.c.h.b16 %v2740
    %v3341 = vunpack.c.l.b16 %v2741
    %v3342 = vunpack.c.h.b16 %v2741
    %v3343 = vunpack.c.l.b16 %v2742
    %v3344 = vunpack.c.h.b16 %v2742
    %v3345 = vunpack.c.l.b16 %v2743
    %v3346 = vunpack.c.h.b16 %v2743
    %v3347 = vunpack.c.l.b16 %v2744
    %v3348 = vunpack.c.h.b16 %v2744
    %v3349 = vunpack.c.l.b16 %v2745
    %v3350 = vunpack.c.h.b16 %v2745
    %v3351 = vunpack.c.l.b16 %v2746
    %v3352 = vunpack.c.h.b16 %v2746
    %v3353 = vunpack.c.l.b16 %v2747
    %v3354 = vunpack.c.h.b16 %v2747
    %v3355 = vunpack.c.l.b16 %v2748
    %v3356 = vunpack.c.h.b16 %v2748
    %v3357 = vunpack.c.l.b16 %v2749
    %v3358 = vunpack.c.h.b16 %v2749
    %v3359 = vunpack.c.l.b16 %v2750
    %v3360 = vunpack.c.h.b16 %v2750
    %v3361 = vunpack.c.l.b16 %v2751
    %v3362 = vunpack.c.h.b16 %v2751
    %v3363 = vunpack.c.l.b16 %v2752
    %v3364 = vunpack.c.h.b16 %v2752
    %v3365 = vunpack.c.l.b16 %v2753
    %v3366 = vunpack.c.h.b16 %v2753
    %v3367 = vunpack.c.l.b16 %v2754
    %v3368 = vunpack.c.h.b16 %v2754
    %v3369 = vunpack.c.l.b16 %v2755
    %v3370 = vunpack.c.h.b16 %v2755
    %v3371 = vunpack.c.l.b16 %v2756
    %v3372 = vunpack.c.h.b16 %v2756
    %v3373 = vunpack.c.l.b16 %v2757
    %v3374 = vunpack.c.h.b16 %v2757
    %v3375 = vunpack.c.l.b16 %v2758
    %v3376 = vunpack.c.h.b16 %v2758
    %v3377 = vunpack.c.l.b16 %v2759
    %v3378 = vunpack.c.h.b16 %v2759
    %v3379 = vunpack.c.l.b16 %v2760
    %v3380 = vunpack.c.h.b16 %v2760
    %v3381 = vunpack.c.l.b16 %v2761
    %v3382 = vunpack.c.h.b16 %v2761
    %v3383 = vunpack.c.l.b16 %v2762
    %v3384 = vunpack.c.h.b16 %v2762
    %v3385 = vunpack.c.l.b16 %v2763
    %v3386 = vunpack.c.h.b16 %v2763
    %v3387 = vunpack.c.l.b16 %v2764
    %v3388 = vunpack.c.h.b16 %v2764
    %v3389 = vunpack.c.l.b16 %v2765
    %v3390 = vunpack.c.h.b16 %v2765
    %v3391 = vunpack.c.l.b16 %v2766
    %v3392 = vunpack.c.h.b16 %v2766
    %v3393 = vunpack.c.l.b16 %v2767
    %v3394 = vunpack.c.h.b16 %v2767
    %v3395 = vunpack.c.l.b16 %v2768
    %v3396 = vunpack.c.h.b16 %v2768
    %v3397 = vunpack.c.l.b16 %v2769
    %v3398 = vunpack.c.h.b16 %v2769
    %v3399 = vunpack.c.l.b16 %v2770
    %v3400 = vunpack.c.h.b16 %v2770
    %v3401 = vunpack.c.l.b16 %v2771
    %v3402 = vunpack.c.h.b16 %v2771
    %v3403 = vunpack.c.l.b16 %v2772
    %v3404 = vunpack.c.h.b16 %v2772
    %v3405 = vunpack.c.l.b16 %v2773
    %v3406 = vunpack.c.h.b16 %v2773
    %v3407 = vunpack.c.l.b16 %v2774
    %v3408 = vunpack.c.h.b16 %v2774
    %v3409 = vunpack.c.l.b16 %v2775
    %v3410 = vunpack.c.h.b16 %v2775
    %v3411 = vunpack.c.l.b16 %v2776
    %v3412 = vunpack.c.h.b16 %v2776
    %v3413 = vunpack.c.l.b16 %v2777
    %v3414 = vunpack.c.h.b16 %v2777
    %v3415 = vunpack.c.l.b16 %v2778
    %v3416 = vunpack.c.h.b16 %v2778
    %v3417 = vunpack.c.l.b16 %v2779
    %v3418 = vunpack.c.h.b16 %v2779
    %v3419 = vunpack.c.l.b16 %v2780
    %v3420 = vunpack.c.h.b16 %v2780
    %v3421 = vunpack.c.l.b16 %v2781
    %v3422 = vunpack.c.h.b16 %v2781
    %v3423 = vunpack.c.l.b16 %v2782
    %v3424 = vunpack.c.h.b16 %v2782
    %v3425 = vunpack.c.l.b16 %v2783
    %v3426 = vunpack.c.h.b16 %v2783
    %v3427 = vunpack.c.l.b16 %v2784
    %v3428 = vunpack.c.h.b16 %v2784
    %v3429 = vunpack.c.l.b16 %v2785
    %v3430 = vunpack.c.h.b16 %v2785
    %v3431 = vunpack.c.l.b16 %v2786
    %v3432 = vunpack.c.h.b16 %v2786
    %v3433 = vunpack.c.l.b16 %v2787
    %v3434 = vunpack.c.h.b16 %v2787
    %v3435 = vunpack.c.l.b16 %v2788
    %v3436 = vunpack.c.h.b16 %v2788
    %v3437 = vunpack.c.l.b16 %v2789
    %v3438 = vunpack.c.h.b16 %v2789
    %v3439 = vunpack.c.l.b16 %v2790
    %v3440 = vunpack.c.h.b16 %v2790
    %v3441 = vunpack.c.l.b16 %v2791
    %v3442 = vunpack.c.h.b16 %v2791
    %v3443 = vunpack.c.l.b16 %v2792
    %v3444 = vunpack.c.h.b16 %v2792
    %v3445 = vunpack.c.l.b16 %v2793
    %v3446 = vunpack.c.h.b16 %v2793
    %v3447 = vunpack.c.l.b16 %v2794
    %v3448 = vunpack.c.h.b16 %v2794
    %v3449 = vunpack.c.l.b16 %v2795
    %v3450 = vunpack.c.h.b16 %v2795
    %v3451 = vunpack.c.l.b16 %v2796
    %v3452 = vunpack.c.h.b16 %v2796
    %v3453 = vunpack.c.l.b16 %v2797
    %v3454 = vunpack.c.h.b16 %v2797
    %v3455 = vunpack.c.l.b16 %v2798
    %v3456 = vunpack.c.h.b16 %v2798
    %v3457 = vunpack.c.l.b16 %v2799
    %v3458 = vunpack.c.h.b16 %v2799
    %v3459 = vunpack.c.l.b16 %v2800
    %v3460 = vunpack.c.h.b16 %v2800
    %v3461 = vunpack.c.l.b16 %v2801
    %v3462 = vunpack.c.h.b16 %v2801
    %v3463 = vunpack.c.l.b16 %v2802
    %v3464 = vunpack.c.h.b16 %v2802
    %v3465 = vunpack.c.l.b16 %v2803
    %v3466 = vunpack.c.h.b16 %v2803
    %v3467 = vunpack.c.l.b16 %v2804
    %v3468 = vunpack.c.h.b16 %v2804
    %v3469 = vunpack.c.l.b16 %v2805
    %v3470 = vunpack.c.h.b16 %v2805
    %v3471 = vunpack.c.l.b16 %v2806
    %v3472 = vunpack.c.h.b16 %v2806
    %v3473 = vunpack.c.l.b16 %v2807
    %v3474 = vunpack.c.h.b16 %v2807
    %v3475 = vunpack.c.l.b16 %v2808
    %v3476 = vunpack.c.h.b16 %v2808
    %v3477 = vunpack.c.l.b16 %v2809
    %v3478 = vunpack.c.h.b16 %v2809
    %v3479 = vunpack.c.l.b16 %v2810
    %v3480 = vunpack.c.h.b16 %v2810
    %v3481 = vunpack.c.l.b16 %v2811
    %v3482 = vunpack.c.h.b16 %v2811
    %v3483 = vunpack.c.l.b16 %v2812
    %v3484 = vunpack.c.h.b16 %v2812
    %v3485 = vunpack.c.l.b16 %v2813
    %v3486 = vunpack.c.h.b16 %v2813
    %v3487 = vunpack.c.l.b16 %v2814
    %v3488 = vunpack.c.h.b16 %v2814
    %v3489 = vunpack.c.l.b16 %v2815
    %v3490 = vunpack.c.h.b16 %v2815
    %v3491 = vunpack.c.l.b16 %v2816
    %v3492 = vunpack.c.h.b16 %v2816
    %v3493 = vunpack.c.l.b16 %v2817
    %v3494 = vunpack.c.h.b16 %v2817
    %v3495 = vunpack.c.l.b16 %v2818
    %v3496 = vunpack.c.h.b16 %v2818
    %v3497 = vunpack.c.l.b16 %v2819
    %v3498 = vunpack.c.h.b16 %v2819
    %v3499 = vunpack.c.l.b16 %v2820
    %v3500 = vunpack.c.h.b16 %v2820
    %v3501 = vunpack.c.l.b16 %v2821
    %v3502 = vunpack.c.h.b16 %v2821
    %v3503 = vunpack.c.l.b16 %v2822
    %v3504 = vunpack.c.h.b16 %v2822
    %v3505 = vunpack.c.l.b16 %v2823
    %v3506 = vunpack.c.h.b16 %v2823
    %v3507 = vunpack.c.l.b16 %v2824
    %v3508 = vunpack.c.h.b16 %v2824
    %v3509 = vunpack.c.l.b16 %v2825
    %v3510 = vunpack.c.h.b16 %v2825
    %v3511 = vunpack.c.l.b16 %v2826
    %v3512 = vunpack.c.h.b16 %v2826
    %v3513 = vunpack.c.l.b16 %v2827
    %v3514 = vunpack.c.h.b16 %v2827
    %v3515 = vunpack.c.l.b16 %v2828
    %v3516 = vunpack.c.h.b16 %v2828
    %v3517 = vunpack.c.l.b16 %v2829
    %v3518 = vunpack.c.h.b16 %v2829
    %v3519 = vunpack.c.l.b16 %v2830
    %v3520 = vunpack.c.h.b16 %v2830
    %v3521 = vunpack.c.l.b16 %v2831
    %v3522 = vunpack.c.h.b16 %v2831
    %v3523 = vunpack.c.l.b16 %v2832
    %v3524 = vunpack.c.h.b16 %v2832
    %v3525 = vunpack.c.l.b16 %v2833
    %v3526 = vunpack.c.h.b16 %v2833
    %v3527 = vunpack.c.l.b16 %v2834
    %v3528 = vunpack.c.h.b16 %v2834
    %v3529 = vunpack.c.l.b16 %v2835
    %v3530 = vunpack.c.h.b16 %v2835
    %v3531 = vunpack.c.l.b16 %v2836
    %v3532 = vunpack.c.h.b16 %v2836
    %v3533 = vunpack.c.l.b16 %v2837
    %v3534 = vunpack.c.h.b16 %v2837
    %v3535 = vunpack.c.l.b16 %v2838
    %v3536 = vunpack.c.h.b16 %v2838
    %v3537 = vunpack.c.l.b16 %v2839
    %v3538 = vunpack.c.h.b16 %v2839
    %v3539 = vunpack.c.l.b16 %v2840
    %v3540 = vunpack.c.h.b16 %v2840
    %v3541 = vunpack.c.l.b16 %v2841
    %v3542 = vunpack.c.h.b16 %v2841
    %v3543 = vunpack.c.l.b16 %v2842
    %v3544 = vunpack.c.h.b16 %v2842
    %v3545 = vunpack.c.l.b16 %v2843
    %v3546 = vunpack.c.h.b16 %v2843
    %v3547 = vunpack.c.l.b16 %v2844
    %v3548 = vunpack.c.h.b16 %v2844
    %v3549 = vunpack.c.l.b16 %v2845
    %v3550 = vunpack.c.h.b16 %v2845
    %v3551 = vunpack.c.l.b16 %v2846
    %v3552 = vunpack.c.h.b16 %v2846
    %v3553 = vunpack.c.l.b16 %v2847
    %v3554 = vunpack.c.h.b16 %v2847
    %v3555 = vunpack.c.l.b16 %v2848
    %v3556 = vunpack.c.h.b16 %v2848
    %v3557 = vunpack.c.l.b16 %v2849
    %v3558 = vunpack.c.h.b16 %v2849
    %v3559 = vunpack.c.l.b16 %v2850
    %v3560 = vunpack.c.h.b16 %v2850
    %v3561 = vunpack.c.l.b16 %v2851
    %v3562 = vunpack.c.h.b16 %v2851
    %v3563 = vunpack.c.l.b16 %v2852
    %v3564 = vunpack.c.h.b16 %v2852
    %v3565 = vunpack.c.l.b16 %v2853
    %v3566 = vunpack.c.h.b16 %v2853
    %v3567 = vunpack.c.l.b16 %v2854
    %v3568 = vunpack.c.h.b16 %v2854
    %v3569 = vunpack.c.l.b16 %v2855
    %v3570 = vunpack.c.h.b16 %v2855
    %v3571 = vunpack.c.l.b16 %v2856
    %v3572 = vunpack.c.h.b16 %v2856
    %v3573 = vunpack.c.l.b16 %v2857
    %v3574 = vunpack.c.h.b16 %v2857
    %v3575 = vunpack.c.l.b16 %v2858
    %v3576 = vunpack.c.h.b16 %v2858
    %v3577 = vunpack.c.l.b16 %v2859
    %v3578 = vunpack.c.h.b16 %v2859
    %v3579 = vunpack.c.l.b16 %v2860
    %v3580 = vunpack.c.h.b16 %v2860
    %v3581 = vunpack.c.l.b16 %v2861
    %v3582 = vunpack.c.h.b16 %v2861
    %v3583 = vunpack.c.l.b16 %v2862
    %v3584 = vunpack.c.h.b16 %v2862
    %v3585 = vunpack.c.l.b16 %v2863
    %v3586 = vunpack.c.h.b16 %v2863
    %v3587 = vunpack.c.l.b16 %v2864
    %v3588 = vunpack.c.h.b16 %v2864
    %v3589 = vunpack.c.l.b16 %v2865
    %v3590 = vunpack.c.h.b16 %v2865
    %v3591 = vunpack.c.l.b16 %v2866
    %v3592 = vunpack.c.h.b16 %v2866
    %v3593 = vunpack.c.l.b16 %v2867
    %v3594 = vunpack.c.h.b16 %v2867
    %v3595 = vunpack.c.l.b16 %v2868
    %v3596 = vunpack.c.h.b16 %v2868
    %v3597 = vunpack.c.l.b16 %v2869
    %v3598 = vunpack.c.h.b16 %v2869
    %v3599 = vunpack.c.l.b16 %v2870
    %v3600 = vunpack.c.h.b16 %v2870
    %v3601 = vunpack.c.l.b16 %v2871
    %v3602 = vunpack.c.h.b16 %v2871
    %v3603 = vunpack.c.l.b16 %v2872
    %v3604 = vunpack.c.h.b16 %v2872
    %v3605 = vunpack.c.l.b16 %v2873
    %v3606 = vunpack.c.h.b16 %v2873
    %v3607 = vunpack.c.l.b16 %v2874
    %v3608 = vunpack.c.h.b16 %v2874
    %v3609 = vunpack.c.l.b16 %v2875
    %v3610 = vunpack.c.h.b16 %v2875
    %v3611 = vunpack.c.l.b16 %v2876
    %v3612 = vunpack.c.h.b16 %v2876
    %v3613 = vunpack.c.l.b16 %v2877
    %v3614 = vunpack.c.h.b16 %v2877
    %v3615 = vunpack.c.l.b16 %v2878
    %v3616 = vunpack.c.h.b16 %v2878
    %v3617 = vunpack.c.l.b16 %v2879
    %v3618 = vunpack.c.h.b16 %v2879
    %v3619 = vunpack.c.l.b16 %v2880
    %v3620 = vunpack.c.h.b16 %v2880
    %v3621 = vunpack.c.l.b16 %v2881
    %v3622 = vunpack.c.h.b16 %v2881
    %v3623 = vunpack.c.l.b16 %v2882
    %v3624 = vunpack.c.h.b16 %v2882
    %v3625 = vunpack.c.l.b16 %v2883
    %v3626 = vunpack.c.h.b16 %v2883
    %v3627 = vunpack.c.l.b16 %v2884
    %v3628 = vunpack.c.h.b16 %v2884
    %v3629 = vunpack.c.l.b16 %v2885
    %v3630 = vunpack.c.h.b16 %v2885
    %v3631 = vunpack.c.l.b16 %v2886
    %v3632 = vunpack.c.h.b16 %v2886
    %v3633 = vunpack.c.l.b16 %v2887
    %v3634 = vunpack.c.h.b16 %v2887
    %v3635 = vunpack.c.l.b16 %v2888
    %v3636 = vunpack.c.h.b16 %v2888
    %v3637 = vunpack.c.l.b16 %v2889
    %v3638 = vunpack.c.h.b16 %v2889
    %v3639 = vunpack.c.l.b16 %v2890
    %v3640 = vunpack.c.h.b16 %v2890
    %v3641 = vunpack.c.l.b16 %v2891
    %v3642 = vunpack.c.h.b16 %v2891
    %v3643 = vunpack.c.l.b16 %v2892
    %v3644 = vunpack.c.h.b16 %v2892
    %v3645 = vunpack.c.l.b16 %v2893
    %v3646 = vunpack.c.h.b16 %v2893
    %v3647 = vunpack.c.l.b16 %v2894
    %v3648 = vunpack.c.h.b16 %v2894
    %v3649 = vunpack.c.l.b16 %v2895
    %v3650 = vunpack.c.h.b16 %v2895
    %v3651 = vunpack.c.l.b16 %v2896
    %v3652 = vunpack.c.h.b16 %v2896
    %v3653 = vunpack.c.l.b16 %v2897
    %v3654 = vunpack.c.h.b16 %v2897
    %v3655 = vunpack.c.l.b16 %v2898
    %v3656 = vunpack.c.h.b16 %v2898
    %v3657 = vunpack.c.l.b16 %v2899
    %v3658 = vunpack.c.h.b16 %v2899
    %v3659 = vunpack.c.l.b16 %v2900
    %v3660 = vunpack.c.h.b16 %v2900
    %v3661 = vunpack.c.l.b16 %v2901
    %v3662 = vunpack.c.h.b16 %v2901
    %v3663 = vunpack.c.l.b16 %v2902
    %v3664 = vunpack.c.h.b16 %v2902
    %v3665 = vunpack.c.l.b16 %v2903
    %v3666 = vunpack.c.h.b16 %v2903
    %v3667 = vunpack.c.l.b16 %v2904
    %v3668 = vunpack.c.h.b16 %v2904
    %v3669 = vunpack.c.l.b16 %v2905
    %v3670 = vunpack.c.h.b16 %v2905
    %v3671 = vunpack.c.l.b16 %v2906
    %v3672 = vunpack.c.h.b16 %v2906
    %v3673 = vunpack.c.l.b16 %v2907
    %v3674 = vunpack.c.h.b16 %v2907
    %v3675 = vunpack.c.l.b16 %v2908
    %v3676 = vunpack.c.h.b16 %v2908
    %v3677 = vunpack.c.l.b16 %v2909
    %v3678 = vunpack.c.h.b16 %v2909
    %v3679 = vunpack.c.l.b16 %v2910
    %v3680 = vunpack.c.h.b16 %v2910
    %v3681 = vunpack.c.l.b16 %v2911
    %v3682 = vunpack.c.h.b16 %v2911
    %v3683 = vunpack.c.l.b16 %v2912
    %v3684 = vunpack.c.h.b16 %v2912
    %v3685 = vunpack.c.l.b16 %v2913
    %v3686 = vunpack.c.h.b16 %v2913
    %v3687 = vunpack.c.l.b16 %v2914
    %v3688 = vunpack.c.h.b16 %v2914
    %v3689 = vunpack.c.l.b16 %v2915
    %v3690 = vunpack.c.h.b16 %v2915
    %v3691 = vunpack.c.l.b16 %v2916
    %v3692 = vunpack.c.h.b16 %v2916
    %v3693 = vunpack.c.l.b16 %v2917
    %v3694 = vunpack.c.h.b16 %v2917
    %v3695 = vunpack.c.l.b16 %v2918
    %v3696 = vunpack.c.h.b16 %v2918
    %v3697 = vunpack.c.l.b16 %v2919
    %v3698 = vunpack.c.h.b16 %v2919
    %v3699 = vunpack.c.l.b16 %v2920
    %v3700 = vunpack.c.h.b16 %v2920
    %v3701 = vunpack.c.l.b16 %v2921
    %v3702 = vunpack.c.h.b16 %v2921
    %v3703 = vunpack.c.l.b16 %v2922
    %v3704 = vunpack.c.h.b16 %v2922
    %v3705 = vunpack.c.l.b16 %v2923
    %v3706 = vunpack.c.h.b16 %v2923
    %v3707 = vunpack.c.l.b16 %v2924
    %v3708 = vunpack.c.h.b16 %v2924
    %v3709 = vunpack.c.l.b16 %v2925
    %v3710 = vunpack.c.h.b16 %v2925
    %v3711 = vunpack.c.l.b16 %v2926
    %v3712 = vunpack.c.h.b16 %v2926
    %v3713 = vunpack.c.l.b16 %v2927
    %v3714 = vunpack.c.h.b16 %v2927
    %v3715 = vunpack.c.l.b16 %v2928
    %v3716 = vunpack.c.h.b16 %v2928
    %v3717 = vunpack.c.l.b16 %v2929
    %v3718 = vunpack.c.h.b16 %v2929
    %v3719 = vunpack.c.l.b16 %v2930
    %v3720 = vunpack.c.h.b16 %v2930
    %v3721 = vunpack.c.l.b16 %v2931
    %v3722 = vunpack.c.h.b16 %v2931
    %v3723 = vunpack.c.l.b16 %v2932
    %v3724 = vunpack.c.h.b16 %v2932
    %v3725 = vunpack.c.l.b16 %v2933
    %v3726 = vunpack.c.h.b16 %v2933
    %v3727 = vunpack.c.l.b16 %v2934
    %v3728 = vunpack.c.h.b16 %v2934
    %v3729 = vunpack.c.l.b16 %v2935
    %v3730 = vunpack.c.h.b16 %v2935
    %v3731 = vunpack.c.l.b16 %v2936
    %v3732 = vunpack.c.h.b16 %v2936
    %v3733 = vunpack.c.l.b16 %v2937
    %v3734 = vunpack.c.h.b16 %v2937
    %v3735 = vunpack.c.l.b16 %v2938
    %v3736 = vunpack.c.h.b16 %v2938
    %v3737 = vunpack.c.l.b16 %v2939
    %v3738 = vunpack.c.h.b16 %v2939
    %v3739 = vunpack.c.l.b16 %v2940
    %v3740 = vunpack.c.h.b16 %v2940
    %v3741 = vunpack.c.l.b16 %v2941
    %v3742 = vunpack.c.h.b16 %v2941
    %v3743 = vunpack.c.l.b16 %v2942
    %v3744 = vunpack.c.h.b16 %v2942
    %v3745 = vunpack.c.l.b16 %v2943
    %v3746 = vunpack.c.h.b16 %v2943
    %v3747 = vunpack.c.l.b16 %v2944
    %v3748 = vunpack.c.h.b16 %v2944
    %v3749 = vunpack.c.l.b16 %v2945
    %v3750 = vunpack.c.h.b16 %v2945
    %v3751 = vunpack.c.l.b16 %v2946
    %v3752 = vunpack.c.h.b16 %v2946
    %v3753 = vunpack.c.l.b16 %v2947
    %v3754 = vunpack.c.h.b16 %v2947
    %v3755 = vunpack.c.l.b16 %v2948
    %v3756 = vunpack.c.h.b16 %v2948
    %v3757 = vunpack.c.l.b16 %v2949
    %v3758 = vunpack.c.h.b16 %v2949
    %v3759 = vunpack.c.l.b16 %v2950
    %v3760 = vunpack.c.h.b16 %v2950
    %v3761 = vunpack.c.l.b16 %v2951
    %v3762 = vunpack.c.h.b16 %v2951
    %v3763 = vunpack.c.l.b16 %v2952
    %v3764 = vunpack.c.h.b16 %v2952
    %v3765 = vunpack.c.l.b16 %v2953
    %v3766 = vunpack.c.h.b16 %v2953
    %v3767 = vunpack.c.l.b16 %v2954
    %v3768 = vunpack.c.h.b16 %v2954
    %v3769 = vunpack.c.l.b16 %v2955
    %v3770 = vunpack.c.h.b16 %v2955
    %v3771 = vunpack.c.l.b16 %v2956
    %v3772 = vunpack.c.h.b16 %v2956
    %v3773 = vunpack.c.l.b16 %v2957
    %v3774 = vunpack.c.h.b16 %v2957
    %v3775 = vunpack.c.l.b16 %v2958
    %v3776 = vunpack.c.h.b16 %v2958
    %v3777 = vunpack.c.l.b16 %v2959
    %v3778 = vunpack.c.h.b16 %v2959
    %v3779 = vunpack.c.l.b16 %v2960
    %v3780 = vunpack.c.h.b16 %v2960
    %v3781 = vunpack.c.l.b16 %v2961
    %v3782 = vunpack.c.h.b16 %v2961
    %v3783 = vunpack.c.l.b16 %v2962
    %v3784 = vunpack.c.h.b16 %v2962
    %v3785 = vunpack.c.l.b16 %v2963
    %v3786 = vunpack.c.h.b16 %v2963
    %v3787 = vunpack.c.l.b16 %v2964
    %v3788 = vunpack.c.h.b16 %v2964
    %v3789 = vunpack.c.l.b16 %v2965
    %v3790 = vunpack.c.h.b16 %v2965
    %v3791 = vunpack.c.l.b16 %v2966
    %v3792 = vunpack.c.h.b16 %v2966
    %v3793 = vunpack.c.l.b16 %v2967
    %v3794 = vunpack.c.h.b16 %v2967
    %v3795 = vunpack.c.l.b16 %v2968
    %v3796 = vunpack.c.h.b16 %v2968
    %v3797 = vunpack.c.l.b16 %v2969
    %v3798 = vunpack.c.h.b16 %v2969
    %v3799 = vunpack.c.l.b16 %v2970
    %v3800 = vunpack.c.h.b16 %v2970
    %v3801 = vunpack.c.l.b16 %v2971
    %v3802 = vunpack.c.h.b16 %v2971
    %v3803 = vunpack.c.l.b16 %v2972
    %v3804 = vunpack.c.h.b16 %v2972
    %v3805 = vunpack.c.l.b16 %v2973
    %v3806 = vunpack.c.h.b16 %v2973
    %v3807 = vunpack.c.l.b16 %v2974
    %v3808 = vunpack.c.h.b16 %v2974
    %v3809 = vunpack.c.l.b16 %v2975
    %v3810 = vunpack.c.h.b16 %v2975
    %v3811 = vunpack.c.l.b16 %v2976
    %v3812 = vunpack.c.h.b16 %v2976
    %v3813 = vunpack.c.l.b16 %v2977
    %v3814 = vunpack.c.h.b16 %v2977
    %v3815 = vunpack.c.l.b16 %v2978
    %v3816 = vunpack.c.h.b16 %v2978
    %v3817 = vunpack.c.l.b16 %v2979
    %v3818 = vunpack.c.h.b16 %v2979
    %v3819 = vunpack.c.l.b16 %v2980
    %v3820 = vunpack.c.h.b16 %v2980
    %v3821 = vunpack.c.l.b16 %v2981
    %v3822 = vunpack.c.h.b16 %v2981
    %v3823 = vunpack.c.l.b16 %v2982
    %v3824 = vunpack.c.h.b16 %v2982
    %v3825 = vunpack.c.l.b16 %v2983
    %v3826 = vunpack.c.h.b16 %v2983
    %v3827 = vunpack.c.l.b16 %v2984
    %v3828 = vunpack.c.h.b16 %v2984
    %v3829 = vunpack.c.l.b16 %v2985
    %v3830 = vunpack.c.h.b16 %v2985
    %v3831 = vunpack.c.l.b16 %v2986
    %v3832 = vunpack.c.h.b16 %v2986
    %v3833 = vunpack.c.l.b16 %v2987
    %v3834 = vunpack.c.h.b16 %v2987
    %v3835 = vunpack.c.l.b16 %v2988
    %v3836 = vunpack.c.h.b16 %v2988
    %v3837 = vunpack.c.l.b16 %v2989
    %v3838 = vunpack.c.h.b16 %v2989
    %v3839 = vunpack.c.l.b16 %v2990
    %v3840 = vunpack.c.h.b16 %v2990
    %v3841 = vunpack.c.l.b16 %v2991
    %v3842 = vunpack.c.h.b16 %v2991
    %v3843 = vunpack.c.l.b16 %v2992
    %v3844 = vunpack.c.h.b16 %v2992
    %v3845 = vunpack.c.l.b16 %v2993
    %v3846 = vunpack.c.h.b16 %v2993
    %v3847 = vunpack.c.l.b16 %v2994
    %v3848 = vunpack.c.h.b16 %v2994
    %v3849 = vunpack.c.l.b16 %v2995
    %v3850 = vunpack.c.h.b16 %v2995
    %v3851 = vunpack.c.l.b16 %v2996
    %v3852 = vunpack.c.h.b16 %v2996
    %v3853 = vunpack.c.l.b16 %v2997
    %v3854 = vunpack.c.h.b16 %v2997
    %v3855 = vunpack.c.l.b16 %v2998
    %v3856 = vunpack.c.h.b16 %v2998
    %v3857 = vunpack.c.l.b16 %v2999
    %v3858 = vunpack.c.h.b16 %v2999
    %v3859 = vunpack.c.l.b16 %v3000
    %v3860 = vunpack.c.h.b16 %v3000
    %v3861 = vunpack.c.l.b16 %v3001
    %v3862 = vunpack.c.h.b16 %v3001
    %v3863 = vunpack.c.l.b16 %v3002
    %v3864 = vunpack.c.h.b16 %v3002
    %v3865 = vunpack.c.l.b16 %v3003
    %v3866 = vunpack.c.h.b16 %v3003
    %v3867 = vunpack.c.l.b16 %v3004
    %v3868 = vunpack.c.h.b16 %v3004
    %v3869 = vunpack.c.l.b16 %v3005
    %v3870 = vunpack.c.h.b16 %v3005
    %v3871 = vunpack.c.l.b16 %v3006
    %v3872 = vunpack.c.h.b16 %v3006
    %v3873 = vunpack.c.l.b16 %v3007
    %v3874 = vunpack.c.h.b16 %v3007
    %v3875 = vunpack.c.l.b16 %v3008
    %v3876 = vunpack.c.h.b16 %v3008
    %v3877 = vunpack.c.l.b16 %v3009
    %v3878 = vunpack.c.h.b16 %v3009
    %v3879 = vunpack.c.l.b16 %v3010
    %v3880 = vunpack.c.h.b16 %v3010
    %v3881 = vunpack.c.l.b16 %v3011
    %v3882 = vunpack.c.h.b16 %v3011
    %v3883 = vunpack.c.l.b16 %v3012
    %v3884 = vunpack.c.h.b16 %v3012
    %v3885 = vunpack.c.l.b16 %v3013
    %v3886 = vunpack.c.h.b16 %v3013
    %v3887 = vunpack.c.l.b16 %v3014
    %v3888 = vunpack.c.h.b16 %v3014
    %v3889 = vunpack.c.l.b16 %v3015
    %v3890 = vunpack.c.h.b16 %v3015
    %v3891 = vunpack.c.l.b16 %v3016
    %v3892 = vunpack.c.h.b16 %v3016
    %v3893 = vunpack.c.l.b16 %v3017
    %v3894 = vunpack.c.h.b16 %v3017
    %v3895 = vunpack.c.l.b16 %v3018
    %v3896 = vunpack.c.h.b16 %v3018
    %v3897 = vunpack.c.l.b16 %v3019
    %v3898 = vunpack.c.h.b16 %v3019
    %v3899 = vunpack.c.l.b16 %v3020
    %v3900 = vunpack.c.h.b16 %v3020
    %v3901 = vunpack.c.l.b16 %v3021
    %v3902 = vunpack.c.h.b16 %v3021
    %v3903 = vunpack.c.l.b16 %v3022
    %v3904 = vunpack.c.h.b16 %v3022
    %v3905 = vunpack.c.l.b16 %v3023
    %v3906 = vunpack.c.h.b16 %v3023
    %v3907 = vunpack.c.l.b16 %v3024
    %v3908 = vunpack.c.h.b16 %v3024
    %v3909 = vpack.c.b16 %v3339, %v3333
    %v3910 = vpack.c.b16 %v3340, %v3334
    %v3911 = vpack.c.b16 %v3341, %v3335
    %v3912 = vpack.c.b16 %v3342, %v3336
    %v3913 = vpack.c.b16 %v3343, %v3337
    %v3914 = vpack.c.b16 %v3344, %v3338
    %v3915 = vpack.c.b16 %v3351, %v3345
    %v3916 = vpack.c.b16 %v3352, %v3346
    %v3917 = vpack.c.b16 %v3353, %v3347
    %v3918 = vpack.c.b16 %v3354, %v3348
    %v3919 = vpack.c.b16 %v3355, %v3349
    %v3920 = vpack.c.b16 %v3356, %v3350
    %v3921 = vpack.c.b16 %v3363, %v3357
    %v3922 = vpack.c.b16 %v3364, %v3358
    %v3923 = vpack.c.b16 %v3365, %v3359
    %v3924 = vpack.c.b16 %v3366, %v3360
    %v3925 = vpack.c.b16 %v3367, %v3361
    %v3926 = vpack.c.b16 %v3368, %v3362
    %v3927 = vpack.c.b16 %v3375, %v3369
    %v3928 = vpack.c.b16 %v3376, %v3370
    %v3929 = vpack.c.b16 %v3377, %v3371
    %v3930 = vpack.c.b16 %v3378, %v3372
    %v3931 = vpack.c.b16 %v3379, %v3373
    %v3932 = vpack.c.b16 %v3380, %v3374
    %v3933 = vpack.c.b16 %v3387, %v3381
    %v3934 = vpack.c.b16 %v3388, %v3382
    %v3935 = vpack.c.b16 %v3389, %v3383
    %v3936 = vpack.c.b16 %v3390, %v3384
    %v3937 = vpack.c.b16 %v3391, %v3385
    %v3938 = vpack.c.b16 %v3392, %v3386
    %v3939 = vpack.c.b16 %v3399, %v3393
    %v3940 = vpack.c.b16 %v3400, %v3394
    %v3941 = vpack.c.b16 %v3401, %v3395
    %v3942 = vpack.c.b16 %v3402, %v3396
    %v3943 = vpack.c.b16 %v3403, %v3397
    %v3944 = vpack.c.b16 %v3404, %v3398
    %v3945 = vpack.c.b16 %v3411, %v3405
    %v3946 = vpack.c.b16 %v3412, %v3406
    %v3947 = vpack.c.b16 %v3413, %v3407
    %v3948 = vpack.c.b16 %v3414, %v3408
    %v3949 = vpack.c.b16 %v3415, %v3409
    %v3950 = vpack.c.b16 %v3416, %v3410
    %v3951 = vpack.c.b16 %v3423, %v3417
    %v3952 = vpack.c.b16 %v3424, %v3418
    %v3953 = vpack.c.b16 %v3425, %v3419
    %v3954 = vpack.c.b16 %v3426, %v3420
    %v3955 = vpack.c.b16 %v3427, %v3421
    %v3956 = vpack.c.b16 %v3428, %v3422
    %v3957 = vpack.c.b16 %v3435, %v3429
    %v3958 = vpack.c.b16 %v3436, %v3430
    %v3959 = vpack.c.b16 %v3437, %v3431
    %v3960 = vpack.c.b16 %v3438, %v3432
    %v3961 = vpack.c.b16 %v3439, %v3433
    %v3962 = vpack.c.b16 %v3440, %v3434
    %v3963 = vpack.c.b16 %v3447, %v3441
    %v3964 = vpack.c.b16 %v3448, %v3442
    %v3965 = vpack.c.b16 %v3449, %v3443
    %v3966 = vpack.c.b16 %v3450, %v3444
    %v3967 = vpack.c.b16 %v3451, %v3445
    %v3968 = vpack.c.b16 %v3452, %v3446
    %v3969 = vpack.c.b16 %v3459, %v3453
    %v3970 = vpack.c.b16 %v3460, %v3454
    %v3971 = vpack.c.b16 %v3461, %v3455
    %v3972 = vpack.c.b16 %v3462, %v3456
    %v3973 = vpack.c.b16 %v3463, %v3457
    %v3974 = vpack.c.b16 %v3464, %v3458
    %v3975 = vpack.c.b16 %v3471, %v3465
    %v3976 = vpack.c.b16 %v3472, %v3466
    %v3977 = vpack.c.b16 %v3473, %v3467
    %v3978 = vpack.c.b16 %v3474, %v3468
    %v3979 = vpack.c.b16 %v3475, %v3469
    %v3980 = vpack.c.b16 %v3476, %v3470
    %v3981 = vpack.c.b16 %v3483, %v3477
    %v3982 = vpack.c.b16 %v3484, %v3478
    %v3983 = vpack.c.b16 %v3485, %v3479
    %v3984 = vpack.c.b16 %v3486, %v3480
    %v3985 = vpack.c.b16 %v3487, %v3481
    %v3986 = vpack.c.b16 %v3488, %v3482
    %v3987 = vpack.c.b16 %v3495, %v3489
    %v3988 = vpack.c.b16 %v3496, %v3490
    %v3989 = vpack.c.b16 %v3497, %v3491
    %v3990 = vpack.c.b16 %v3498, %v3492
    %v3991 = vpack.c.b16 %v3499, %v3493
    %v3992 = vpack.c.b16 %v3500, %v3494
    %v3993 = vpack.c.b16 %v3507, %v3501
    %v3994 = vpack.c.b16 %v3508, %v3502
    %v3995 = vpack.c.b16 %v3509, %v3503
    %v3996 = vpack.c.b16 %v3510, %v3504
    %v3997 = vpack.c.b16 %v3511, %v3505
    %v3998 = vpack.c.b16 %v3512, %v3506
    %v3999 = vpack.c.b16 %v3519, %v3513
    %v4000 = vpack.c.b16 %v3520, %v3514
    %v4001 = vpack.c.b16 %v3521, %v3515
    %v4002 = vpack.c.b16 %v3522, %v3516
    %v4003 = vpack.c.b16 %v3523, %v3517
    %v4004 = vpack.c.b16 %v3524, %v3518
    %v4005 = vpack.c.b16 %v3531, %v3525
    %v4006 = vpack.c.b16 %v3532, %v3526
    %v4007 = vpack.c.b16 %v3533, %v3527
    %v4008 = vpack.c.b16 %v3534, %v3528
    %v4009 = vpack.c.b16 %v3535, %v3529
    %v4010 = vpack.c.b16 %v3536, %v3530
    %v4011 = vpack.c.b16 %v3543, %v3537
    %v4012 = vpack.c.b16 %v3544, %v3538
    %v4013 = vpack.c.b16 %v3545, %v3539
    %v4014 = vpack.c.b16 %v3546, %v3540
    %v4015 = vpack.c.b16 %v3547, %v3541
    %v4016 = vpack.c.b16 %v3548, %v3542
    %v4017 = vpack.c.b16 %v3555, %v3549
    %v4018 = vpack.c.b16 %v3556, %v3550
    %v4019 = vpack.c.b16 %v3557, %v3551
    %v4020 = vpack.c.b16 %v3558, %v3552
    %v4021 = vpack.c.b16 %v3559, %v3553
    %v4022 = vpack.c.b16 %v3560, %v3554
    %v4023 = vpack.c.b16 %v3567, %v3561
    %v4024 = vpack.c.b16 %v3568, %v3562
    %v4025 = vpack.c.b16 %v3569, %v3563
    %v4026 = vpack.c.b16 %v3570, %v3564
    %v4027 = vpack.c.b16 %v3571, %v3565
    %v4028 = vpack.c.b16 %v3572, %v3566
    %v4029 = vpack.c.b16 %v3579, %v3573
    %v4030 = vpack.c.b16 %v3580, %v3574
    %v4031 = vpack.c.b16 %v3581, %v3575
    %v4032 = vpack.c.b16 %v3582, %v3576
    %v4033 = vpack.c.b16 %v3583, %v3577
    %v4034 = vpack.c.b16 %v3584, %v3578
    %v4035 = vpack.c.b16 %v3591, %v3585
    %v4036 = vpack.c.b16 %v3592, %v3586
    %v4037 = vpack.c.b16 %v3593, %v3587
    %v4038 = vpack.c.b16 %v3594, %v3588
    %v4039 = vpack.c.b16 %v3595, %v3589
    %v4040 = vpack.c.b16 %v3596, %v3590
    %v4041 = vpack.c.b16 %v3603, %v3597
    %v4042 = vpack.c.b16 %v3604, %v3598
    %v4043 = vpack.c.b16 %v3605, %v3599
    %v4044 = vpack.c.b16 %v3606, %v3600
    %v4045 = vpack.c.b16 %v3607, %v3601
    %v4046 = vpack.c.b16 %v3608, %v3602
    %v4047 = vpack.c.b16 %v3615, %v3609
    %v4048 = vpack.c.b16 %v3616, %v3610
    %v4049 = vpack.c.b16 %v3617, %v3611
    %v4050 = vpack.c.b16 %v3618, %v3612
    %v4051 = vpack.c.b16 %v3619, %v3613
    %v4052 = vpack.c.b16 %v3620, %v3614
    %v4053 = vpack.c.b16 %v3627, %v3621
    %v4054 = vpack.c.b16 %v3628, %v3622
    %v4055 = vpack.c.b16 %v3629, %v3623
    %v4056 = vpack.c.b16 %v3630, %v3624
    %v4057 = vpack.c.b16 %v3631, %v3625
    %v4058 = vpack.c.b16 %v3632, %v3626
    %v4059 = vpack.c.b16 %v3639, %v3633
    %v4060 = vpack.c.b16 %v3640, %v3634
    %v4061 = vpack.c.b16 %v3641, %v3635
    %v4062 = vpack.c.b16 %v3642, %v3636
    %v4063 = vpack.c.b16 %v3643, %v3637
    %v4064 = vpack.c.b16 %v3644, %v3638
    %v4065 = vpack.c.b16 %v3651, %v3645
    %v4066 = vpack.c.b16 %v3652, %v3646
    %v4067 = vpack.c.b16 %v3653, %v3647
    %v4068 = vpack.c.b16 %v3654, %v3648
    %v4069 = vpack.c.b16 %v3655, %v3649
    %v4070 = vpack.c.b16 %v3656, %v3650
    %v4071 = vpack.c.b16 %v3663, %v3657
    %v4072 = vpack.c.b16 %v3664, %v3658
    %v4073 = vpack.c.b16 %v3665, %v3659
    %v4074 = vpack.c.b16 %v3666, %v3660
    %v4075 = vpack.c.b16 %v3667, %v3661
    %v4076 = vpack.c.b16 %v3668, %v3662
    %v4077 = vpack.c.b16 %v3675, %v3669
    %v4078 = vpack.c.b16 %v3676, %v3670
    %v4079 = vpack.c.b16 %v3677, %v3671
    %v4080 = vpack.c.b16 %v3678, %v3672
    %v4081 = vpack.c.b16 %v3679, %v3673
    %v4082 = vpack.c.b16 %v3680, %v3674
    %v4083 = vpack.c.b16 %v3687, %v3681
    %v4084 = vpack.c.b16 %v3688, %v3682
    %v4085 = vpack.c.b16 %v3689, %v3683
    %v4086 = vpack.c.b16 %v3690, %v3684
    %v4087 = vpack.c.b16 %v3691, %v3685
    %v4088 = vpack.c.b16 %v3692, %v3686
    %v4089 = vpack.c.b16 %v3699, %v3693
    %v4090 = vpack.c.b16 %v3700, %v3694
    %v4091 = vpack.c.b16 %v3701, %v3695
    %v4092 = vpack.c.b16 %v3702, %v3696
    %v4093 = vpack.c.b16 %v3703, %v3697
    %v4094 = vpack.c.b16 %v3704, %v3698
    %v4095 = vpack.c.b16 %v3711, %v3705
    %v4096 = vpack.c.b16 %v3712, %v3706
    %v4097 = vpack.c.b16 %v3713, %v3707
    %v4098 = vpack.c.b16 %v3714, %v3708
    %v4099 = vpack.c.b16 %v3715, %v3709
    %v4100 = vpack.c.b16 %v3716, %v3710
    %v4101 = vpack.c.b16 %v3723, %v3717
    %v4102 = vpack.c.b16 %v3724, %v3718
    %v4103 = vpack.c.b16 %v3725, %v3719
    %v4104 = vpack.c.b16 %v3726, %v3720
    %v4105 = vpack.c.b16 %v3727, %v3721
    %v4106 = vpack.c.b16 %v3728, %v3722
    %v4107 = vpack.c.b16 %v3735, %v3729
    %v4108 = vpack.c.b16 %v3736, %v3730
    %v4109 = vpack.c.b16 %v3737, %v3731
    %v4110 = vpack.c.b16 %v3738, %v3732
    %v4111 = vpack.c.b16 %v3739, %v3733
    %v4112 = vpack.c.b16 %v3740, %v3734
    %v4113 = vpack.c.b16 %v3747, %v3741
    %v4114 = vpack.c.b16 %v3748, %v3742
    %v4115 = vpack.c.b16 %v3749, %v3743
    %v4116 = vpack.c.b16 %v3750, %v3744
    %v4117 = vpack.c.b16 %v3751, %v3745
    %v4118 = vpack.c.b16 %v3752, %v3746
    %v4119 = vpack.c.b16 %v3759, %v3753
    %v4120 = vpack.c.b16 %v3760, %v3754
    %v4121 = vpack.c.b16 %v3761, %v3755
    %v4122 = vpack.c.b16 %v3762, %v3756
    %v4123 = vpack.c.b16 %v3763, %v3757
    %v4124 = vpack.c.b16 %v3764, %v3758
    %v4125 = vpack.c.b16 %v3771, %v3765
    %v4126 = vpack.c.b16 %v3772, %v3766
    %v4127 = vpack.c.b16 %v3773, %v3767
    %v4128 = vpack.c.b16 %v3774, %v3768
    %v4129 = vpack.c.b16 %v3775, %v3769
    %v4130 = vpack.c.b16 %v3776, %v3770
    %v4131 = vpack.c.b16 %v3783, %v3777
    %v4132 = vpack.c.b16 %v3784, %v3778
    %v4133 = vpack.c.b16 %v3785, %v3779
    %v4134 = vpack.c.b16 %v3786, %v3780
    %v4135 = vpack.c.b16 %v3787, %v3781
    %v4136 = vpack.c.b16 %v3788, %v3782
    %v4137 = vpack.c.b16 %v3795, %v3789
    %v4138 = vpack.c.b16 %v3796, %v3790
    %v4139 = vpack.c.b16 %v3797, %v3791
    %v4140 = vpack.c.b16 %v3798, %v3792
    %v4141 = vpack.c.b16 %v3799, %v3793
    %v4142 = vpack.c.b16 %v3800, %v3794
    %v4143 = vpack.c.b16 %v3807, %v3801
    %v4144 = vpack.c.b16 %v3808, %v3802
    %v4145 = vpack.c.b16 %v3809, %v3803
    %v4146 = vpack.c.b16 %v3810, %v3804
    %v4147 = vpack.c.b16 %v3811, %v3805
    %v4148 = vpack.c.b16 %v3812, %v3806
    %v4149 = vpack.c.b16 %v3819, %v3813
    %v4150 = vpack.c.b16 %v3820, %v3814
    %v4151 = vpack.c.b16 %v3821, %v3815
    %v4152 = vpack.c.b16 %v3822, %v3816
    %v4153 = vpack.c.b16 %v3823, %v3817
    %v4154 = vpack.c.b16 %v3824, %v3818
    %v4155 = vpack.c.b16 %v3831, %v3825
    %v4156 = vpack.c.b16 %v3832, %v3826
    %v4157 = vpack.c.b16 %v3833, %v3827
    %v4158 = vpack.c.b16 %v3834, %v3828
    %v4159 = vpack.c.b16 %v3835, %v3829
    %v4160 = vpack.c.b16 %v3836, %v3830
    %v4161 = vpack.c.b16 %v3843, %v3837
    %v4162 = vpack.c.b16 %v3844, %v3838
    %v4163 = vpack.c.b16 %v3845, %v3839
    %v4164 = vpack.c.b16 %v3846, %v3840
    %v4165 = vpack.c.b16 %v3847, %v3841
    %v4166 = vpack.c.b16 %v3848, %v3842
    %v4167 = vpack.c.b16 %v3855, %v3849
    %v4168 = vpack.c.b16 %v3856, %v3850
    %v4169 = vpack.c.b16 %v3857, %v3851
    %v4170 = vpack.c.b16 %v3858, %v3852
    %v4171 = vpack.c.b16 %v3859, %v3853
    %v4172 = vpack.c.b16 %v3860, %v3854
    %v4173 = vpack.c.b16 %v3867, %v3861
    %v4174 = vpack.c.b16 %v3868, %v3862
    %v4175 = vpack.c.b16 %v3869, %v3863
    %v4176 = vpack.c.b16 %v3870, %v3864
    %v4177 = vpack.c.b16 %v3871, %v3865
    %v4178 = vpack.c.b16 %v3872, %v3866
    %v4179 = vpack.c.b16 %v3879, %v3873
    %v4180 = vpack.c.b16 %v3880, %v3874
    %v4181 = vpack.c.b16 %v3881, %v3875
    %v4182 = vpack.c.b16 %v3882, %v3876
    %v4183 = vpack.c.b16 %v3883, %v3877
    %v4184 = vpack.c.b16 %v3884, %v3878
    %v4185 = vpack.c.b16 %v3891, %v3885
    %v4186 = vpack.c.b16 %v3892, %v3886
    %v4187 = vpack.c.b16 %v3893, %v3887
    %v4188 = vpack.c.b16 %v3894, %v3888
    %v4189 = vpack.c.b16 %v3895, %v3889
    %v4190 = vpack.c.b16 %v3896, %v3890
    %v4191 = vpack.c.b16 %v3903, %v3897
    %v4192 = vpack.c.b16 %v3904, %v3898
    %v4193 = vpack.c.b16 %v3905, %v3899
    %v4194 = vpack.c.b16 %v3906, %v3900
    %v4195 = vpack.c.b16 %v3907, %v3901
    %v4196 = vpack.c.b16 %v3908, %v3902
    %4485 = vmatpush.bf16.msra.mxu0 %v3951
    %4486 = vmatpush.bf16.msra.mxu0 %v3945
    %4487 = vmatpush.bf16.msra.mxu0 %v3939
    %4488 = vmatpush.bf16.msra.mxu0 %v3933
    %4489 = vmatpush.bf16.msra.mxu0 %v3927
    %4490 = vmatpush.bf16.msra.mxu0 %v3921
    %4491 = vmatpush.bf16.msra.mxu0 %v3915
    %4492 = vmatpush.bf16.msra.mxu0 %v3909
    %4493 = vmatmul.bf16.gmra.mxu0 %v3026
    %v4494 = vpop.f32.mrf.mxu0
    %v4495 = vadd.f32 %v3033, %v4494
    %v4496 = vpop.f32.mrf.mxu0
    %4497 = vdwg.mxu0
    %4498 = vmatpush.bf16.msra.mxu0 %v3999
    %4499 = vmatpush.bf16.msra.mxu0 %v3993
    %4500 = vmatpush.bf16.msra.mxu0 %v3987
    %4501 = vmatpush.bf16.msra.mxu0 %v3981
    %4502 = vmatpush.bf16.msra.mxu0 %v3975
    %4503 = vmatpush.bf16.msra.mxu0 %v3969
    %4504 = vmatpush.bf16.msra.mxu0 %v3963
    %4505 = vmatpush.bf16.msra.mxu0 %v3957
    %4506 = vmatmul.bf16.gmra.mxu0 %v3027
    %v4507 = vpop.f32.mrf.mxu0
    %v4508 = vadd.f32 %v4495, %v4507
    %v4509 = vpop.f32.mrf.mxu0
    %4510 = vdwg.mxu0
    %4511 = vmatpush.bf16.msra.mxu0 %v4047
    %4512 = vmatpush.bf16.msra.mxu0 %v4041
    %4513 = vmatpush.bf16.msra.mxu0 %v4035
    %4514 = vmatpush.bf16.msra.mxu0 %v4029
    %4515 = vmatpush.bf16.msra.mxu0 %v4023
    %4516 = vmatpush.bf16.msra.mxu0 %v4017
    %4517 = vmatpush.bf16.msra.mxu0 %v4011
    %4518 = vmatpush.bf16.msra.mxu0 %v4005
    %4519 = vmatmul.bf16.gmra.mxu0 %v3028
    %v4520 = vpop.f32.mrf.mxu0
    %v4521 = vadd.f32 %v4508, %v4520
    %v4522 = vpop.f32.mrf.mxu0
    %4523 = vdwg.mxu0
    %4524 = vmatpush.bf16.msra.mxu0 %v4095
    %4525 = vmatpush.bf16.msra.mxu0 %v4089
    %4526 = vmatpush.bf16.msra.mxu0 %v4083
    %4527 = vmatpush.bf16.msra.mxu0 %v4077
    %4528 = vmatpush.bf16.msra.mxu0 %v4071
    %4529 = vmatpush.bf16.msra.mxu0 %v4065
    %4530 = vmatpush.bf16.msra.mxu0 %v4059
    %4531 = vmatpush.bf16.msra.mxu0 %v4053
    %4532 = vmatmul.bf16.gmra.mxu0 %v3029
    %v4533 = vpop.f32.mrf.mxu0
    %v4534 = vadd.f32 %v4521, %v4533
    %v4535 = vpop.f32.mrf.mxu0
    %4536 = vdwg.mxu0
    %4537 = vmatpush.bf16.msra.mxu0 %v4143
    %4538 = vmatpush.bf16.msra.mxu0 %v4137
    %4539 = vmatpush.bf16.msra.mxu0 %v4131
    %4540 = vmatpush.bf16.msra.mxu0 %v4125
    %4541 = vmatpush.bf16.msra.mxu0 %v4119
    %4542 = vmatpush.bf16.msra.mxu0 %v4113
    %4543 = vmatpush.bf16.msra.mxu0 %v4107
    %4544 = vmatpush.bf16.msra.mxu0 %v4101
    %4545 = vmatmul.bf16.gmra.mxu0 %v3030
    %v4546 = vpop.f32.mrf.mxu0
    %v4547 = vadd.f32 %v4534, %v4546
    %v4548 = vpop.f32.mrf.mxu0
    %4549 = vdwg.mxu0
    %4550 = vmatpush.bf16.msra.mxu0 %v4191
    %4551 = vmatpush.bf16.msra.mxu0 %v4185
    %4552 = vmatpush.bf16.msra.mxu0 %v4179
    %4553 = vmatpush.bf16.msra.mxu0 %v4173
    %4554 = vmatpush.bf16.msra.mxu0 %v4167
    %4555 = vmatpush.bf16.msra.mxu0 %v4161
    %4556 = vmatpush.bf16.msra.mxu0 %v4155
    %4557 = vmatpush.bf16.msra.mxu0 %v4149
    %4558 = vmatmul.bf16.gmra.mxu0 %v3031
    %v4559 = vpop.f32.mrf.mxu0
    %v4560 = vadd.f32 %v4547, %v4559
    %v4561 = vpop.f32.mrf.mxu0
    %4562 = vdwg.mxu0
    %4563 = vmatpush.bf16.msra.mxu0 %v3952
    %4564 = vmatpush.bf16.msra.mxu0 %v3946
    %4565 = vmatpush.bf16.msra.mxu0 %v3940
    %4566 = vmatpush.bf16.msra.mxu0 %v3934
    %4567 = vmatpush.bf16.msra.mxu0 %v3928
    %4568 = vmatpush.bf16.msra.mxu0 %v3922
    %4569 = vmatpush.bf16.msra.mxu0 %v3916
    %4570 = vmatpush.bf16.msra.mxu0 %v3910
    %4571 = vmatmul.bf16.gmra.mxu0 %v3026
    %v4572 = vpop.f32.mrf.mxu0
    %v4573 = vadd.f32 %v3034, %v4572
    %v4574 = vpop.f32.mrf.mxu0
    %4575 = vdwg.mxu0
    %4576 = vmatpush.bf16.msra.mxu0 %v4000
    %4577 = vmatpush.bf16.msra.mxu0 %v3994
    %4578 = vmatpush.bf16.msra.mxu0 %v3988
    %4579 = vmatpush.bf16.msra.mxu0 %v3982
    %4580 = vmatpush.bf16.msra.mxu0 %v3976
    %4581 = vmatpush.bf16.msra.mxu0 %v3970
    %4582 = vmatpush.bf16.msra.mxu0 %v3964
    %4583 = vmatpush.bf16.msra.mxu0 %v3958
    %4584 = vmatmul.bf16.gmra.mxu0 %v3027
    %v4585 = vpop.f32.mrf.mxu0
    %v4586 = vadd.f32 %v4573, %v4585
    %v4587 = vpop.f32.mrf.mxu0
    %4588 = vdwg.mxu0
    %4589 = vmatpush.bf16.msra.mxu0 %v4048
    %4590 = vmatpush.bf16.msra.mxu0 %v4042
    %4591 = vmatpush.bf16.msra.mxu0 %v4036
    %4592 = vmatpush.bf16.msra.mxu0 %v4030
    %4593 = vmatpush.bf16.msra.mxu0 %v4024
    %4594 = vmatpush.bf16.msra.mxu0 %v4018
    %4595 = vmatpush.bf16.msra.mxu0 %v4012
    %4596 = vmatpush.bf16.msra.mxu0 %v4006
    %4597 = vmatmul.bf16.gmra.mxu0 %v3028
    %v4598 = vpop.f32.mrf.mxu0
    %v4599 = vadd.f32 %v4586, %v4598
    %v4600 = vpop.f32.mrf.mxu0
    %4601 = vdwg.mxu0
    %4602 = vmatpush.bf16.msra.mxu0 %v4096
    %4603 = vmatpush.bf16.msra.mxu0 %v4090
    %4604 = vmatpush.bf16.msra.mxu0 %v4084
    %4605 = vmatpush.bf16.msra.mxu0 %v4078
    %4606 = vmatpush.bf16.msra.mxu0 %v4072
    %4607 = vmatpush.bf16.msra.mxu0 %v4066
    %4608 = vmatpush.bf16.msra.mxu0 %v4060
    %4609 = vmatpush.bf16.msra.mxu0 %v4054
    %4610 = vmatmul.bf16.gmra.mxu0 %v3029
    %v4611 = vpop.f32.mrf.mxu0
    %v4612 = vadd.f32 %v4599, %v4611
    %v4613 = vpop.f32.mrf.mxu0
    %4614 = vdwg.mxu0
    %4615 = vmatpush.bf16.msra.mxu0 %v4144
    %4616 = vmatpush.bf16.msra.mxu0 %v4138
    %4617 = vmatpush.bf16.msra.mxu0 %v4132
    %4618 = vmatpush.bf16.msra.mxu0 %v4126
    %4619 = vmatpush.bf16.msra.mxu0 %v4120
    %4620 = vmatpush.bf16.msra.mxu0 %v4114
    %4621 = vmatpush.bf16.msra.mxu0 %v4108
    %4622 = vmatpush.bf16.msra.mxu0 %v4102
    %4623 = vmatmul.bf16.gmra.mxu0 %v3030
    %v4624 = vpop.f32.mrf.mxu0
    %v4625 = vadd.f32 %v4612, %v4624
    %v4626 = vpop.f32.mrf.mxu0
    %4627 = vdwg.mxu0
    %4628 = vmatpush.bf16.msra.mxu0 %v4192
    %4629 = vmatpush.bf16.msra.mxu0 %v4186
    %4630 = vmatpush.bf16.msra.mxu0 %v4180
    %4631 = vmatpush.bf16.msra.mxu0 %v4174
    %4632 = vmatpush.bf16.msra.mxu0 %v4168
    %4633 = vmatpush.bf16.msra.mxu0 %v4162
    %4634 = vmatpush.bf16.msra.mxu0 %v4156
    %4635 = vmatpush.bf16.msra.mxu0 %v4150
    %4636 = vmatmul.bf16.gmra.mxu0 %v3031
    %v4637 = vpop.f32.mrf.mxu0
    %v4638 = vadd.f32 %v4625, %v4637
    %v4639 = vpop.f32.mrf.mxu0
    %4640 = vdwg.mxu0
    %4641 = vmatpush.bf16.msra.mxu0 %v3953
    %4642 = vmatpush.bf16.msra.mxu0 %v3947
    %4643 = vmatpush.bf16.msra.mxu0 %v3941
    %4644 = vmatpush.bf16.msra.mxu0 %v3935
    %4645 = vmatpush.bf16.msra.mxu0 %v3929
    %4646 = vmatpush.bf16.msra.mxu0 %v3923
    %4647 = vmatpush.bf16.msra.mxu0 %v3917
    %4648 = vmatpush.bf16.msra.mxu0 %v3911
    %4649 = vmatmul.bf16.gmra.mxu0 %v3026
    %v4650 = vpop.f32.mrf.mxu0
    %v4651 = vadd.f32 %v3035, %v4650
    %v4652 = vpop.f32.mrf.mxu0
    %4653 = vdwg.mxu0
    %4654 = vmatpush.bf16.msra.mxu0 %v4001
    %4655 = vmatpush.bf16.msra.mxu0 %v3995
    %4656 = vmatpush.bf16.msra.mxu0 %v3989
    %4657 = vmatpush.bf16.msra.mxu0 %v3983
    %4658 = vmatpush.bf16.msra.mxu0 %v3977
    %4659 = vmatpush.bf16.msra.mxu0 %v3971
    %4660 = vmatpush.bf16.msra.mxu0 %v3965
    %4661 = vmatpush.bf16.msra.mxu0 %v3959
    %4662 = vmatmul.bf16.gmra.mxu0 %v3027
    %v4663 = vpop.f32.mrf.mxu0
    %v4664 = vadd.f32 %v4651, %v4663
    %v4665 = vpop.f32.mrf.mxu0
    %4666 = vdwg.mxu0
    %4667 = vmatpush.bf16.msra.mxu0 %v4049
    %4668 = vmatpush.bf16.msra.mxu0 %v4043
    %4669 = vmatpush.bf16.msra.mxu0 %v4037
    %4670 = vmatpush.bf16.msra.mxu0 %v4031
    %4671 = vmatpush.bf16.msra.mxu0 %v4025
    %4672 = vmatpush.bf16.msra.mxu0 %v4019
    %4673 = vmatpush.bf16.msra.mxu0 %v4013
    %4674 = vmatpush.bf16.msra.mxu0 %v4007
    %4675 = vmatmul.bf16.gmra.mxu0 %v3028
    %v4676 = vpop.f32.mrf.mxu0
    %v4677 = vadd.f32 %v4664, %v4676
    %v4678 = vpop.f32.mrf.mxu0
    %4679 = vdwg.mxu0
    %4680 = vmatpush.bf16.msra.mxu0 %v4097
    %4681 = vmatpush.bf16.msra.mxu0 %v4091
    %4682 = vmatpush.bf16.msra.mxu0 %v4085
    %4683 = vmatpush.bf16.msra.mxu0 %v4079
    %4684 = vmatpush.bf16.msra.mxu0 %v4073
    %4685 = vmatpush.bf16.msra.mxu0 %v4067
    %4686 = vmatpush.bf16.msra.mxu0 %v4061
    %4687 = vmatpush.bf16.msra.mxu0 %v4055
    %4688 = vmatmul.bf16.gmra.mxu0 %v3029
    %v4689 = vpop.f32.mrf.mxu0
    %v4690 = vadd.f32 %v4677, %v4689
    %v4691 = vpop.f32.mrf.mxu0
    %4692 = vdwg.mxu0
    %4693 = vmatpush.bf16.msra.mxu0 %v4145
    %4694 = vmatpush.bf16.msra.mxu0 %v4139
    %4695 = vmatpush.bf16.msra.mxu0 %v4133
    %4696 = vmatpush.bf16.msra.mxu0 %v4127
    %4697 = vmatpush.bf16.msra.mxu0 %v4121
    %4698 = vmatpush.bf16.msra.mxu0 %v4115
    %4699 = vmatpush.bf16.msra.mxu0 %v4109
    %4700 = vmatpush.bf16.msra.mxu0 %v4103
    %4701 = vmatmul.bf16.gmra.mxu0 %v3030
    %v4702 = vpop.f32.mrf.mxu0
    %v4703 = vadd.f32 %v4690, %v4702
    %v4704 = vpop.f32.mrf.mxu0
    %4705 = vdwg.mxu0
    %4706 = vmatpush.bf16.msra.mxu0 %v4193
    %4707 = vmatpush.bf16.msra.mxu0 %v4187
    %4708 = vmatpush.bf16.msra.mxu0 %v4181
    %4709 = vmatpush.bf16.msra.mxu0 %v4175
    %4710 = vmatpush.bf16.msra.mxu0 %v4169
    %4711 = vmatpush.bf16.msra.mxu0 %v4163
    %4712 = vmatpush.bf16.msra.mxu0 %v4157
    %4713 = vmatpush.bf16.msra.mxu0 %v4151
    %4714 = vmatmul.bf16.gmra.mxu0 %v3031
    %v4715 = vpop.f32.mrf.mxu0
    %v4716 = vadd.f32 %v4703, %v4715
    %v4717 = vpop.f32.mrf.mxu0
    %4718 = vdwg.mxu0
    %4719 = vmatpush.bf16.msra.mxu0 %v3954
    %4720 = vmatpush.bf16.msra.mxu0 %v3948
    %4721 = vmatpush.bf16.msra.mxu0 %v3942
    %4722 = vmatpush.bf16.msra.mxu0 %v3936
    %4723 = vmatpush.bf16.msra.mxu0 %v3930
    %4724 = vmatpush.bf16.msra.mxu0 %v3924
    %4725 = vmatpush.bf16.msra.mxu0 %v3918
    %4726 = vmatpush.bf16.msra.mxu0 %v3912
    %4727 = vmatmul.bf16.gmra.mxu0 %v3026
    %v4728 = vpop.f32.mrf.mxu0
    %v4729 = vadd.f32 %v3036, %v4728
    %v4730 = vpop.f32.mrf.mxu0
    %4731 = vdwg.mxu0
    %4732 = vmatpush.bf16.msra.mxu0 %v4002
    %4733 = vmatpush.bf16.msra.mxu0 %v3996
    %4734 = vmatpush.bf16.msra.mxu0 %v3990
    %4735 = vmatpush.bf16.msra.mxu0 %v3984
    %4736 = vmatpush.bf16.msra.mxu0 %v3978
    %4737 = vmatpush.bf16.msra.mxu0 %v3972
    %4738 = vmatpush.bf16.msra.mxu0 %v3966
    %4739 = vmatpush.bf16.msra.mxu0 %v3960
    %4740 = vmatmul.bf16.gmra.mxu0 %v3027
    %v4741 = vpop.f32.mrf.mxu0
    %v4742 = vadd.f32 %v4729, %v4741
    %v4743 = vpop.f32.mrf.mxu0
    %4744 = vdwg.mxu0
    %4745 = vmatpush.bf16.msra.mxu0 %v4050
    %4746 = vmatpush.bf16.msra.mxu0 %v4044
    %4747 = vmatpush.bf16.msra.mxu0 %v4038
    %4748 = vmatpush.bf16.msra.mxu0 %v4032
    %4749 = vmatpush.bf16.msra.mxu0 %v4026
    %4750 = vmatpush.bf16.msra.mxu0 %v4020
    %4751 = vmatpush.bf16.msra.mxu0 %v4014
    %4752 = vmatpush.bf16.msra.mxu0 %v4008
    %4753 = vmatmul.bf16.gmra.mxu0 %v3028
    %v4754 = vpop.f32.mrf.mxu0
    %v4755 = vadd.f32 %v4742, %v4754
    %v4756 = vpop.f32.mrf.mxu0
    %4757 = vdwg.mxu0
    %4758 = vmatpush.bf16.msra.mxu0 %v4098
    %4759 = vmatpush.bf16.msra.mxu0 %v4092
    %4760 = vmatpush.bf16.msra.mxu0 %v4086
    %4761 = vmatpush.bf16.msra.mxu0 %v4080
    %4762 = vmatpush.bf16.msra.mxu0 %v4074
    %4763 = vmatpush.bf16.msra.mxu0 %v4068
    %4764 = vmatpush.bf16.msra.mxu0 %v4062
    %4765 = vmatpush.bf16.msra.mxu0 %v4056
    %4766 = vmatmul.bf16.gmra.mxu0 %v3029
    %v4767 = vpop.f32.mrf.mxu0
    %v4768 = vadd.f32 %v4755, %v4767
    %v4769 = vpop.f32.mrf.mxu0
    %4770 = vdwg.mxu0
    %4771 = vmatpush.bf16.msra.mxu0 %v4146
    %4772 = vmatpush.bf16.msra.mxu0 %v4140
    %4773 = vmatpush.bf16.msra.mxu0 %v4134
    %4774 = vmatpush.bf16.msra.mxu0 %v4128
    %4775 = vmatpush.bf16.msra.mxu0 %v4122
    %4776 = vmatpush.bf16.msra.mxu0 %v4116
    %4777 = vmatpush.bf16.msra.mxu0 %v4110
    %4778 = vmatpush.bf16.msra.mxu0 %v4104
    %4779 = vmatmul.bf16.gmra.mxu0 %v3030
    %v4780 = vpop.f32.mrf.mxu0
    %v4781 = vadd.f32 %v4768, %v4780
    %v4782 = vpop.f32.mrf.mxu0
    %4783 = vdwg.mxu0
    %4784 = vmatpush.bf16.msra.mxu0 %v4194
    %4785 = vmatpush.bf16.msra.mxu0 %v4188
    %4786 = vmatpush.bf16.msra.mxu0 %v4182
    %4787 = vmatpush.bf16.msra.mxu0 %v4176
    %4788 = vmatpush.bf16.msra.mxu0 %v4170
    %4789 = vmatpush.bf16.msra.mxu0 %v4164
    %4790 = vmatpush.bf16.msra.mxu0 %v4158
    %4791 = vmatpush.bf16.msra.mxu0 %v4152
    %4792 = vmatmul.bf16.gmra.mxu0 %v3031
    %v4793 = vpop.f32.mrf.mxu0
    %v4794 = vadd.f32 %v4781, %v4793
    %v4795 = vpop.f32.mrf.mxu0
    %4796 = vdwg.mxu0
    %4797 = vmatpush.bf16.msra.mxu0 %v3955
    %4798 = vmatpush.bf16.msra.mxu0 %v3949
    %4799 = vmatpush.bf16.msra.mxu0 %v3943
    %4800 = vmatpush.bf16.msra.mxu0 %v3937
    %4801 = vmatpush.bf16.msra.mxu0 %v3931
    %4802 = vmatpush.bf16.msra.mxu0 %v3925
    %4803 = vmatpush.bf16.msra.mxu0 %v3919
    %4804 = vmatpush.bf16.msra.mxu0 %v3913
    %4805 = vmatmul.bf16.gmra.mxu0 %v3026
    %v4806 = vpop.f32.mrf.mxu0
    %v4807 = vadd.f32 %v3037, %v4806
    %v4808 = vpop.f32.mrf.mxu0
    %4809 = vdwg.mxu0
    %4810 = vmatpush.bf16.msra.mxu0 %v4003
    %4811 = vmatpush.bf16.msra.mxu0 %v3997
    %4812 = vmatpush.bf16.msra.mxu0 %v3991
    %4813 = vmatpush.bf16.msra.mxu0 %v3985
    %4814 = vmatpush.bf16.msra.mxu0 %v3979
    %4815 = vmatpush.bf16.msra.mxu0 %v3973
    %4816 = vmatpush.bf16.msra.mxu0 %v3967
    %4817 = vmatpush.bf16.msra.mxu0 %v3961
    %4818 = vmatmul.bf16.gmra.mxu0 %v3027
    %v4819 = vpop.f32.mrf.mxu0
    %v4820 = vadd.f32 %v4807, %v4819
    %v4821 = vpop.f32.mrf.mxu0
    %4822 = vdwg.mxu0
    %4823 = vmatpush.bf16.msra.mxu0 %v4051
    %4824 = vmatpush.bf16.msra.mxu0 %v4045
    %4825 = vmatpush.bf16.msra.mxu0 %v4039
    %4826 = vmatpush.bf16.msra.mxu0 %v4033
    %4827 = vmatpush.bf16.msra.mxu0 %v4027
    %4828 = vmatpush.bf16.msra.mxu0 %v4021
    %4829 = vmatpush.bf16.msra.mxu0 %v4015
    %4830 = vmatpush.bf16.msra.mxu0 %v4009
    %4831 = vmatmul.bf16.gmra.mxu0 %v3028
    %v4832 = vpop.f32.mrf.mxu0
    %v4833 = vadd.f32 %v4820, %v4832
    %v4834 = vpop.f32.mrf.mxu0
    %4835 = vdwg.mxu0
    %4836 = vmatpush.bf16.msra.mxu0 %v4099
    %4837 = vmatpush.bf16.msra.mxu0 %v4093
    %4838 = vmatpush.bf16.msra.mxu0 %v4087
    %4839 = vmatpush.bf16.msra.mxu0 %v4081
    %4840 = vmatpush.bf16.msra.mxu0 %v4075
    %4841 = vmatpush.bf16.msra.mxu0 %v4069
    %4842 = vmatpush.bf16.msra.mxu0 %v4063
    %4843 = vmatpush.bf16.msra.mxu0 %v4057
    %4844 = vmatmul.bf16.gmra.mxu0 %v3029
    %v4845 = vpop.f32.mrf.mxu0
    %v4846 = vadd.f32 %v4833, %v4845
    %v4847 = vpop.f32.mrf.mxu0
    %4848 = vdwg.mxu0
    %4849 = vmatpush.bf16.msra.mxu0 %v4147
    %4850 = vmatpush.bf16.msra.mxu0 %v4141
    %4851 = vmatpush.bf16.msra.mxu0 %v4135
    %4852 = vmatpush.bf16.msra.mxu0 %v4129
    %4853 = vmatpush.bf16.msra.mxu0 %v4123
    %4854 = vmatpush.bf16.msra.mxu0 %v4117
    %4855 = vmatpush.bf16.msra.mxu0 %v4111
    %4856 = vmatpush.bf16.msra.mxu0 %v4105
    %4857 = vmatmul.bf16.gmra.mxu0 %v3030
    %v4858 = vpop.f32.mrf.mxu0
    %v4859 = vadd.f32 %v4846, %v4858
    %v4860 = vpop.f32.mrf.mxu0
    %4861 = vdwg.mxu0
    %4862 = vmatpush.bf16.msra.mxu0 %v4195
    %4863 = vmatpush.bf16.msra.mxu0 %v4189
    %4864 = vmatpush.bf16.msra.mxu0 %v4183
    %4865 = vmatpush.bf16.msra.mxu0 %v4177
    %4866 = vmatpush.bf16.msra.mxu0 %v4171
    %4867 = vmatpush.bf16.msra.mxu0 %v4165
    %4868 = vmatpush.bf16.msra.mxu0 %v4159
    %4869 = vmatpush.bf16.msra.mxu0 %v4153
    %4870 = vmatmul.bf16.gmra.mxu0 %v3031
    %v4871 = vpop.f32.mrf.mxu0
    %v4872 = vadd.f32 %v4859, %v4871
    %v4873 = vpop.f32.mrf.mxu0
    %4874 = vdwg.mxu0
    %4875 = vmatpush.bf16.msra.mxu0 %v3956
    %4876 = vmatpush.bf16.msra.mxu0 %v3950
    %4877 = vmatpush.bf16.msra.mxu0 %v3944
    %4878 = vmatpush.bf16.msra.mxu0 %v3938
    %4879 = vmatpush.bf16.msra.mxu0 %v3932
    %4880 = vmatpush.bf16.msra.mxu0 %v3926
    %4881 = vmatpush.bf16.msra.mxu0 %v3920
    %4882 = vmatpush.bf16.msra.mxu0 %v3914
    %4883 = vmatmul.bf16.gmra.mxu0 %v3026
    %v4884 = vpop.f32.mrf.mxu0
    %v4885 = vadd.f32 %v3038, %v4884
    %v4886 = vpop.f32.mrf.mxu0
    %4887 = vdwg.mxu0
    %4888 = vmatpush.bf16.msra.mxu0 %v4004
    %4889 = vmatpush.bf16.msra.mxu0 %v3998
    %4890 = vmatpush.bf16.msra.mxu0 %v3992
    %4891 = vmatpush.bf16.msra.mxu0 %v3986
    %4892 = vmatpush.bf16.msra.mxu0 %v3980
    %4893 = vmatpush.bf16.msra.mxu0 %v3974
    %4894 = vmatpush.bf16.msra.mxu0 %v3968
    %4895 = vmatpush.bf16.msra.mxu0 %v3962
    %4896 = vmatmul.bf16.gmra.mxu0 %v3027
    %v4897 = vpop.f32.mrf.mxu0
    %v4898 = vadd.f32 %v4885, %v4897
    %v4899 = vpop.f32.mrf.mxu0
    %4900 = vdwg.mxu0
    %4901 = vmatpush.bf16.msra.mxu0 %v4052
    %4902 = vmatpush.bf16.msra.mxu0 %v4046
    %4903 = vmatpush.bf16.msra.mxu0 %v4040
    %4904 = vmatpush.bf16.msra.mxu0 %v4034
    %4905 = vmatpush.bf16.msra.mxu0 %v4028
    %4906 = vmatpush.bf16.msra.mxu0 %v4022
    %4907 = vmatpush.bf16.msra.mxu0 %v4016
    %4908 = vmatpush.bf16.msra.mxu0 %v4010
    %4909 = vmatmul.bf16.gmra.mxu0 %v3028
    %v4910 = vpop.f32.mrf.mxu0
    %v4911 = vadd.f32 %v4898, %v4910
    %v4912 = vpop.f32.mrf.mxu0
    %4913 = vdwg.mxu0
    %4914 = vmatpush.bf16.msra.mxu0 %v4100
    %4915 = vmatpush.bf16.msra.mxu0 %v4094
    %4916 = vmatpush.bf16.msra.mxu0 %v4088
    %4917 = vmatpush.bf16.msra.mxu0 %v4082
    %4918 = vmatpush.bf16.msra.mxu0 %v4076
    %4919 = vmatpush.bf16.msra.mxu0 %v4070
    %4920 = vmatpush.bf16.msra.mxu0 %v4064
    %4921 = vmatpush.bf16.msra.mxu0 %v4058
    %4922 = vmatmul.bf16.gmra.mxu0 %v3029
    %v4923 = vpop.f32.mrf.mxu0
    %v4924 = vadd.f32 %v4911, %v4923
    %v4925 = vpop.f32.mrf.mxu0
    %4926 = vdwg.mxu0
    %4927 = vmatpush.bf16.msra.mxu0 %v4148
    %4928 = vmatpush.bf16.msra.mxu0 %v4142
    %4929 = vmatpush.bf16.msra.mxu0 %v4136
    %4930 = vmatpush.bf16.msra.mxu0 %v4130
    %4931 = vmatpush.bf16.msra.mxu0 %v4124
    %4932 = vmatpush.bf16.msra.mxu0 %v4118
    %4933 = vmatpush.bf16.msra.mxu0 %v4112
    %4934 = vmatpush.bf16.msra.mxu0 %v4106
    %4935 = vmatmul.bf16.gmra.mxu0 %v3030
    %v4936 = vpop.f32.mrf.mxu0
    %v4937 = vadd.f32 %v4924, %v4936
    %v4938 = vpop.f32.mrf.mxu0
    %4939 = vdwg.mxu0
    %4940 = vmatpush.bf16.msra.mxu0 %v4196
    %4941 = vmatpush.bf16.msra.mxu0 %v4190
    %4942 = vmatpush.bf16.msra.mxu0 %v4184
    %4943 = vmatpush.bf16.msra.mxu0 %v4178
    %4944 = vmatpush.bf16.msra.mxu0 %v4172
    %4945 = vmatpush.bf16.msra.mxu0 %v4166
    %4946 = vmatpush.bf16.msra.mxu0 %v4160
    %4947 = vmatpush.bf16.msra.mxu0 %v4154
    %4948 = vmatmul.bf16.gmra.mxu0 %v3031
    %v4949 = vpop.f32.mrf.mxu0
    %v4950 = vadd.f32 %v4937, %v4949
    %v4951 = vpop.f32.mrf.mxu0
    %4952 = vdwg.mxu0
    %4953 = vst [vmem:[#allocation14] sm:$0xff] %v4560
    %4954 = vst [vmem:[#allocation14 + $0x8] sm:$0xff] %v4638
    %4955 = vst [vmem:[#allocation14 + $0x10] sm:$0xff] %v4716
    %4956 = vst [vmem:[#allocation14 + $0x18] sm:$0xff] %v4794
    %4957 = vst [vmem:[#allocation14 + $0x20] sm:$0xff] %v4872
    %4958 = vst [vmem:[#allocation14 + $0x28] sm:$0xff] %v4950
    // Predicated region
    $region58: #{tpu_custom_call.1} parent=1 // pred_check
      _
    $region59: #{tpu_custom_call.1} parent=1 // pred_check_branch
      %4960 = sbr.rel (0) target = $region61
    $region60: #{tpu_custom_call.1} parent=1 // pred_region
      %4962 = vsyncadd [#allocation4], 0
      %s4964 = sshll.u32 [#allocation14], 4
      %s4965 = int_to_ptr.vmem [resolvable:$true] %s4964
      %s4966 = sshll.u32 %s7, 4
      %s4967 = int_to_ptr.hbm [resolvable:$true] %s4966
      %4969 = dma.vmem_to_hbm [thread:$0]  %s4965, 768, %s4967, [#allocation4]
    $region61: #{tpu_custom_call.1} parent=1 // pred_fallthru
      _
    // Predicated region
    $region62: #{tpu_custom_call.1} parent=1 // pred_check
      _
    $region63: #{tpu_custom_call.1} parent=1 // pred_check_branch
      %4971 = sbr.rel (0) target = $region65
    $region64: #{tpu_custom_call.1} parent=1 // pred_region
      %4973 = dma.done [#allocation4], 768
    $region65: #{tpu_custom_call.1} parent=1 // pred_fallthru
      _
    %4974 = vsyncpa [#allocation3], 1
    %4975 = vsyncpa [#allocation6], 1
    %4976 = vsyncpa [#allocation9], 1
    %4977 = vsyncpa [#allocation12], 1
    %4978 = vsyncpa [#allocation4], 1

</llo_original>
